<compile_context>
chip_gen: v6e
topology: v6e:2x2x1
jax: 0.10.0
libtpu: 0.0.40
codegen_flags: <defaults>
</compile_context>

<pallas_src>
import functools
import math

import jax
import jax.numpy as jnp
from jax.experimental import pallas as pl
from jax.experimental.pallas import tpu as pltpu


_LN_EPS = 1e-5
_LM_TILE = 2048                      # vocab (N) tile for the lm_head sweep
_VMEM_LIMIT = 32 * 1024 * 1024       # safe on v5e/v6e/v7x; re-budget at real sizes


def _round_up(x, m):
    return ((x + m - 1) // m) * m


# ----------------------------- in-kernel helpers -----------------------------

def _mm(x, w_bf16):
    """bf16 MXU matmul with f32 accumulation (x cast to bf16 at the MXU input)."""
    return jnp.dot(x.astype(jnp.bfloat16), w_bf16, preferred_element_type=jnp.float32)


def _ln(x, g, b):
    # one-pass variance: E[x^2] - mu^2 (saves one XLU reduction + one VPU subtract pass)
    mu = jnp.mean(x, axis=-1, keepdims=True)
    ms = jnp.mean(x * x, axis=-1, keepdims=True)
    var = ms - mu * mu
    return (x - mu) * jax.lax.rsqrt(var + _LN_EPS) * g + b


def _gelu(y):
    # TODO(synk): PyTorch nn.GELU() default is the exact erf GELU; tanh approximation
    # used for Mosaic-safe lowering (difference ~1e-3 relative).
    c = math.sqrt(2.0 / math.pi)
    return 0.5 * y * (1.0 + jnp.tanh(c * (y + 0.044715 * y * y * y)))


def _softmax_lastdim(s):
    m = jnp.max(s, axis=-1, keepdims=True)
    p = jnp.exp(s - m)
    return p * pl.reciprocal(jnp.sum(p, axis=-1, keepdims=True), approx=True)


def _mha_ctx(q_ref, q_off, kv_ref, k_off, v_off, ctx_s, num_heads, head_dim):
    """Per-head attention context written into ctx_s [Sq, D] (f32).

    The 1/sqrt(head_dim) scale is already folded into the Q projection weights, so the
    scratch reads are plain bf16 slices. The out-projection is done by the caller as a
    single full-width [Sq, D] @ [D, D] matmul (not per head).
    """
    for h in range(num_heads):
        lo = h * head_dim
        qh = q_ref[:, q_off + lo: q_off + lo + head_dim]           # bf16
        kh = kv_ref[:, k_off + lo: k_off + lo + head_dim]          # bf16
        vh = kv_ref[:, v_off + lo: v_off + lo + head_dim]          # bf16
        s = jnp.einsum('qd,kd->qk', qh, kh, preferred_element_type=jnp.float32)
        p = _softmax_lastdim(s).astype(jnp.bfloat16)
        ctx_s[:, lo:lo + head_dim] = jnp.dot(p, vh, preferred_element_type=jnp.float32)


# ----------------------------- fused kernels -----------------------------

def _vision_kernel(tok_ref, wemb_ref, pos_ref,
                   pre_g_ref, pre_b_ref, ln1_g_ref, ln1_b_ref,
                   wqkv_ref, bqkv_ref, wo_ref, bo_ref,
                   ln2_g_ref, ln2_b_ref, fc1_w_ref, fc1_b_ref, fc2_w_ref, fc2_b_ref,
                   o_ref, qkv_s, ctx_s, *, num_heads, head_dim):
    d = pos_ref.shape[-1]
    # patch + cls embedding in one matmul (cls folded via one-hot token row) + pos embed
    x = jnp.dot(tok_ref[...], wemb_ref[...], preferred_element_type=jnp.float32) + pos_ref[...]
    x = _ln(x, pre_g_ref[...], pre_b_ref[...])
    # pre-LN self-attention with fused QKV projection (scale pre-folded into Q columns)
    h = _ln(x, ln1_g_ref[...], ln1_b_ref[...])
    qkv_s[...] = (_mm(h, wqkv_ref[...]) + bqkv_ref[...]).astype(jnp.bfloat16)   # [T, 3D]
    _mha_ctx(qkv_s, 0, qkv_s, d, 2 * d, ctx_s, num_heads, head_dim)
    x = x + _mm(ctx_s[...], wo_ref[...]) + bo_ref[...]
    # pre-LN GELU MLP
    h = _ln(x, ln2_g_ref[...], ln2_b_ref[...])
    h = _gelu(_mm(h, fc1_w_ref[...]) + fc1_b_ref[...])
    x = x + _mm(h, fc2_w_ref[...]) + fc2_b_ref[...]
    o_ref[...] = x


def _cross_stack_kernel(x_ref, vis_ref, ng_ref, nb_ref,
                        wq_ref, bq_ref, wkv_ref, bkv_ref, wo_ref, bo_ref,
                        w1_ref, b1_ref, w2_ref, b2_ref,
                        o_ref, q_s, kv_s, ctx_s, *, num_layers, num_heads, head_dim):
    d = x_ref.shape[-1]
    x = x_ref[...]                                    # [S, D]
    vis = vis_ref[...]                                # [T, D] — resident for both layers
    for l in range(num_layers):                       # static unroll over the 2 blocks
        # the SAME LayerNorm is applied to x, visual_embeds and the MLP input (as in PyTorch)
        xn = _ln(x, ng_ref[l], nb_ref[l])
        visn = _ln(vis, ng_ref[l], nb_ref[l])
        q_s[...] = (_mm(xn, wq_ref[l]) + bq_ref[l]).astype(jnp.bfloat16)     # [S, D]
        kv_s[...] = (_mm(visn, wkv_ref[l]) + bkv_ref[l]).astype(jnp.bfloat16)  # [T, 2D]
        _mha_ctx(q_s, 0, kv_s, 0, d, ctx_s, num_heads, head_dim)
        x = x + _mm(ctx_s[...], wo_ref[l]) + bo_ref[l]
        h = _ln(x, ng_ref[l], nb_ref[l])
        h = _gelu(_mm(h, w1_ref[l]) + b1_ref[l])
        x = x + _mm(h, w2_ref[l]) + b2_ref[l]
    o_ref[...] = x


def _lm_head_kernel(x_ref, w_ref, o_ref):
    o_ref[...] = jnp.dot(x_ref[...].astype(jnp.bfloat16), w_ref[...],
                         preferred_element_type=jnp.float32)


# ----------------------------- BlockSpec helpers -----------------------------

def _batch_spec(tail):
    """Per-batch-element block of a [B, ...] array; the batch dim is squeezed."""
    tail = tuple(tail)
    return pl.BlockSpec((None,) + tail, lambda b: (b,) + (0,) * len(tail))


def _whole_spec(arr):
    """Whole array as a single block (constant index -> fetched once across the grid)."""
    shape = arr.shape
    return pl.BlockSpec(shape, lambda b: (0,) * len(shape))


# ----------------------------- model pieces -----------------------------

def vision_encoder(images, vp, num_heads, patch):
    # TODO(synk): pretrained CLIP ViT is replaced by a deterministically initialized
    # mini ViT with the same computational structure; no checkpoint is loaded.
    B, C, H, W = images.shape
    gh, gw = H // patch, W // patch
    P = gh * gw
    T = P + 1
    D = vp['pos'].shape[-1]
    Cpad = vp['w_embed'].shape[0]            # padded im2col contraction dim (mult of 128)
    Cpp = C * patch * patch
    head_dim = D // num_heads

    # im2col patch extraction (glue). cls handled by a one-hot token row so cls + patch
    # embedding is a single fused matmul inside the kernel. tok is sent bf16.
    patches = images.reshape(B, C, gh, patch, gw, patch).transpose(0, 2, 4, 1, 3, 5)
    patches = patches.reshape(B, P, Cpp)
    tok = jnp.pad(patches, ((0, 0), (1, 0), (1, Cpad - 1 - Cpp)))
    cls_onehot = jnp.zeros((1, T, Cpad), jnp.float32).at[0, 0, 0].set(1.0)
    tok = (tok + cls_onehot).astype(jnp.bfloat16)

    kernel = functools.partial(_vision_kernel, num_heads=num_heads, head_dim=head_dim)
    args = (tok, vp['w_embed'], vp['pos'], vp['pre_g'], vp['pre_b'],
            vp['ln1_g'], vp['ln1_b'], vp['wqkv'], vp['bqkv'], vp['wo'], vp['bo'],
            vp['ln2_g'], vp['ln2_b'], vp['fc1_w'], vp['fc1_b'], vp['fc2_w'], vp['fc2_b'])
    in_specs = [_batch_spec((T, Cpad))] + [_whole_spec(a) for a in args[1:]]
    return pl.pallas_call(
        kernel,
        out_shape=jax.ShapeDtypeStruct((B, T, D), jnp.float32),
        grid=(B,),
        in_specs=in_specs,
        out_specs=_batch_spec((T, D)),
        scratch_shapes=[pltpu.VMEM((T, 3 * D), jnp.bfloat16),
                        pltpu.VMEM((T, D), jnp.float32)],
        compiler_params=pltpu.CompilerParams(
            dimension_semantics=("parallel",),          # compute-bound: shard batch
            vmem_limit_bytes=_VMEM_LIMIT),
    )(*args)


def cross_attention_stack(x, vis, cp, num_heads):
    """Both cross-attention blocks fused into one pallas_call; vis fetched once."""
    B, S, D = x.shape
    T = vis.shape[1]
    L = cp['norm_g'].shape[0]
    head_dim = D // num_heads
    kernel = functools.partial(_cross_stack_kernel, num_layers=L,
                               num_heads=num_heads, head_dim=head_dim)
    args = (x, vis, cp['norm_g'], cp['norm_b'], cp['wq'], cp['bq'], cp['wkv'], cp['bkv'],
            cp['wo'], cp['bo'], cp['mlp_w1'], cp['mlp_b1'], cp['mlp_w2'], cp['mlp_b2'])
    in_specs = [_batch_spec((S, D)), _batch_spec((T, D))] + [_whole_spec(a) for a in args[2:]]
    return pl.pallas_call(
        kernel,
        out_shape=jax.ShapeDtypeStruct((B, S, D), jnp.float32),
        grid=(B,),
        in_specs=in_specs,
        out_specs=_batch_spec((S, D)),
        scratch_shapes=[pltpu.VMEM((S, D), jnp.bfloat16),
                        pltpu.VMEM((T, 2 * D), jnp.bfloat16),
                        pltpu.VMEM((S, D), jnp.float32)],
        input_output_aliases={0: 0},        # residual input buffer reused for the output
        compiler_params=pltpu.CompilerParams(
            # sequential over batch: weight-BW bound at S=8, so don't duplicate the
            # constant-index weight DMA across TensorCores.
            dimension_semantics=("arbitrary",),
            vmem_limit_bytes=_VMEM_LIMIT),
    )(*args)


def lm_head(hidden, w_pad_bf16):
    # w_pad_bf16 is [D, vocab_pad]: pre-transposed, lane-padded copy of wte built at init.
    # The weight is streamed over a vocab-tile grid (double-buffered) so it never has to
    # fit whole in VMEM (required at real vocab on v7x).
    B, S, D = hidden.shape
    Vp = w_pad_bf16.shape[1]
    x2 = hidden.reshape(B * S, D)
    tn = min(Vp, _LM_TILE)
    assert Vp % tn == 0
    out = pl.pallas_call(
        _lm_head_kernel,
        out_shape=jax.ShapeDtypeStruct((B * S, Vp), jnp.float32),
        grid=(Vp // tn,),
        in_specs=[pl.BlockSpec((B * S, D), lambda j: (0, 0)),
                  pl.BlockSpec((D, tn), lambda j: (0, j))],
        out_specs=pl.BlockSpec((B * S, tn), lambda j: (0, j)),
        compiler_params=pltpu.CompilerParams(
            dimension_semantics=("parallel",),
            vmem_limit_bytes=_VMEM_LIMIT),
    )(x2, w_pad_bf16)
    return out.reshape(B, S, Vp)


@functools.partial(jax.jit, static_argnums=(3, 4, 5))
def _forward_impl(weights, images, input_ids, num_heads, patch, vocab):
    vision_outputs = vision_encoder(images, weights['vision'], num_heads, patch)
    hidden = weights['wte'][input_ids]                  # glue: GPT-2 wte embedding lookup
    hidden = cross_attention_stack(hidden, vision_outputs, weights['cross'], num_heads)
    logits_pad = lm_head(hidden, weights['lm_head_w'])  # tied lm_head (pre-transposed copy)
    return logits_pad[:, :, :vocab]                     # slice padded vocab lanes back


def flamingo_mini_forward(params, images, input_ids, attention_mask=None):
    # attention_mask is accepted but unused, exactly like the reference forward.
    del attention_mask
    num_heads, patch, vocab = params['num_heads'], params['patch'], params['vocab']
    weights = {k: v for k, v in params.items() if k not in ('num_heads', 'patch', 'vocab')}
    return _forward_impl(weights, images, input_ids, num_heads, patch, vocab)


# ----------------------------- parameters -----------------------------

def init_params(key, *, dim, num_heads, vocab, patch, img, chans, num_cross_layers):
    n_tokens = (img // patch) ** 2 + 1
    hd = dim // num_heads
    scale = 1.0 / math.sqrt(hd)          # folded into the Q projection weights below
    keys = iter(jax.random.split(key, 64))

    def nrm(shape):
        return 0.02 * jax.random.normal(next(keys), shape, dtype=jnp.float32)

    ones = lambda s: jnp.ones(s, jnp.float32)
    zeros = lambda s: jnp.zeros(s, jnp.float32)
    bf = lambda a: a.astype(jnp.bfloat16)

    # vision encoder: cls vector on row 0 of the (128-padded) patch-embed weight
    Cpp = chans * patch * patch
    Cpad = _round_up(Cpp + 1, 128)
    patch_w = nrm((Cpp, dim))
    cls_vec = nrm((dim,))
    w_embed = jnp.zeros((Cpad, dim), jnp.float32).at[0].set(cls_vec).at[1:Cpp + 1].set(patch_w)

    wq, wk, wv = nrm((dim, dim)), nrm((dim, dim)), nrm((dim, dim))
    vision = dict(
        w_embed=bf(w_embed),                                                # [Cpad, D]
        pos=nrm((n_tokens, dim)),
        pre_g=ones((1, dim)), pre_b=zeros((1, dim)),
        ln1_g=ones((1, dim)), ln1_b=zeros((1, dim)),
        # 1/sqrt(head_dim) folded into Q columns (bias is zero so needs no scaling)
        wqkv=bf(jnp.concatenate([wq * scale, wk, wv], axis=1)),             # fused [D, 3D]
        bqkv=zeros((1, 3 * dim)),
        wo=bf(nrm((dim, dim))),                                             # flat [D, D]
        bo=zeros((1, dim)),
        ln2_g=ones((1, dim)), ln2_b=zeros((1, dim)),
        fc1_w=bf(nrm((dim, 4 * dim))), fc1_b=zeros((1, 4 * dim)),
        fc2_w=bf(nrm((4 * dim, dim))), fc2_b=zeros((1, dim)),
    )

    per_layer = []
    for _ in range(num_cross_layers):
        wq_c, wk_c, wv_c = nrm((dim, dim)), nrm((dim, dim)), nrm((dim, dim))
        per_layer.append(dict(
            norm_g=ones((1, dim)), norm_b=zeros((1, dim)),
            wq=bf(wq_c * scale), bq=zeros((1, dim)),
            wkv=bf(jnp.concatenate([wk_c, wv_c], axis=1)),                  # fused [D, 2D]
            bkv=zeros((1, 2 * dim)),
            wo=bf(nrm((dim, dim))), bo=zeros((1, dim)),
            mlp_w1=bf(nrm((dim, 4 * dim))), mlp_b1=zeros((1, 4 * dim)),
            mlp_w2=bf(nrm((4 * dim, dim))), mlp_b2=zeros((1, dim)),
        ))
    # stack the blocks on a leading layer axis so both run inside one fused kernel
    cross = {k: jnp.stack([layer[k] for layer in per_layer], axis=0)
             for k in per_layer[0]}

    wte = nrm((vocab, dim))                     # f32 table for the embedding gather
    vocab_pad = _round_up(vocab, 128)           # lane-dense lm_head output
    if vocab_pad > _LM_TILE:
        vocab_pad = _round_up(vocab_pad, _LM_TILE)   # even vocab-tile grid
    lm_head_w = jnp.zeros((dim, vocab_pad), jnp.float32).at[:, :vocab].set(wte.T)

    return dict(vision=vision, cross=cross,
                wte=wte, lm_head_w=bf(lm_head_w),
                num_heads=num_heads, patch=patch, vocab=vocab)


# ----------------------------- main -----------------------------

if __name__ == "__main__":
    B, seq, dim, heads, vocab = 2, 8, 32, 4, 64
    chans, img, patch = 3, 16, 8

    key = jax.random.PRNGKey(0)
    pkey, ikey, tkey = jax.random.split(key, 3)

    params = init_params(pkey, dim=dim, num_heads=heads, vocab=vocab,
                         patch=patch, img=img, chans=chans, num_cross_layers=2)

    images = jax.random.normal(ikey, (B, chans, img, img), dtype=jnp.float32)
    input_ids = jax.random.randint(tkey, (B, seq), 0, vocab)
    attention_mask = jnp.ones((B, seq), dtype=jnp.int32)

    logits = flamingo_mini_forward(params, images, input_ids, attention_mask)
    jax.block_until_ready(logits)
    assert logits.shape == (B, seq, vocab), logits.shape
    assert bool(jnp.all(jnp.isfinite(logits)))
    print("KERNEL_OK")
</pallas_src>

<mosaic_0001>
module attributes {stable_mosaic.version = 11 : i64} {
  func.func @_vision_kernel(%arg0: i32, %arg1: memref<1x5x256xbf16, #tpu.memory_space<vmem>>, %arg2: memref<256x32xbf16, #tpu.memory_space<vmem>>, %arg3: memref<5x32xf32, #tpu.memory_space<vmem>>, %arg4: memref<1x32xf32, #tpu.memory_space<vmem>>, %arg5: memref<1x32xf32, #tpu.memory_space<vmem>>, %arg6: memref<1x32xf32, #tpu.memory_space<vmem>>, %arg7: memref<1x32xf32, #tpu.memory_space<vmem>>, %arg8: memref<32x96xbf16, #tpu.memory_space<vmem>>, %arg9: memref<1x96xf32, #tpu.memory_space<vmem>>, %arg10: memref<32x32xbf16, #tpu.memory_space<vmem>>, %arg11: memref<1x32xf32, #tpu.memory_space<vmem>>, %arg12: memref<1x32xf32, #tpu.memory_space<vmem>>, %arg13: memref<1x32xf32, #tpu.memory_space<vmem>>, %arg14: memref<32x128xbf16, #tpu.memory_space<vmem>>, %arg15: memref<1x128xf32, #tpu.memory_space<vmem>>, %arg16: memref<128x32xbf16, #tpu.memory_space<vmem>>, %arg17: memref<1x32xf32, #tpu.memory_space<vmem>>, %arg18: memref<1x5x32xf32, #tpu.memory_space<vmem>>, %arg19: memref<5x96xbf16, #tpu.memory_space<vmem>>, %arg20: memref<5x32xf32, #tpu.memory_space<vmem>>) attributes {dimension_semantics = [#tpu.dimension_semantics<parallel>], iteration_bounds = array<i64: 2>, scalar_prefetch = 0 : i64, scratch_operands = 2 : i64, tpu.core_type = #tpu.core_type<tc>, window_params = [{transform_indices = @transform_0, window_bounds = array<i64: 1, 5, 256>}, {pipeline_mode = #tpu.pipeline_mode<synchronous>, transform_indices = @transform_1, window_bounds = array<i64: 256, 32>}, {pipeline_mode = #tpu.pipeline_mode<synchronous>, transform_indices = @transform_2, window_bounds = array<i64: 5, 32>}, {pipeline_mode = #tpu.pipeline_mode<synchronous>, transform_indices = @transform_3, window_bounds = array<i64: 1, 32>}, {pipeline_mode = #tpu.pipeline_mode<synchronous>, transform_indices = @transform_4, window_bounds = array<i64: 1, 32>}, {pipeline_mode = #tpu.pipeline_mode<synchronous>, transform_indices = @transform_5, window_bounds = array<i64: 1, 32>}, {pipeline_mode = #tpu.pipeline_mode<synchronous>, transform_indices = @transform_6, window_bounds = array<i64: 1, 32>}, {pipeline_mode = #tpu.pipeline_mode<synchronous>, transform_indices = @transform_7, window_bounds = array<i64: 32, 96>}, {pipeline_mode = #tpu.pipeline_mode<synchronous>, transform_indices = @transform_8, window_bounds = array<i64: 1, 96>}, {pipeline_mode = #tpu.pipeline_mode<synchronous>, transform_indices = @transform_9, window_bounds = array<i64: 32, 32>}, {pipeline_mode = #tpu.pipeline_mode<synchronous>, transform_indices = @transform_10, window_bounds = array<i64: 1, 32>}, {pipeline_mode = #tpu.pipeline_mode<synchronous>, transform_indices = @transform_11, window_bounds = array<i64: 1, 32>}, {pipeline_mode = #tpu.pipeline_mode<synchronous>, transform_indices = @transform_12, window_bounds = array<i64: 1, 32>}, {pipeline_mode = #tpu.pipeline_mode<synchronous>, transform_indices = @transform_13, window_bounds = array<i64: 32, 128>}, {pipeline_mode = #tpu.pipeline_mode<synchronous>, transform_indices = @transform_14, window_bounds = array<i64: 1, 128>}, {pipeline_mode = #tpu.pipeline_mode<synchronous>, transform_indices = @transform_15, window_bounds = array<i64: 128, 32>}, {pipeline_mode = #tpu.pipeline_mode<synchronous>, transform_indices = @transform_16, window_bounds = array<i64: 1, 32>}, {transform_indices = @transform_17, window_bounds = array<i64: 1, 5, 32>}]} {
    %c0 = arith.constant 0 : index
    %c0_0 = arith.constant 0 : index
    %c0_1 = arith.constant 0 : index
    %0 = vector.load %arg1[%c0, %c0_0, %c0_1] : memref<1x5x256xbf16, #tpu.memory_space<vmem>>, vector<1x5x256xbf16>
    %1 = vector.shape_cast %0 : vector<1x5x256xbf16> to vector<5x256xbf16>
    %c0_2 = arith.constant 0 : index
    %c0_3 = arith.constant 0 : index
    %2 = vector.load %arg2[%c0_2, %c0_3] : memref<256x32xbf16, #tpu.memory_space<vmem>>, vector<256x32xbf16>
    %cst = arith.constant dense<0.000000e+00> : vector<5x32xf32>
    %3 = tpu.matmul %1, %2, %cst {dimension_numbers = #tpu.dot_dimension_numbers<[1], [0], [0], [1], [0, 0, 1, 1], [], []>} : vector<5x256xbf16>, vector<256x32xbf16>, vector<5x32xf32> -> vector<5x32xf32>
    %c0_4 = arith.constant 0 : index
    %c0_5 = arith.constant 0 : index
    %4 = vector.load %arg3[%c0_4, %c0_5] : memref<5x32xf32, #tpu.memory_space<vmem>>, vector<5x32xf32>
    %5 = arith.addf %3, %4 : vector<5x32xf32>
    %c0_6 = arith.constant 0 : index
    %c0_7 = arith.constant 0 : index
    %6 = vector.load %arg4[%c0_6, %c0_7] : memref<1x32xf32, #tpu.memory_space<vmem>>, vector<1x32xf32>
    %c0_8 = arith.constant 0 : index
    %c0_9 = arith.constant 0 : index
    %7 = vector.load %arg5[%c0_8, %c0_9] : memref<1x32xf32, #tpu.memory_space<vmem>>, vector<1x32xf32>
    %cst_10 = arith.constant dense<0.000000e+00> : vector<5xf32>
    %8 = vector.multi_reduction <add>, %5, %cst_10 [1] : vector<5x32xf32> to vector<5xf32>
    %9 = vector.shape_cast %8 : vector<5xf32> to vector<5x1xf32>
    %cst_11 = arith.constant 3.200000e+01 : f32
    %10 = vector.broadcast %cst_11 : f32 to vector<5x1xf32>
    %11 = arith.divf %9, %10 : vector<5x1xf32>
    %12 = arith.mulf %5, %5 : vector<5x32xf32>
    %cst_12 = arith.constant dense<0.000000e+00> : vector<5xf32>
    %13 = vector.multi_reduction <add>, %12, %cst_12 [1] : vector<5x32xf32> to vector<5xf32>
    %14 = vector.shape_cast %13 : vector<5xf32> to vector<5x1xf32>
    %cst_13 = arith.constant 3.200000e+01 : f32
    %15 = vector.broadcast %cst_13 : f32 to vector<5x1xf32>
    %16 = arith.divf %14, %15 : vector<5x1xf32>
    %17 = arith.mulf %11, %11 : vector<5x1xf32>
    %18 = arith.subf %16, %17 : vector<5x1xf32>
    %19 = vector.broadcast %11 : vector<5x1xf32> to vector<5x32xf32>
    %20 = arith.subf %5, %19 : vector<5x32xf32>
    %cst_14 = arith.constant 9.99999974E-6 : f32
    %21 = vector.broadcast %cst_14 : f32 to vector<5x1xf32>
    %22 = arith.addf %18, %21 : vector<5x1xf32>
    %23 = math.rsqrt %22 : vector<5x1xf32>
    %24 = vector.broadcast %23 : vector<5x1xf32> to vector<5x32xf32>
    %25 = arith.mulf %20, %24 : vector<5x32xf32>
    %26 = vector.broadcast %6 : vector<1x32xf32> to vector<5x32xf32>
    %27 = arith.mulf %25, %26 : vector<5x32xf32>
    %28 = vector.broadcast %7 : vector<1x32xf32> to vector<5x32xf32>
    %29 = arith.addf %27, %28 : vector<5x32xf32>
    %c0_15 = arith.constant 0 : index
    %c0_16 = arith.constant 0 : index
    %30 = vector.load %arg6[%c0_15, %c0_16] : memref<1x32xf32, #tpu.memory_space<vmem>>, vector<1x32xf32>
    %c0_17 = arith.constant 0 : index
    %c0_18 = arith.constant 0 : index
    %31 = vector.load %arg7[%c0_17, %c0_18] : memref<1x32xf32, #tpu.memory_space<vmem>>, vector<1x32xf32>
    %cst_19 = arith.constant dense<0.000000e+00> : vector<5xf32>
    %32 = vector.multi_reduction <add>, %29, %cst_19 [1] : vector<5x32xf32> to vector<5xf32>
    %33 = vector.shape_cast %32 : vector<5xf32> to vector<5x1xf32>
    %cst_20 = arith.constant 3.200000e+01 : f32
    %34 = vector.broadcast %cst_20 : f32 to vector<5x1xf32>
    %35 = arith.divf %33, %34 : vector<5x1xf32>
    %36 = arith.mulf %29, %29 : vector<5x32xf32>
    %cst_21 = arith.constant dense<0.000000e+00> : vector<5xf32>
    %37 = vector.multi_reduction <add>, %36, %cst_21 [1] : vector<5x32xf32> to vector<5xf32>
    %38 = vector.shape_cast %37 : vector<5xf32> to vector<5x1xf32>
    %cst_22 = arith.constant 3.200000e+01 : f32
    %39 = vector.broadcast %cst_22 : f32 to vector<5x1xf32>
    %40 = arith.divf %38, %39 : vector<5x1xf32>
    %41 = arith.mulf %35, %35 : vector<5x1xf32>
    %42 = arith.subf %40, %41 : vector<5x1xf32>
    %43 = vector.broadcast %35 : vector<5x1xf32> to vector<5x32xf32>
    %44 = arith.subf %29, %43 : vector<5x32xf32>
    %cst_23 = arith.constant 9.99999974E-6 : f32
    %45 = vector.broadcast %cst_23 : f32 to vector<5x1xf32>
    %46 = arith.addf %42, %45 : vector<5x1xf32>
    %47 = math.rsqrt %46 : vector<5x1xf32>
    %48 = vector.broadcast %47 : vector<5x1xf32> to vector<5x32xf32>
    %49 = arith.mulf %44, %48 : vector<5x32xf32>
    %50 = vector.broadcast %30 : vector<1x32xf32> to vector<5x32xf32>
    %51 = arith.mulf %49, %50 : vector<5x32xf32>
    %52 = vector.broadcast %31 : vector<1x32xf32> to vector<5x32xf32>
    %53 = arith.addf %51, %52 : vector<5x32xf32>
    %c0_24 = arith.constant 0 : index
    %c0_25 = arith.constant 0 : index
    %54 = vector.load %arg8[%c0_24, %c0_25] : memref<32x96xbf16, #tpu.memory_space<vmem>>, vector<32x96xbf16>
    %55 = arith.truncf %53 : vector<5x32xf32> to vector<5x32xbf16>
    %cst_26 = arith.constant dense<0.000000e+00> : vector<5x96xf32>
    %56 = tpu.matmul %55, %54, %cst_26 {dimension_numbers = #tpu.dot_dimension_numbers<[1], [0], [0], [1], [0, 0, 1, 1], [], []>} : vector<5x32xbf16>, vector<32x96xbf16>, vector<5x96xf32> -> vector<5x96xf32>
    %c0_27 = arith.constant 0 : index
    %c0_28 = arith.constant 0 : index
    %57 = vector.load %arg9[%c0_27, %c0_28] : memref<1x96xf32, #tpu.memory_space<vmem>>, vector<1x96xf32>
    %58 = vector.broadcast %57 : vector<1x96xf32> to vector<5x96xf32>
    %59 = arith.addf %56, %58 : vector<5x96xf32>
    %60 = arith.truncf %59 : vector<5x96xf32> to vector<5x96xbf16>
    %c0_29 = arith.constant 0 : index
    %c0_30 = arith.constant 0 : index
    %61 = vector.load %arg19[%c0_29, %c0_30] : memref<5x96xbf16, #tpu.memory_space<vmem>>, vector<5x96xbf16>
    tpu.vector_store %arg19[%c0_29, %c0_30], %60 {strides = array<i32>} : memref<5x96xbf16, #tpu.memory_space<vmem>>, vector<5x96xbf16>,
    %c0_31 = arith.constant 0 : index
    %c0_32 = arith.constant 0 : index
    %62 = vector.load %arg19[%c0_31, %c0_32] : memref<5x96xbf16, #tpu.memory_space<vmem>>, vector<5x8xbf16>
    %c0_33 = arith.constant 0 : index
    %c32 = arith.constant 32 : index
    %63 = vector.load %arg19[%c0_33, %c32] : memref<5x96xbf16, #tpu.memory_space<vmem>>, vector<5x8xbf16>
    %c0_34 = arith.constant 0 : index
    %c64 = arith.constant 64 : index
    %64 = vector.load %arg19[%c0_34, %c64] : memref<5x96xbf16, #tpu.memory_space<vmem>>, vector<5x8xbf16>
    "tpu.trace_start"() <{level = 10 : i32, message = "qd,kd->qk"}> : () -> ()
    %cst_35 = arith.constant dense<0.000000e+00> : vector<5x5xf32>
    %65 = tpu.matmul %62, %63, %cst_35 {dimension_numbers = #tpu.dot_dimension_numbers<[1], [1], [0], [0], [0, 0, 1, 0], [], []>} : vector<5x8xbf16>, vector<5x8xbf16>, vector<5x5xf32> -> vector<5x5xf32>
    "tpu.trace_stop"() : () -> ()
    %cst_36 = arith.constant dense<0xFF800000> : vector<5xf32>
    %66 = vector.multi_reduction <maximumf>, %65, %cst_36 [1] : vector<5x5xf32> to vector<5xf32>
    %67 = vector.shape_cast %66 : vector<5xf32> to vector<5x1xf32>
    %68 = vector.broadcast %67 : vector<5x1xf32> to vector<5x5xf32>
    %69 = arith.subf %65, %68 : vector<5x5xf32>
    %70 = math.exp %69 : vector<5x5xf32>
    %cst_37 = arith.constant dense<0.000000e+00> : vector<5xf32>
    %71 = vector.multi_reduction <add>, %70, %cst_37 [1] : vector<5x5xf32> to vector<5xf32>
    %72 = vector.shape_cast %71 : vector<5xf32> to vector<5x1xf32>
    %73 = tpu.reciprocal %72 {approx = true} : vector<5x1xf32> -> vector<5x1xf32>
    %74 = vector.broadcast %73 : vector<5x1xf32> to vector<5x5xf32>
    %75 = arith.mulf %70, %74 : vector<5x5xf32>
    %76 = arith.truncf %75 : vector<5x5xf32> to vector<5x5xbf16>
    %cst_38 = arith.constant dense<0.000000e+00> : vector<5x8xf32>
    %77 = tpu.matmul %76, %64, %cst_38 {dimension_numbers = #tpu.dot_dimension_numbers<[1], [0], [0], [1], [0, 0, 1, 1], [], []>} : vector<5x5xbf16>, vector<5x8xbf16>, vector<5x8xf32> -> vector<5x8xf32>
    %c0_39 = arith.constant 0 : index
    %c0_40 = arith.constant 0 : index
    %78 = vector.load %arg20[%c0_39, %c0_40] : memref<5x32xf32, #tpu.memory_space<vmem>>, vector<5x8xf32>
    tpu.vector_store %arg20[%c0_39, %c0_40], %77 {strides = array<i32>} : memref<5x32xf32, #tpu.memory_space<vmem>>, vector<5x8xf32>,
    %c0_41 = arith.constant 0 : index
    %c8 = arith.constant 8 : index
    %79 = vector.load %arg19[%c0_41, %c8] : memref<5x96xbf16, #tpu.memory_space<vmem>>, vector<5x8xbf16>
    %c0_42 = arith.constant 0 : index
    %c40 = arith.constant 40 : index
    %80 = vector.load %arg19[%c0_42, %c40] : memref<5x96xbf16, #tpu.memory_space<vmem>>, vector<5x8xbf16>
    %c0_43 = arith.constant 0 : index
    %c72 = arith.constant 72 : index
    %81 = vector.load %arg19[%c0_43, %c72] : memref<5x96xbf16, #tpu.memory_space<vmem>>, vector<5x8xbf16>
    "tpu.trace_start"() <{level = 10 : i32, message = "qd,kd->qk"}> : () -> ()
    %cst_44 = arith.constant dense<0.000000e+00> : vector<5x5xf32>
    %82 = tpu.matmul %79, %80, %cst_44 {dimension_numbers = #tpu.dot_dimension_numbers<[1], [1], [0], [0], [0, 0, 1, 0], [], []>} : vector<5x8xbf16>, vector<5x8xbf16>, vector<5x5xf32> -> vector<5x5xf32>
    "tpu.trace_stop"() : () -> ()
    %cst_45 = arith.constant dense<0xFF800000> : vector<5xf32>
    %83 = vector.multi_reduction <maximumf>, %82, %cst_45 [1] : vector<5x5xf32> to vector<5xf32>
    %84 = vector.shape_cast %83 : vector<5xf32> to vector<5x1xf32>
    %85 = vector.broadcast %84 : vector<5x1xf32> to vector<5x5xf32>
    %86 = arith.subf %82, %85 : vector<5x5xf32>
    %87 = math.exp %86 : vector<5x5xf32>
    %cst_46 = arith.constant dense<0.000000e+00> : vector<5xf32>
    %88 = vector.multi_reduction <add>, %87, %cst_46 [1] : vector<5x5xf32> to vector<5xf32>
    %89 = vector.shape_cast %88 : vector<5xf32> to vector<5x1xf32>
    %90 = tpu.reciprocal %89 {approx = true} : vector<5x1xf32> -> vector<5x1xf32>
    %91 = vector.broadcast %90 : vector<5x1xf32> to vector<5x5xf32>
    %92 = arith.mulf %87, %91 : vector<5x5xf32>
    %93 = arith.truncf %92 : vector<5x5xf32> to vector<5x5xbf16>
    %cst_47 = arith.constant dense<0.000000e+00> : vector<5x8xf32>
    %94 = tpu.matmul %93, %81, %cst_47 {dimension_numbers = #tpu.dot_dimension_numbers<[1], [0], [0], [1], [0, 0, 1, 1], [], []>} : vector<5x5xbf16>, vector<5x8xbf16>, vector<5x8xf32> -> vector<5x8xf32>
    %c0_48 = arith.constant 0 : index
    %c8_49 = arith.constant 8 : index
    %95 = vector.load %arg20[%c0_48, %c8_49] : memref<5x32xf32, #tpu.memory_space<vmem>>, vector<5x8xf32>
    tpu.vector_store %arg20[%c0_48, %c8_49], %94 {strides = array<i32>} : memref<5x32xf32, #tpu.memory_space<vmem>>, vector<5x8xf32>,
    %c0_50 = arith.constant 0 : index
    %c16 = arith.constant 16 : index
    %96 = vector.load %arg19[%c0_50, %c16] : memref<5x96xbf16, #tpu.memory_space<vmem>>, vector<5x8xbf16>
    %c0_51 = arith.constant 0 : index
    %c48 = arith.constant 48 : index
    %97 = vector.load %arg19[%c0_51, %c48] : memref<5x96xbf16, #tpu.memory_space<vmem>>, vector<5x8xbf16>
    %c0_52 = arith.constant 0 : index
    %c80 = arith.constant 80 : index
    %98 = vector.load %arg19[%c0_52, %c80] : memref<5x96xbf16, #tpu.memory_space<vmem>>, vector<5x8xbf16>
    "tpu.trace_start"() <{level = 10 : i32, message = "qd,kd->qk"}> : () -> ()
    %cst_53 = arith.constant dense<0.000000e+00> : vector<5x5xf32>
    %99 = tpu.matmul %96, %97, %cst_53 {dimension_numbers = #tpu.dot_dimension_numbers<[1], [1], [0], [0], [0, 0, 1, 0], [], []>} : vector<5x8xbf16>, vector<5x8xbf16>, vector<5x5xf32> -> vector<5x5xf32>
    "tpu.trace_stop"() : () -> ()
    %cst_54 = arith.constant dense<0xFF800000> : vector<5xf32>
    %100 = vector.multi_reduction <maximumf>, %99, %cst_54 [1] : vector<5x5xf32> to vector<5xf32>
    %101 = vector.shape_cast %100 : vector<5xf32> to vector<5x1xf32>
    %102 = vector.broadcast %101 : vector<5x1xf32> to vector<5x5xf32>
    %103 = arith.subf %99, %102 : vector<5x5xf32>
    %104 = math.exp %103 : vector<5x5xf32>
    %cst_55 = arith.constant dense<0.000000e+00> : vector<5xf32>
    %105 = vector.multi_reduction <add>, %104, %cst_55 [1] : vector<5x5xf32> to vector<5xf32>
    %106 = vector.shape_cast %105 : vector<5xf32> to vector<5x1xf32>
    %107 = tpu.reciprocal %106 {approx = true} : vector<5x1xf32> -> vector<5x1xf32>
    %108 = vector.broadcast %107 : vector<5x1xf32> to vector<5x5xf32>
    %109 = arith.mulf %104, %108 : vector<5x5xf32>
    %110 = arith.truncf %109 : vector<5x5xf32> to vector<5x5xbf16>
    %cst_56 = arith.constant dense<0.000000e+00> : vector<5x8xf32>
    %111 = tpu.matmul %110, %98, %cst_56 {dimension_numbers = #tpu.dot_dimension_numbers<[1], [0], [0], [1], [0, 0, 1, 1], [], []>} : vector<5x5xbf16>, vector<5x8xbf16>, vector<5x8xf32> -> vector<5x8xf32>
    %c0_57 = arith.constant 0 : index
    %c16_58 = arith.constant 16 : index
    %112 = vector.load %arg20[%c0_57, %c16_58] : memref<5x32xf32, #tpu.memory_space<vmem>>, vector<5x8xf32>
    tpu.vector_store %arg20[%c0_57, %c16_58], %111 {strides = array<i32>} : memref<5x32xf32, #tpu.memory_space<vmem>>, vector<5x8xf32>,
    %c0_59 = arith.constant 0 : index
    %c24 = arith.constant 24 : index
    %113 = vector.load %arg19[%c0_59, %c24] : memref<5x96xbf16, #tpu.memory_space<vmem>>, vector<5x8xbf16>
    %c0_60 = arith.constant 0 : index
    %c56 = arith.constant 56 : index
    %114 = vector.load %arg19[%c0_60, %c56] : memref<5x96xbf16, #tpu.memory_space<vmem>>, vector<5x8xbf16>
    %c0_61 = arith.constant 0 : index
    %c88 = arith.constant 88 : index
    %115 = vector.load %arg19[%c0_61, %c88] : memref<5x96xbf16, #tpu.memory_space<vmem>>, vector<5x8xbf16>
    "tpu.trace_start"() <{level = 10 : i32, message = "qd,kd->qk"}> : () -> ()
    %cst_62 = arith.constant dense<0.000000e+00> : vector<5x5xf32>
    %116 = tpu.matmul %113, %114, %cst_62 {dimension_numbers = #tpu.dot_dimension_numbers<[1], [1], [0], [0], [0, 0, 1, 0], [], []>} : vector<5x8xbf16>, vector<5x8xbf16>, vector<5x5xf32> -> vector<5x5xf32>
    "tpu.trace_stop"() : () -> ()
    %cst_63 = arith.constant dense<0xFF800000> : vector<5xf32>
    %117 = vector.multi_reduction <maximumf>, %116, %cst_63 [1] : vector<5x5xf32> to vector<5xf32>
    %118 = vector.shape_cast %117 : vector<5xf32> to vector<5x1xf32>
    %119 = vector.broadcast %118 : vector<5x1xf32> to vector<5x5xf32>
    %120 = arith.subf %116, %119 : vector<5x5xf32>
    %121 = math.exp %120 : vector<5x5xf32>
    %cst_64 = arith.constant dense<0.000000e+00> : vector<5xf32>
    %122 = vector.multi_reduction <add>, %121, %cst_64 [1] : vector<5x5xf32> to vector<5xf32>
    %123 = vector.shape_cast %122 : vector<5xf32> to vector<5x1xf32>
    %124 = tpu.reciprocal %123 {approx = true} : vector<5x1xf32> -> vector<5x1xf32>
    %125 = vector.broadcast %124 : vector<5x1xf32> to vector<5x5xf32>
    %126 = arith.mulf %121, %125 : vector<5x5xf32>
    %127 = arith.truncf %126 : vector<5x5xf32> to vector<5x5xbf16>
    %cst_65 = arith.constant dense<0.000000e+00> : vector<5x8xf32>
    %128 = tpu.matmul %127, %115, %cst_65 {dimension_numbers = #tpu.dot_dimension_numbers<[1], [0], [0], [1], [0, 0, 1, 1], [], []>} : vector<5x5xbf16>, vector<5x8xbf16>, vector<5x8xf32> -> vector<5x8xf32>
    %c0_66 = arith.constant 0 : index
    %c24_67 = arith.constant 24 : index
    %129 = vector.load %arg20[%c0_66, %c24_67] : memref<5x32xf32, #tpu.memory_space<vmem>>, vector<5x8xf32>
    tpu.vector_store %arg20[%c0_66, %c24_67], %128 {strides = array<i32>} : memref<5x32xf32, #tpu.memory_space<vmem>>, vector<5x8xf32>,
    %c0_68 = arith.constant 0 : index
    %c0_69 = arith.constant 0 : index
    %130 = vector.load %arg20[%c0_68, %c0_69] : memref<5x32xf32, #tpu.memory_space<vmem>>, vector<5x32xf32>
    %c0_70 = arith.constant 0 : index
    %c0_71 = arith.constant 0 : index
    %131 = vector.load %arg10[%c0_70, %c0_71] : memref<32x32xbf16, #tpu.memory_space<vmem>>, vector<32x32xbf16>
    %132 = arith.truncf %130 : vector<5x32xf32> to vector<5x32xbf16>
    %cst_72 = arith.constant dense<0.000000e+00> : vector<5x32xf32>
    %133 = tpu.matmul %132, %131, %cst_72 {dimension_numbers = #tpu.dot_dimension_numbers<[1], [0], [0], [1], [0, 0, 1, 1], [], []>} : vector<5x32xbf16>, vector<32x32xbf16>, vector<5x32xf32> -> vector<5x32xf32>
    %134 = arith.addf %29, %133 : vector<5x32xf32>
    %c0_73 = arith.constant 0 : index
    %c0_74 = arith.constant 0 : index
    %135 = vector.load %arg11[%c0_73, %c0_74] : memref<1x32xf32, #tpu.memory_space<vmem>>, vector<1x32xf32>
    %136 = vector.broadcast %135 : vector<1x32xf32> to vector<5x32xf32>
    %137 = arith.addf %134, %136 : vector<5x32xf32>
    %c0_75 = arith.constant 0 : index
    %c0_76 = arith.constant 0 : index
    %138 = vector.load %arg12[%c0_75, %c0_76] : memref<1x32xf32, #tpu.memory_space<vmem>>, vector<1x32xf32>
    %c0_77 = arith.constant 0 : index
    %c0_78 = arith.constant 0 : index
    %139 = vector.load %arg13[%c0_77, %c0_78] : memref<1x32xf32, #tpu.memory_space<vmem>>, vector<1x32xf32>
    %cst_79 = arith.constant dense<0.000000e+00> : vector<5xf32>
    %140 = vector.multi_reduction <add>, %137, %cst_79 [1] : vector<5x32xf32> to vector<5xf32>
    %141 = vector.shape_cast %140 : vector<5xf32> to vector<5x1xf32>
    %cst_80 = arith.constant 3.200000e+01 : f32
    %142 = vector.broadcast %cst_80 : f32 to vector<5x1xf32>
    %143 = arith.divf %141, %142 : vector<5x1xf32>
    %144 = arith.mulf %137, %137 : vector<5x32xf32>
    %cst_81 = arith.constant dense<0.000000e+00> : vector<5xf32>
    %145 = vector.multi_reduction <add>, %144, %cst_81 [1] : vector<5x32xf32> to vector<5xf32>
    %146 = vector.shape_cast %145 : vector<5xf32> to vector<5x1xf32>
    %cst_82 = arith.constant 3.200000e+01 : f32
    %147 = vector.broadcast %cst_82 : f32 to vector<5x1xf32>
    %148 = arith.divf %146, %147 : vector<5x1xf32>
    %149 = arith.mulf %143, %143 : vector<5x1xf32>
    %150 = arith.subf %148, %149 : vector<5x1xf32>
    %151 = vector.broadcast %143 : vector<5x1xf32> to vector<5x32xf32>
    %152 = arith.subf %137, %151 : vector<5x32xf32>
    %cst_83 = arith.constant 9.99999974E-6 : f32
    %153 = vector.broadcast %cst_83 : f32 to vector<5x1xf32>
    %154 = arith.addf %150, %153 : vector<5x1xf32>
    %155 = math.rsqrt %154 : vector<5x1xf32>
    %156 = vector.broadcast %155 : vector<5x1xf32> to vector<5x32xf32>
    %157 = arith.mulf %152, %156 : vector<5x32xf32>
    %158 = vector.broadcast %138 : vector<1x32xf32> to vector<5x32xf32>
    %159 = arith.mulf %157, %158 : vector<5x32xf32>
    %160 = vector.broadcast %139 : vector<1x32xf32> to vector<5x32xf32>
    %161 = arith.addf %159, %160 : vector<5x32xf32>
    %c0_84 = arith.constant 0 : index
    %c0_85 = arith.constant 0 : index
    %162 = vector.load %arg14[%c0_84, %c0_85] : memref<32x128xbf16, #tpu.memory_space<vmem>>, vector<32x128xbf16>
    %163 = arith.truncf %161 : vector<5x32xf32> to vector<5x32xbf16>
    %cst_86 = arith.constant dense<0.000000e+00> : vector<5x128xf32>
    %164 = tpu.matmul %163, %162, %cst_86 {dimension_numbers = #tpu.dot_dimension_numbers<[1], [0], [0], [1], [0, 0, 1, 1], [], []>} : vector<5x32xbf16>, vector<32x128xbf16>, vector<5x128xf32> -> vector<5x128xf32>
    %c0_87 = arith.constant 0 : index
    %c0_88 = arith.constant 0 : index
    %165 = vector.load %arg15[%c0_87, %c0_88] : memref<1x128xf32, #tpu.memory_space<vmem>>, vector<1x128xf32>
    %166 = vector.broadcast %165 : vector<1x128xf32> to vector<5x128xf32>
    %167 = arith.addf %164, %166 : vector<5x128xf32>
    %cst_89 = arith.constant 5.000000e-01 : f32
    %168 = vector.broadcast %cst_89 : f32 to vector<5x128xf32>
    %169 = arith.mulf %168, %167 : vector<5x128xf32>
    %cst_90 = arith.constant 4.471500e-02 : f32
    %170 = vector.broadcast %cst_90 : f32 to vector<5x128xf32>
    %171 = arith.mulf %170, %167 : vector<5x128xf32>
    %172 = arith.mulf %171, %167 : vector<5x128xf32>
    %173 = arith.mulf %172, %167 : vector<5x128xf32>
    %174 = arith.addf %167, %173 : vector<5x128xf32>
    %cst_91 = arith.constant 0.797884583 : f32
    %175 = vector.broadcast %cst_91 : f32 to vector<5x128xf32>
    %176 = arith.mulf %175, %174 : vector<5x128xf32>
    %177 = math.tanh %176 : vector<5x128xf32>
    %cst_92 = arith.constant 1.000000e+00 : f32
    %178 = vector.broadcast %cst_92 : f32 to vector<5x128xf32>
    %179 = arith.addf %178, %177 : vector<5x128xf32>
    %180 = arith.mulf %169, %179 : vector<5x128xf32>
    %c0_93 = arith.constant 0 : index
    %c0_94 = arith.constant 0 : index
    %181 = vector.load %arg16[%c0_93, %c0_94] : memref<128x32xbf16, #tpu.memory_space<vmem>>, vector<128x32xbf16>
    %182 = arith.truncf %180 : vector<5x128xf32> to vector<5x128xbf16>
    %cst_95 = arith.constant dense<0.000000e+00> : vector<5x32xf32>
    %183 = tpu.matmul %182, %181, %cst_95 {dimension_numbers = #tpu.dot_dimension_numbers<[1], [0], [0], [1], [0, 0, 1, 1], [], []>} : vector<5x128xbf16>, vector<128x32xbf16>, vector<5x32xf32> -> vector<5x32xf32>
    %184 = arith.addf %137, %183 : vector<5x32xf32>
    %c0_96 = arith.constant 0 : index
    %c0_97 = arith.constant 0 : index
    %185 = vector.load %arg17[%c0_96, %c0_97] : memref<1x32xf32, #tpu.memory_space<vmem>>, vector<1x32xf32>
    %186 = vector.broadcast %185 : vector<1x32xf32> to vector<5x32xf32>
    %187 = arith.addf %184, %186 : vector<5x32xf32>
    %c0_98 = arith.constant 0 : index
    %c0_99 = arith.constant 0 : index
    %c0_100 = arith.constant 0 : index
    %188 = vector.load %arg18[%c0_98, %c0_99, %c0_100] : memref<1x5x32xf32, #tpu.memory_space<vmem>>, vector<1x5x32xf32>
    %189 = vector.shape_cast %188 : vector<1x5x32xf32> to vector<5x32xf32>
    %190 = vector.shape_cast %187 : vector<5x32xf32> to vector<1x5x32xf32>
    tpu.vector_store %arg18[%c0_98, %c0_99, %c0_100], %190 {strides = array<i32>} : memref<1x5x32xf32, #tpu.memory_space<vmem>>, vector<1x5x32xf32>,
    return
  }
  func.func @transform_0(%arg0: i32) -> (i32, i32, i32) {
    %c0_i32 = arith.constant 0 : i32
    %c0_i32_0 = arith.constant 0 : i32
    %c0_i32_1 = arith.constant 0 : i32
    return %arg0, %c0_i32, %c0_i32_0 : i32, i32, i32
  }
  func.func @transform_1(%arg0: i32) -> (i32, i32) {
    %c0_i32 = arith.constant 0 : i32
    %c0_i32_0 = arith.constant 0 : i32
    %c0_i32_1 = arith.constant 0 : i32
    return %c0_i32, %c0_i32_0 : i32, i32
  }
  func.func @transform_2(%arg0: i32) -> (i32, i32) {
    %c0_i32 = arith.constant 0 : i32
    %c0_i32_0 = arith.constant 0 : i32
    %c0_i32_1 = arith.constant 0 : i32
    return %c0_i32, %c0_i32_0 : i32, i32
  }
  func.func @transform_3(%arg0: i32) -> (i32, i32) {
    %c0_i32 = arith.constant 0 : i32
    %c0_i32_0 = arith.constant 0 : i32
    %c0_i32_1 = arith.constant 0 : i32
    return %c0_i32, %c0_i32_0 : i32, i32
  }
  func.func @transform_4(%arg0: i32) -> (i32, i32) {
    %c0_i32 = arith.constant 0 : i32
    %c0_i32_0 = arith.constant 0 : i32
    %c0_i32_1 = arith.constant 0 : i32
    return %c0_i32, %c0_i32_0 : i32, i32
  }
  func.func @transform_5(%arg0: i32) -> (i32, i32) {
    %c0_i32 = arith.constant 0 : i32
    %c0_i32_0 = arith.constant 0 : i32
    %c0_i32_1 = arith.constant 0 : i32
    return %c0_i32, %c0_i32_0 : i32, i32
  }
  func.func @transform_6(%arg0: i32) -> (i32, i32) {
    %c0_i32 = arith.constant 0 : i32
    %c0_i32_0 = arith.constant 0 : i32
    %c0_i32_1 = arith.constant 0 : i32
    return %c0_i32, %c0_i32_0 : i32, i32
  }
  func.func @transform_7(%arg0: i32) -> (i32, i32) {
    %c0_i32 = arith.constant 0 : i32
    %c0_i32_0 = arith.constant 0 : i32
    %c0_i32_1 = arith.constant 0 : i32
    return %c0_i32, %c0_i32_0 : i32, i32
  }
  func.func @transform_8(%arg0: i32) -> (i32, i32) {
    %c0_i32 = arith.constant 0 : i32
    %c0_i32_0 = arith.constant 0 : i32
    %c0_i32_1 = arith.constant 0 : i32
    return %c0_i32, %c0_i32_0 : i32, i32
  }
  func.func @transform_9(%arg0: i32) -> (i32, i32) {
    %c0_i32 = arith.constant 0 : i32
    %c0_i32_0 = arith.constant 0 : i32
    %c0_i32_1 = arith.constant 0 : i32
    return %c0_i32, %c0_i32_0 : i32, i32
  }
  func.func @transform_10(%arg0: i32) -> (i32, i32) {
    %c0_i32 = arith.constant 0 : i32
    %c0_i32_0 = arith.constant 0 : i32
    %c0_i32_1 = arith.constant 0 : i32
    return %c0_i32, %c0_i32_0 : i32, i32
  }
  func.func @transform_11(%arg0: i32) -> (i32, i32) {
    %c0_i32 = arith.constant 0 : i32
    %c0_i32_0 = arith.constant 0 : i32
    %c0_i32_1 = arith.constant 0 : i32
    return %c0_i32, %c0_i32_0 : i32, i32
  }
  func.func @transform_12(%arg0: i32) -> (i32, i32) {
    %c0_i32 = arith.constant 0 : i32
    %c0_i32_0 = arith.constant 0 : i32
    %c0_i32_1 = arith.constant 0 : i32
    return %c0_i32, %c0_i32_0 : i32, i32
  }
  func.func @transform_13(%arg0: i32) -> (i32, i32) {
    %c0_i32 = arith.constant 0 : i32
    %c0_i32_0 = arith.constant 0 : i32
    %c0_i32_1 = arith.constant 0 : i32
    return %c0_i32, %c0_i32_0 : i32, i32
  }
  func.func @transform_14(%arg0: i32) -> (i32, i32) {
    %c0_i32 = arith.constant 0 : i32
    %c0_i32_0 = arith.constant 0 : i32
    %c0_i32_1 = arith.constant 0 : i32
    return %c0_i32, %c0_i32_0 : i32, i32
  }
  func.func @transform_15(%arg0: i32) -> (i32, i32) {
    %c0_i32 = arith.constant 0 : i32
    %c0_i32_0 = arith.constant 0 : i32
    %c0_i32_1 = arith.constant 0 : i32
    return %c0_i32, %c0_i32_0 : i32, i32
  }
  func.func @transform_16(%arg0: i32) -> (i32, i32) {
    %c0_i32 = arith.constant 0 : i32
    %c0_i32_0 = arith.constant 0 : i32
    %c0_i32_1 = arith.constant 0 : i32
    return %c0_i32, %c0_i32_0 : i32, i32
  }
  func.func @transform_17(%arg0: i32) -> (i32, i32, i32) {
    %c0_i32 = arith.constant 0 : i32
    %c0_i32_0 = arith.constant 0 : i32
    %c0_i32_1 = arith.constant 0 : i32
    return %arg0, %c0_i32, %c0_i32_0 : i32, i32, i32
  }
}

module attributes {stable_mosaic.version = 11 : i64} {
  func.func @_lm_head_kernel(%arg0: i32, %arg1: memref<16x32xf32, #tpu.memory_space<vmem>>, %arg2: memref<32x128xbf16, #tpu.memory_space<vmem>>, %arg3: memref<16x128xf32, #tpu.memory_space<vmem>>) attributes {dimension_semantics = [#tpu.dimension_semantics<parallel>], iteration_bounds = array<i64: 1>, scalar_prefetch = 0 : i64, scratch_operands = 0 : i64, tpu.core_type = #tpu.core_type<tc>, window_params = [{pipeline_mode = #tpu.pipeline_mode<synchronous>, transform_indices = @transform_0, window_bounds = array<i64: 16, 32>}, {transform_indices = @transform_1, window_bounds = array<i64: 32, 128>}, {transform_indices = @transform_2, window_bounds = array<i64: 16, 128>}]} {
    %c0 = arith.constant 0 : index
    %c0_0 = arith.constant 0 : index
    %0 = vector.load %arg1[%c0, %c0_0] : memref<16x32xf32, #tpu.memory_space<vmem>>, vector<16x32xf32>
    %1 = arith.truncf %0 : vector<16x32xf32> to vector<16x32xbf16>
    %c0_1 = arith.constant 0 : index
    %c0_2 = arith.constant 0 : index
    %2 = vector.load %arg2[%c0_1, %c0_2] : memref<32x128xbf16, #tpu.memory_space<vmem>>, vector<32x128xbf16>
    %cst = arith.constant dense<0.000000e+00> : vector<16x128xf32>
    %3 = tpu.matmul %1, %2, %cst {dimension_numbers = #tpu.dot_dimension_numbers<[1], [0], [0], [1], [0, 0, 1, 1], [], []>} : vector<16x32xbf16>, vector<32x128xbf16>, vector<16x128xf32> -> vector<16x128xf32>
    %c0_3 = arith.constant 0 : index
    %c0_4 = arith.constant 0 : index
    %4 = vector.load %arg3[%c0_3, %c0_4] : memref<16x128xf32, #tpu.memory_space<vmem>>, vector<16x128xf32>
    tpu.vector_store %arg3[%c0_3, %c0_4], %3 {strides = array<i32>} : memref<16x128xf32, #tpu.memory_space<vmem>>, vector<16x128xf32>,
    return
  }
  func.func @transform_0(%arg0: i32) -> (i32, i32) {
    %c0_i32 = arith.constant 0 : i32
    %c0_i32_0 = arith.constant 0 : i32
    %c0_i32_1 = arith.constant 0 : i32
    return %c0_i32, %c0_i32_0 : i32, i32
  }
  func.func @transform_1(%arg0: i32) -> (i32, i32) {
    %c0_i32 = arith.constant 0 : i32
    %c0_i32_0 = arith.constant 0 : i32
    return %c0_i32, %arg0 : i32, i32
  }
  func.func @transform_2(%arg0: i32) -> (i32, i32) {
    %c0_i32 = arith.constant 0 : i32
    %c0_i32_0 = arith.constant 0 : i32
    return %c0_i32, %arg0 : i32, i32
  }
}

module attributes {stable_mosaic.version = 11 : i64} {
  func.func @_cross_stack_kernel(%arg0: i32, %arg1: memref<1x8x32xf32, #tpu.memory_space<vmem>>, %arg2: memref<1x5x32xf32, #tpu.memory_space<vmem>>, %arg3: memref<2x1x32xf32, #tpu.memory_space<vmem>>, %arg4: memref<2x1x32xf32, #tpu.memory_space<vmem>>, %arg5: memref<2x32x32xbf16, #tpu.memory_space<vmem>>, %arg6: memref<2x1x32xf32, #tpu.memory_space<vmem>>, %arg7: memref<2x32x64xbf16, #tpu.memory_space<vmem>>, %arg8: memref<2x1x64xf32, #tpu.memory_space<vmem>>, %arg9: memref<2x32x32xbf16, #tpu.memory_space<vmem>>, %arg10: memref<2x1x32xf32, #tpu.memory_space<vmem>>, %arg11: memref<2x32x128xbf16, #tpu.memory_space<vmem>>, %arg12: memref<2x1x128xf32, #tpu.memory_space<vmem>>, %arg13: memref<2x128x32xbf16, #tpu.memory_space<vmem>>, %arg14: memref<2x1x32xf32, #tpu.memory_space<vmem>>, %arg15: memref<1x8x32xf32, #tpu.memory_space<vmem>>, %arg16: memref<8x32xbf16, #tpu.memory_space<vmem>>, %arg17: memref<5x64xbf16, #tpu.memory_space<vmem>>, %arg18: memref<8x32xf32, #tpu.memory_space<vmem>>) attributes {dimension_semantics = [#tpu.dimension_semantics<arbitrary>], iteration_bounds = array<i64: 2>, scalar_prefetch = 0 : i64, scratch_operands = 3 : i64, tpu.core_type = #tpu.core_type<tc>, window_params = [{transform_indices = @transform_0, window_bounds = array<i64: 1, 8, 32>}, {transform_indices = @transform_1, window_bounds = array<i64: 1, 5, 32>}, {pipeline_mode = #tpu.pipeline_mode<synchronous>, transform_indices = @transform_2, window_bounds = array<i64: 2, 1, 32>}, {pipeline_mode = #tpu.pipeline_mode<synchronous>, transform_indices = @transform_3, window_bounds = array<i64: 2, 1, 32>}, {pipeline_mode = #tpu.pipeline_mode<synchronous>, transform_indices = @transform_4, window_bounds = array<i64: 2, 32, 32>}, {pipeline_mode = #tpu.pipeline_mode<synchronous>, transform_indices = @transform_5, window_bounds = array<i64: 2, 1, 32>}, {pipeline_mode = #tpu.pipeline_mode<synchronous>, transform_indices = @transform_6, window_bounds = array<i64: 2, 32, 64>}, {pipeline_mode = #tpu.pipeline_mode<synchronous>, transform_indices = @transform_7, window_bounds = array<i64: 2, 1, 64>}, {pipeline_mode = #tpu.pipeline_mode<synchronous>, transform_indices = @transform_8, window_bounds = array<i64: 2, 32, 32>}, {pipeline_mode = #tpu.pipeline_mode<synchronous>, transform_indices = @transform_9, window_bounds = array<i64: 2, 1, 32>}, {pipeline_mode = #tpu.pipeline_mode<synchronous>, transform_indices = @transform_10, window_bounds = array<i64: 2, 32, 128>}, {pipeline_mode = #tpu.pipeline_mode<synchronous>, transform_indices = @transform_11, window_bounds = array<i64: 2, 1, 128>}, {pipeline_mode = #tpu.pipeline_mode<synchronous>, transform_indices = @transform_12, window_bounds = array<i64: 2, 128, 32>}, {pipeline_mode = #tpu.pipeline_mode<synchronous>, transform_indices = @transform_13, window_bounds = array<i64: 2, 1, 32>}, {transform_indices = @transform_14, window_bounds = array<i64: 1, 8, 32>}]} {
    %c0 = arith.constant 0 : index
    %c0_0 = arith.constant 0 : index
    %c0_1 = arith.constant 0 : index
    %0 = vector.load %arg1[%c0, %c0_0, %c0_1] : memref<1x8x32xf32, #tpu.memory_space<vmem>>, vector<1x8x32xf32>
    %1 = vector.shape_cast %0 : vector<1x8x32xf32> to vector<8x32xf32>
    %c0_2 = arith.constant 0 : index
    %c0_3 = arith.constant 0 : index
    %c0_4 = arith.constant 0 : index
    %2 = vector.load %arg2[%c0_2, %c0_3, %c0_4] : memref<1x5x32xf32, #tpu.memory_space<vmem>>, vector<1x5x32xf32>
    %3 = vector.shape_cast %2 : vector<1x5x32xf32> to vector<5x32xf32>
    %c0_5 = arith.constant 0 : index
    %c0_6 = arith.constant 0 : index
    %c0_7 = arith.constant 0 : index
    %4 = vector.load %arg3[%c0_5, %c0_6, %c0_7] : memref<2x1x32xf32, #tpu.memory_space<vmem>>, vector<1x1x32xf32>
    %5 = vector.shape_cast %4 : vector<1x1x32xf32> to vector<1x32xf32>
    %c0_8 = arith.constant 0 : index
    %c0_9 = arith.constant 0 : index
    %c0_10 = arith.constant 0 : index
    %6 = vector.load %arg4[%c0_8, %c0_9, %c0_10] : memref<2x1x32xf32, #tpu.memory_space<vmem>>, vector<1x1x32xf32>
    %7 = vector.shape_cast %6 : vector<1x1x32xf32> to vector<1x32xf32>
    %cst = arith.constant dense<0.000000e+00> : vector<8xf32>
    %8 = vector.multi_reduction <add>, %1, %cst [1] : vector<8x32xf32> to vector<8xf32>
    %9 = vector.shape_cast %8 : vector<8xf32> to vector<8x1xf32>
    %cst_11 = arith.constant 3.200000e+01 : f32
    %10 = vector.broadcast %cst_11 : f32 to vector<8x1xf32>
    %11 = arith.divf %9, %10 : vector<8x1xf32>
    %12 = arith.mulf %1, %1 : vector<8x32xf32>
    %cst_12 = arith.constant dense<0.000000e+00> : vector<8xf32>
    %13 = vector.multi_reduction <add>, %12, %cst_12 [1] : vector<8x32xf32> to vector<8xf32>
    %14 = vector.shape_cast %13 : vector<8xf32> to vector<8x1xf32>
    %cst_13 = arith.constant 3.200000e+01 : f32
    %15 = vector.broadcast %cst_13 : f32 to vector<8x1xf32>
    %16 = arith.divf %14, %15 : vector<8x1xf32>
    %17 = arith.mulf %11, %11 : vector<8x1xf32>
    %18 = arith.subf %16, %17 : vector<8x1xf32>
    %19 = vector.broadcast %11 : vector<8x1xf32> to vector<8x32xf32>
    %20 = arith.subf %1, %19 : vector<8x32xf32>
    %cst_14 = arith.constant 9.99999974E-6 : f32
    %21 = vector.broadcast %cst_14 : f32 to vector<8x1xf32>
    %22 = arith.addf %18, %21 : vector<8x1xf32>
    %23 = math.rsqrt %22 : vector<8x1xf32>
    %24 = vector.broadcast %23 : vector<8x1xf32> to vector<8x32xf32>
    %25 = arith.mulf %20, %24 : vector<8x32xf32>
    %26 = vector.broadcast %5 : vector<1x32xf32> to vector<8x32xf32>
    %27 = arith.mulf %25, %26 : vector<8x32xf32>
    %28 = vector.broadcast %7 : vector<1x32xf32> to vector<8x32xf32>
    %29 = arith.addf %27, %28 : vector<8x32xf32>
    %c0_15 = arith.constant 0 : index
    %c0_16 = arith.constant 0 : index
    %c0_17 = arith.constant 0 : index
    %30 = vector.load %arg3[%c0_15, %c0_16, %c0_17] : memref<2x1x32xf32, #tpu.memory_space<vmem>>, vector<1x1x32xf32>
    %31 = vector.shape_cast %30 : vector<1x1x32xf32> to vector<1x32xf32>
    %c0_18 = arith.constant 0 : index
    %c0_19 = arith.constant 0 : index
    %c0_20 = arith.constant 0 : index
    %32 = vector.load %arg4[%c0_18, %c0_19, %c0_20] : memref<2x1x32xf32, #tpu.memory_space<vmem>>, vector<1x1x32xf32>
    %33 = vector.shape_cast %32 : vector<1x1x32xf32> to vector<1x32xf32>
    %cst_21 = arith.constant dense<0.000000e+00> : vector<5xf32>
    %34 = vector.multi_reduction <add>, %3, %cst_21 [1] : vector<5x32xf32> to vector<5xf32>
    %35 = vector.shape_cast %34 : vector<5xf32> to vector<5x1xf32>
    %cst_22 = arith.constant 3.200000e+01 : f32
    %36 = vector.broadcast %cst_22 : f32 to vector<5x1xf32>
    %37 = arith.divf %35, %36 : vector<5x1xf32>
    %38 = arith.mulf %3, %3 : vector<5x32xf32>
    %cst_23 = arith.constant dense<0.000000e+00> : vector<5xf32>
    %39 = vector.multi_reduction <add>, %38, %cst_23 [1] : vector<5x32xf32> to vector<5xf32>
    %40 = vector.shape_cast %39 : vector<5xf32> to vector<5x1xf32>
    %cst_24 = arith.constant 3.200000e+01 : f32
    %41 = vector.broadcast %cst_24 : f32 to vector<5x1xf32>
    %42 = arith.divf %40, %41 : vector<5x1xf32>
    %43 = arith.mulf %37, %37 : vector<5x1xf32>
    %44 = arith.subf %42, %43 : vector<5x1xf32>
    %45 = vector.broadcast %37 : vector<5x1xf32> to vector<5x32xf32>
    %46 = arith.subf %3, %45 : vector<5x32xf32>
    %cst_25 = arith.constant 9.99999974E-6 : f32
    %47 = vector.broadcast %cst_25 : f32 to vector<5x1xf32>
    %48 = arith.addf %44, %47 : vector<5x1xf32>
    %49 = math.rsqrt %48 : vector<5x1xf32>
    %50 = vector.broadcast %49 : vector<5x1xf32> to vector<5x32xf32>
    %51 = arith.mulf %46, %50 : vector<5x32xf32>
    %52 = vector.broadcast %31 : vector<1x32xf32> to vector<5x32xf32>
    %53 = arith.mulf %51, %52 : vector<5x32xf32>
    %54 = vector.broadcast %33 : vector<1x32xf32> to vector<5x32xf32>
    %55 = arith.addf %53, %54 : vector<5x32xf32>
    %c0_26 = arith.constant 0 : index
    %c0_27 = arith.constant 0 : index
    %c0_28 = arith.constant 0 : index
    %56 = vector.load %arg5[%c0_26, %c0_27, %c0_28] : memref<2x32x32xbf16, #tpu.memory_space<vmem>>, vector<1x32x32xbf16>
    %57 = vector.shape_cast %56 : vector<1x32x32xbf16> to vector<32x32xbf16>
    %58 = arith.truncf %29 : vector<8x32xf32> to vector<8x32xbf16>
    %cst_29 = arith.constant dense<0.000000e+00> : vector<8x32xf32>
    %59 = tpu.matmul %58, %57, %cst_29 {dimension_numbers = #tpu.dot_dimension_numbers<[1], [0], [0], [1], [0, 0, 1, 1], [], []>} : vector<8x32xbf16>, vector<32x32xbf16>, vector<8x32xf32> -> vector<8x32xf32>
    %c0_30 = arith.constant 0 : index
    %c0_31 = arith.constant 0 : index
    %c0_32 = arith.constant 0 : index
    %60 = vector.load %arg6[%c0_30, %c0_31, %c0_32] : memref<2x1x32xf32, #tpu.memory_space<vmem>>, vector<1x1x32xf32>
    %61 = vector.shape_cast %60 : vector<1x1x32xf32> to vector<1x32xf32>
    %62 = vector.broadcast %61 : vector<1x32xf32> to vector<8x32xf32>
    %63 = arith.addf %59, %62 : vector<8x32xf32>
    %64 = arith.truncf %63 : vector<8x32xf32> to vector<8x32xbf16>
    %c0_33 = arith.constant 0 : index
    %c0_34 = arith.constant 0 : index
    %65 = vector.load %arg16[%c0_33, %c0_34] : memref<8x32xbf16, #tpu.memory_space<vmem>>, vector<8x32xbf16>
    tpu.vector_store %arg16[%c0_33, %c0_34], %64 {strides = array<i32>} : memref<8x32xbf16, #tpu.memory_space<vmem>>, vector<8x32xbf16>,
    %c0_35 = arith.constant 0 : index
    %c0_36 = arith.constant 0 : index
    %c0_37 = arith.constant 0 : index
    %66 = vector.load %arg7[%c0_35, %c0_36, %c0_37] : memref<2x32x64xbf16, #tpu.memory_space<vmem>>, vector<1x32x64xbf16>
    %67 = vector.shape_cast %66 : vector<1x32x64xbf16> to vector<32x64xbf16>
    %68 = arith.truncf %55 : vector<5x32xf32> to vector<5x32xbf16>
    %cst_38 = arith.constant dense<0.000000e+00> : vector<5x64xf32>
    %69 = tpu.matmul %68, %67, %cst_38 {dimension_numbers = #tpu.dot_dimension_numbers<[1], [0], [0], [1], [0, 0, 1, 1], [], []>} : vector<5x32xbf16>, vector<32x64xbf16>, vector<5x64xf32> -> vector<5x64xf32>
    %c0_39 = arith.constant 0 : index
    %c0_40 = arith.constant 0 : index
    %c0_41 = arith.constant 0 : index
    %70 = vector.load %arg8[%c0_39, %c0_40, %c0_41] : memref<2x1x64xf32, #tpu.memory_space<vmem>>, vector<1x1x64xf32>
    %71 = vector.shape_cast %70 : vector<1x1x64xf32> to vector<1x64xf32>
    %72 = vector.broadcast %71 : vector<1x64xf32> to vector<5x64xf32>
    %73 = arith.addf %69, %72 : vector<5x64xf32>
    %74 = arith.truncf %73 : vector<5x64xf32> to vector<5x64xbf16>
    %c0_42 = arith.constant 0 : index
    %c0_43 = arith.constant 0 : index
    %75 = vector.load %arg17[%c0_42, %c0_43] : memref<5x64xbf16, #tpu.memory_space<vmem>>, vector<5x64xbf16>
    tpu.vector_store %arg17[%c0_42, %c0_43], %74 {strides = array<i32>} : memref<5x64xbf16, #tpu.memory_space<vmem>>, vector<5x64xbf16>,
    %c0_44 = arith.constant 0 : index
    %c0_45 = arith.constant 0 : index
    %76 = vector.load %arg16[%c0_44, %c0_45] : memref<8x32xbf16, #tpu.memory_space<vmem>>, vector<8x8xbf16>
    %c0_46 = arith.constant 0 : index
    %c0_47 = arith.constant 0 : index
    %77 = vector.load %arg17[%c0_46, %c0_47] : memref<5x64xbf16, #tpu.memory_space<vmem>>, vector<5x8xbf16>
    %c0_48 = arith.constant 0 : index
    %c32 = arith.constant 32 : index
    %78 = vector.load %arg17[%c0_48, %c32] : memref<5x64xbf16, #tpu.memory_space<vmem>>, vector<5x8xbf16>
    "tpu.trace_start"() <{level = 10 : i32, message = "qd,kd->qk"}> : () -> ()
    %cst_49 = arith.constant dense<0.000000e+00> : vector<8x5xf32>
    %79 = tpu.matmul %76, %77, %cst_49 {dimension_numbers = #tpu.dot_dimension_numbers<[1], [1], [0], [0], [0, 0, 1, 0], [], []>} : vector<8x8xbf16>, vector<5x8xbf16>, vector<8x5xf32> -> vector<8x5xf32>
    "tpu.trace_stop"() : () -> ()
    %cst_50 = arith.constant dense<0xFF800000> : vector<8xf32>
    %80 = vector.multi_reduction <maximumf>, %79, %cst_50 [1] : vector<8x5xf32> to vector<8xf32>
    %81 = vector.shape_cast %80 : vector<8xf32> to vector<8x1xf32>
    %82 = vector.broadcast %81 : vector<8x1xf32> to vector<8x5xf32>
    %83 = arith.subf %79, %82 : vector<8x5xf32>
    %84 = math.exp %83 : vector<8x5xf32>
    %cst_51 = arith.constant dense<0.000000e+00> : vector<8xf32>
    %85 = vector.multi_reduction <add>, %84, %cst_51 [1] : vector<8x5xf32> to vector<8xf32>
    %86 = vector.shape_cast %85 : vector<8xf32> to vector<8x1xf32>
    %87 = tpu.reciprocal %86 {approx = true} : vector<8x1xf32> -> vector<8x1xf32>
    %88 = vector.broadcast %87 : vector<8x1xf32> to vector<8x5xf32>
    %89 = arith.mulf %84, %88 : vector<8x5xf32>
    %90 = arith.truncf %89 : vector<8x5xf32> to vector<8x5xbf16>
    %cst_52 = arith.constant dense<0.000000e+00> : vector<8x8xf32>
    %91 = tpu.matmul %90, %78, %cst_52 {dimension_numbers = #tpu.dot_dimension_numbers<[1], [0], [0], [1], [0, 0, 1, 1], [], []>} : vector<8x5xbf16>, vector<5x8xbf16>, vector<8x8xf32> -> vector<8x8xf32>
    %c0_53 = arith.constant 0 : index
    %c0_54 = arith.constant 0 : index
    %92 = vector.load %arg18[%c0_53, %c0_54] : memref<8x32xf32, #tpu.memory_space<vmem>>, vector<8x8xf32>
    tpu.vector_store %arg18[%c0_53, %c0_54], %91 {strides = array<i32>} : memref<8x32xf32, #tpu.memory_space<vmem>>, vector<8x8xf32>,
    %c0_55 = arith.constant 0 : index
    %c8 = arith.constant 8 : index
    %93 = vector.load %arg16[%c0_55, %c8] : memref<8x32xbf16, #tpu.memory_space<vmem>>, vector<8x8xbf16>
    %c0_56 = arith.constant 0 : index
    %c8_57 = arith.constant 8 : index
    %94 = vector.load %arg17[%c0_56, %c8_57] : memref<5x64xbf16, #tpu.memory_space<vmem>>, vector<5x8xbf16>
    %c0_58 = arith.constant 0 : index
    %c40 = arith.constant 40 : index
    %95 = vector.load %arg17[%c0_58, %c40] : memref<5x64xbf16, #tpu.memory_space<vmem>>, vector<5x8xbf16>
    "tpu.trace_start"() <{level = 10 : i32, message = "qd,kd->qk"}> : () -> ()
    %cst_59 = arith.constant dense<0.000000e+00> : vector<8x5xf32>
    %96 = tpu.matmul %93, %94, %cst_59 {dimension_numbers = #tpu.dot_dimension_numbers<[1], [1], [0], [0], [0, 0, 1, 0], [], []>} : vector<8x8xbf16>, vector<5x8xbf16>, vector<8x5xf32> -> vector<8x5xf32>
    "tpu.trace_stop"() : () -> ()
    %cst_60 = arith.constant dense<0xFF800000> : vector<8xf32>
    %97 = vector.multi_reduction <maximumf>, %96, %cst_60 [1] : vector<8x5xf32> to vector<8xf32>
    %98 = vector.shape_cast %97 : vector<8xf32> to vector<8x1xf32>
    %99 = vector.broadcast %98 : vector<8x1xf32> to vector<8x5xf32>
    %100 = arith.subf %96, %99 : vector<8x5xf32>
    %101 = math.exp %100 : vector<8x5xf32>
    %cst_61 = arith.constant dense<0.000000e+00> : vector<8xf32>
    %102 = vector.multi_reduction <add>, %101, %cst_61 [1] : vector<8x5xf32> to vector<8xf32>
    %103 = vector.shape_cast %102 : vector<8xf32> to vector<8x1xf32>
    %104 = tpu.reciprocal %103 {approx = true} : vector<8x1xf32> -> vector<8x1xf32>
    %105 = vector.broadcast %104 : vector<8x1xf32> to vector<8x5xf32>
    %106 = arith.mulf %101, %105 : vector<8x5xf32>
    %107 = arith.truncf %106 : vector<8x5xf32> to vector<8x5xbf16>
    %cst_62 = arith.constant dense<0.000000e+00> : vector<8x8xf32>
    %108 = tpu.matmul %107, %95, %cst_62 {dimension_numbers = #tpu.dot_dimension_numbers<[1], [0], [0], [1], [0, 0, 1, 1], [], []>} : vector<8x5xbf16>, vector<5x8xbf16>, vector<8x8xf32> -> vector<8x8xf32>
    %c0_63 = arith.constant 0 : index
    %c8_64 = arith.constant 8 : index
    %109 = vector.load %arg18[%c0_63, %c8_64] : memref<8x32xf32, #tpu.memory_space<vmem>>, vector<8x8xf32>
    tpu.vector_store %arg18[%c0_63, %c8_64], %108 {strides = array<i32>} : memref<8x32xf32, #tpu.memory_space<vmem>>, vector<8x8xf32>,
    %c0_65 = arith.constant 0 : index
    %c16 = arith.constant 16 : index
    %110 = vector.load %arg16[%c0_65, %c16] : memref<8x32xbf16, #tpu.memory_space<vmem>>, vector<8x8xbf16>
    %c0_66 = arith.constant 0 : index
    %c16_67 = arith.constant 16 : index
    %111 = vector.load %arg17[%c0_66, %c16_67] : memref<5x64xbf16, #tpu.memory_space<vmem>>, vector<5x8xbf16>
    %c0_68 = arith.constant 0 : index
    %c48 = arith.constant 48 : index
    %112 = vector.load %arg17[%c0_68, %c48] : memref<5x64xbf16, #tpu.memory_space<vmem>>, vector<5x8xbf16>
    "tpu.trace_start"() <{level = 10 : i32, message = "qd,kd->qk"}> : () -> ()
    %cst_69 = arith.constant dense<0.000000e+00> : vector<8x5xf32>
    %113 = tpu.matmul %110, %111, %cst_69 {dimension_numbers = #tpu.dot_dimension_numbers<[1], [1], [0], [0], [0, 0, 1, 0], [], []>} : vector<8x8xbf16>, vector<5x8xbf16>, vector<8x5xf32> -> vector<8x5xf32>
    "tpu.trace_stop"() : () -> ()
    %cst_70 = arith.constant dense<0xFF800000> : vector<8xf32>
    %114 = vector.multi_reduction <maximumf>, %113, %cst_70 [1] : vector<8x5xf32> to vector<8xf32>
    %115 = vector.shape_cast %114 : vector<8xf32> to vector<8x1xf32>
    %116 = vector.broadcast %115 : vector<8x1xf32> to vector<8x5xf32>
    %117 = arith.subf %113, %116 : vector<8x5xf32>
    %118 = math.exp %117 : vector<8x5xf32>
    %cst_71 = arith.constant dense<0.000000e+00> : vector<8xf32>
    %119 = vector.multi_reduction <add>, %118, %cst_71 [1] : vector<8x5xf32> to vector<8xf32>
    %120 = vector.shape_cast %119 : vector<8xf32> to vector<8x1xf32>
    %121 = tpu.reciprocal %120 {approx = true} : vector<8x1xf32> -> vector<8x1xf32>
    %122 = vector.broadcast %121 : vector<8x1xf32> to vector<8x5xf32>
    %123 = arith.mulf %118, %122 : vector<8x5xf32>
    %124 = arith.truncf %123 : vector<8x5xf32> to vector<8x5xbf16>
    %cst_72 = arith.constant dense<0.000000e+00> : vector<8x8xf32>
    %125 = tpu.matmul %124, %112, %cst_72 {dimension_numbers = #tpu.dot_dimension_numbers<[1], [0], [0], [1], [0, 0, 1, 1], [], []>} : vector<8x5xbf16>, vector<5x8xbf16>, vector<8x8xf32> -> vector<8x8xf32>
    %c0_73 = arith.constant 0 : index
    %c16_74 = arith.constant 16 : index
    %126 = vector.load %arg18[%c0_73, %c16_74] : memref<8x32xf32, #tpu.memory_space<vmem>>, vector<8x8xf32>
    tpu.vector_store %arg18[%c0_73, %c16_74], %125 {strides = array<i32>} : memref<8x32xf32, #tpu.memory_space<vmem>>, vector<8x8xf32>,
    %c0_75 = arith.constant 0 : index
    %c24 = arith.constant 24 : index
    %127 = vector.load %arg16[%c0_75, %c24] : memref<8x32xbf16, #tpu.memory_space<vmem>>, vector<8x8xbf16>
    %c0_76 = arith.constant 0 : index
    %c24_77 = arith.constant 24 : index
    %128 = vector.load %arg17[%c0_76, %c24_77] : memref<5x64xbf16, #tpu.memory_space<vmem>>, vector<5x8xbf16>
    %c0_78 = arith.constant 0 : index
    %c56 = arith.constant 56 : index
    %129 = vector.load %arg17[%c0_78, %c56] : memref<5x64xbf16, #tpu.memory_space<vmem>>, vector<5x8xbf16>
    "tpu.trace_start"() <{level = 10 : i32, message = "qd,kd->qk"}> : () -> ()
    %cst_79 = arith.constant dense<0.000000e+00> : vector<8x5xf32>
    %130 = tpu.matmul %127, %128, %cst_79 {dimension_numbers = #tpu.dot_dimension_numbers<[1], [1], [0], [0], [0, 0, 1, 0], [], []>} : vector<8x8xbf16>, vector<5x8xbf16>, vector<8x5xf32> -> vector<8x5xf32>
    "tpu.trace_stop"() : () -> ()
    %cst_80 = arith.constant dense<0xFF800000> : vector<8xf32>
    %131 = vector.multi_reduction <maximumf>, %130, %cst_80 [1] : vector<8x5xf32> to vector<8xf32>
    %132 = vector.shape_cast %131 : vector<8xf32> to vector<8x1xf32>
    %133 = vector.broadcast %132 : vector<8x1xf32> to vector<8x5xf32>
    %134 = arith.subf %130, %133 : vector<8x5xf32>
    %135 = math.exp %134 : vector<8x5xf32>
    %cst_81 = arith.constant dense<0.000000e+00> : vector<8xf32>
    %136 = vector.multi_reduction <add>, %135, %cst_81 [1] : vector<8x5xf32> to vector<8xf32>
    %137 = vector.shape_cast %136 : vector<8xf32> to vector<8x1xf32>
    %138 = tpu.reciprocal %137 {approx = true} : vector<8x1xf32> -> vector<8x1xf32>
    %139 = vector.broadcast %138 : vector<8x1xf32> to vector<8x5xf32>
    %140 = arith.mulf %135, %139 : vector<8x5xf32>
    %141 = arith.truncf %140 : vector<8x5xf32> to vector<8x5xbf16>
    %cst_82 = arith.constant dense<0.000000e+00> : vector<8x8xf32>
    %142 = tpu.matmul %141, %129, %cst_82 {dimension_numbers = #tpu.dot_dimension_numbers<[1], [0], [0], [1], [0, 0, 1, 1], [], []>} : vector<8x5xbf16>, vector<5x8xbf16>, vector<8x8xf32> -> vector<8x8xf32>
    %c0_83 = arith.constant 0 : index
    %c24_84 = arith.constant 24 : index
    %143 = vector.load %arg18[%c0_83, %c24_84] : memref<8x32xf32, #tpu.memory_space<vmem>>, vector<8x8xf32>
    tpu.vector_store %arg18[%c0_83, %c24_84], %142 {strides = array<i32>} : memref<8x32xf32, #tpu.memory_space<vmem>>, vector<8x8xf32>,
    %c0_85 = arith.constant 0 : index
    %c0_86 = arith.constant 0 : index
    %144 = vector.load %arg18[%c0_85, %c0_86] : memref<8x32xf32, #tpu.memory_space<vmem>>, vector<8x32xf32>
    %c0_87 = arith.constant 0 : index
    %c0_88 = arith.constant 0 : index
    %c0_89 = arith.constant 0 : index
    %145 = vector.load %arg9[%c0_87, %c0_88, %c0_89] : memref<2x32x32xbf16, #tpu.memory_space<vmem>>, vector<1x32x32xbf16>
    %146 = vector.shape_cast %145 : vector<1x32x32xbf16> to vector<32x32xbf16>
    %147 = arith.truncf %144 : vector<8x32xf32> to vector<8x32xbf16>
    %cst_90 = arith.constant dense<0.000000e+00> : vector<8x32xf32>
    %148 = tpu.matmul %147, %146, %cst_90 {dimension_numbers = #tpu.dot_dimension_numbers<[1], [0], [0], [1], [0, 0, 1, 1], [], []>} : vector<8x32xbf16>, vector<32x32xbf16>, vector<8x32xf32> -> vector<8x32xf32>
    %149 = arith.addf %1, %148 : vector<8x32xf32>
    %c0_91 = arith.constant 0 : index
    %c0_92 = arith.constant 0 : index
    %c0_93 = arith.constant 0 : index
    %150 = vector.load %arg10[%c0_91, %c0_92, %c0_93] : memref<2x1x32xf32, #tpu.memory_space<vmem>>, vector<1x1x32xf32>
    %151 = vector.shape_cast %150 : vector<1x1x32xf32> to vector<1x32xf32>
    %152 = vector.broadcast %151 : vector<1x32xf32> to vector<8x32xf32>
    %153 = arith.addf %149, %152 : vector<8x32xf32>
    %c0_94 = arith.constant 0 : index
    %c0_95 = arith.constant 0 : index
    %c0_96 = arith.constant 0 : index
    %154 = vector.load %arg3[%c0_94, %c0_95, %c0_96] : memref<2x1x32xf32, #tpu.memory_space<vmem>>, vector<1x1x32xf32>
    %155 = vector.shape_cast %154 : vector<1x1x32xf32> to vector<1x32xf32>
    %c0_97 = arith.constant 0 : index
    %c0_98 = arith.constant 0 : index
    %c0_99 = arith.constant 0 : index
    %156 = vector.load %arg4[%c0_97, %c0_98, %c0_99] : memref<2x1x32xf32, #tpu.memory_space<vmem>>, vector<1x1x32xf32>
    %157 = vector.shape_cast %156 : vector<1x1x32xf32> to vector<1x32xf32>
    %cst_100 = arith.constant dense<0.000000e+00> : vector<8xf32>
    %158 = vector.multi_reduction <add>, %153, %cst_100 [1] : vector<8x32xf32> to vector<8xf32>
    %159 = vector.shape_cast %158 : vector<8xf32> to vector<8x1xf32>
    %cst_101 = arith.constant 3.200000e+01 : f32
    %160 = vector.broadcast %cst_101 : f32 to vector<8x1xf32>
    %161 = arith.divf %159, %160 : vector<8x1xf32>
    %162 = arith.mulf %153, %153 : vector<8x32xf32>
    %cst_102 = arith.constant dense<0.000000e+00> : vector<8xf32>
    %163 = vector.multi_reduction <add>, %162, %cst_102 [1] : vector<8x32xf32> to vector<8xf32>
    %164 = vector.shape_cast %163 : vector<8xf32> to vector<8x1xf32>
    %cst_103 = arith.constant 3.200000e+01 : f32
    %165 = vector.broadcast %cst_103 : f32 to vector<8x1xf32>
    %166 = arith.divf %164, %165 : vector<8x1xf32>
    %167 = arith.mulf %161, %161 : vector<8x1xf32>
    %168 = arith.subf %166, %167 : vector<8x1xf32>
    %169 = vector.broadcast %161 : vector<8x1xf32> to vector<8x32xf32>
    %170 = arith.subf %153, %169 : vector<8x32xf32>
    %cst_104 = arith.constant 9.99999974E-6 : f32
    %171 = vector.broadcast %cst_104 : f32 to vector<8x1xf32>
    %172 = arith.addf %168, %171 : vector<8x1xf32>
    %173 = math.rsqrt %172 : vector<8x1xf32>
    %174 = vector.broadcast %173 : vector<8x1xf32> to vector<8x32xf32>
    %175 = arith.mulf %170, %174 : vector<8x32xf32>
    %176 = vector.broadcast %155 : vector<1x32xf32> to vector<8x32xf32>
    %177 = arith.mulf %175, %176 : vector<8x32xf32>
    %178 = vector.broadcast %157 : vector<1x32xf32> to vector<8x32xf32>
    %179 = arith.addf %177, %178 : vector<8x32xf32>
    %c0_105 = arith.constant 0 : index
    %c0_106 = arith.constant 0 : index
    %c0_107 = arith.constant 0 : index
    %180 = vector.load %arg11[%c0_105, %c0_106, %c0_107] : memref<2x32x128xbf16, #tpu.memory_space<vmem>>, vector<1x32x128xbf16>
    %181 = vector.shape_cast %180 : vector<1x32x128xbf16> to vector<32x128xbf16>
    %182 = arith.truncf %179 : vector<8x32xf32> to vector<8x32xbf16>
    %cst_108 = arith.constant dense<0.000000e+00> : vector<8x128xf32>
    %183 = tpu.matmul %182, %181, %cst_108 {dimension_numbers = #tpu.dot_dimension_numbers<[1], [0], [0], [1], [0, 0, 1, 1], [], []>} : vector<8x32xbf16>, vector<32x128xbf16>, vector<8x128xf32> -> vector<8x128xf32>
    %c0_109 = arith.constant 0 : index
    %c0_110 = arith.constant 0 : index
    %c0_111 = arith.constant 0 : index
    %184 = vector.load %arg12[%c0_109, %c0_110, %c0_111] : memref<2x1x128xf32, #tpu.memory_space<vmem>>, vector<1x1x128xf32>
    %185 = vector.shape_cast %184 : vector<1x1x128xf32> to vector<1x128xf32>
    %186 = vector.broadcast %185 : vector<1x128xf32> to vector<8x128xf32>
    %187 = arith.addf %183, %186 : vector<8x128xf32>
    %cst_112 = arith.constant 5.000000e-01 : f32
    %188 = vector.broadcast %cst_112 : f32 to vector<8x128xf32>
    %189 = arith.mulf %188, %187 : vector<8x128xf32>
    %cst_113 = arith.constant 4.471500e-02 : f32
    %190 = vector.broadcast %cst_113 : f32 to vector<8x128xf32>
    %191 = arith.mulf %190, %187 : vector<8x128xf32>
    %192 = arith.mulf %191, %187 : vector<8x128xf32>
    %193 = arith.mulf %192, %187 : vector<8x128xf32>
    %194 = arith.addf %187, %193 : vector<8x128xf32>
    %cst_114 = arith.constant 0.797884583 : f32
    %195 = vector.broadcast %cst_114 : f32 to vector<8x128xf32>
    %196 = arith.mulf %195, %194 : vector<8x128xf32>
    %197 = math.tanh %196 : vector<8x128xf32>
    %cst_115 = arith.constant 1.000000e+00 : f32
    %198 = vector.broadcast %cst_115 : f32 to vector<8x128xf32>
    %199 = arith.addf %198, %197 : vector<8x128xf32>
    %200 = arith.mulf %189, %199 : vector<8x128xf32>
    %c0_116 = arith.constant 0 : index
    %c0_117 = arith.constant 0 : index
    %c0_118 = arith.constant 0 : index
    %201 = vector.load %arg13[%c0_116, %c0_117, %c0_118] : memref<2x128x32xbf16, #tpu.memory_space<vmem>>, vector<1x128x32xbf16>
    %202 = vector.shape_cast %201 : vector<1x128x32xbf16> to vector<128x32xbf16>
    %203 = arith.truncf %200 : vector<8x128xf32> to vector<8x128xbf16>
    %cst_119 = arith.constant dense<0.000000e+00> : vector<8x32xf32>
    %204 = tpu.matmul %203, %202, %cst_119 {dimension_numbers = #tpu.dot_dimension_numbers<[1], [0], [0], [1], [0, 0, 1, 1], [], []>} : vector<8x128xbf16>, vector<128x32xbf16>, vector<8x32xf32> -> vector<8x32xf32>
    %205 = arith.addf %153, %204 : vector<8x32xf32>
    %c0_120 = arith.constant 0 : index
    %c0_121 = arith.constant 0 : index
    %c0_122 = arith.constant 0 : index
    %206 = vector.load %arg14[%c0_120, %c0_121, %c0_122] : memref<2x1x32xf32, #tpu.memory_space<vmem>>, vector<1x1x32xf32>
    %207 = vector.shape_cast %206 : vector<1x1x32xf32> to vector<1x32xf32>
    %208 = vector.broadcast %207 : vector<1x32xf32> to vector<8x32xf32>
    %209 = arith.addf %205, %208 : vector<8x32xf32>
    %c1 = arith.constant 1 : index
    %c0_123 = arith.constant 0 : index
    %c0_124 = arith.constant 0 : index
    %210 = vector.load %arg3[%c1, %c0_123, %c0_124] : memref<2x1x32xf32, #tpu.memory_space<vmem>>, vector<1x1x32xf32>
    %211 = vector.shape_cast %210 : vector<1x1x32xf32> to vector<1x32xf32>
    %c1_125 = arith.constant 1 : index
    %c0_126 = arith.constant 0 : index
    %c0_127 = arith.constant 0 : index
    %212 = vector.load %arg4[%c1_125, %c0_126, %c0_127] : memref<2x1x32xf32, #tpu.memory_space<vmem>>, vector<1x1x32xf32>
    %213 = vector.shape_cast %212 : vector<1x1x32xf32> to vector<1x32xf32>
    %cst_128 = arith.constant dense<0.000000e+00> : vector<8xf32>
    %214 = vector.multi_reduction <add>, %209, %cst_128 [1] : vector<8x32xf32> to vector<8xf32>
    %215 = vector.shape_cast %214 : vector<8xf32> to vector<8x1xf32>
    %cst_129 = arith.constant 3.200000e+01 : f32
    %216 = vector.broadcast %cst_129 : f32 to vector<8x1xf32>
    %217 = arith.divf %215, %216 : vector<8x1xf32>
    %218 = arith.mulf %209, %209 : vector<8x32xf32>
    %cst_130 = arith.constant dense<0.000000e+00> : vector<8xf32>
    %219 = vector.multi_reduction <add>, %218, %cst_130 [1] : vector<8x32xf32> to vector<8xf32>
    %220 = vector.shape_cast %219 : vector<8xf32> to vector<8x1xf32>
    %cst_131 = arith.constant 3.200000e+01 : f32
    %221 = vector.broadcast %cst_131 : f32 to vector<8x1xf32>
    %222 = arith.divf %220, %221 : vector<8x1xf32>
    %223 = arith.mulf %217, %217 : vector<8x1xf32>
    %224 = arith.subf %222, %223 : vector<8x1xf32>
    %225 = vector.broadcast %217 : vector<8x1xf32> to vector<8x32xf32>
    %226 = arith.subf %209, %225 : vector<8x32xf32>
    %cst_132 = arith.constant 9.99999974E-6 : f32
    %227 = vector.broadcast %cst_132 : f32 to vector<8x1xf32>
    %228 = arith.addf %224, %227 : vector<8x1xf32>
    %229 = math.rsqrt %228 : vector<8x1xf32>
    %230 = vector.broadcast %229 : vector<8x1xf32> to vector<8x32xf32>
    %231 = arith.mulf %226, %230 : vector<8x32xf32>
    %232 = vector.broadcast %211 : vector<1x32xf32> to vector<8x32xf32>
    %233 = arith.mulf %231, %232 : vector<8x32xf32>
    %234 = vector.broadcast %213 : vector<1x32xf32> to vector<8x32xf32>
    %235 = arith.addf %233, %234 : vector<8x32xf32>
    %c1_133 = arith.constant 1 : index
    %c0_134 = arith.constant 0 : index
    %c0_135 = arith.constant 0 : index
    %236 = vector.load %arg3[%c1_133, %c0_134, %c0_135] : memref<2x1x32xf32, #tpu.memory_space<vmem>>, vector<1x1x32xf32>
    %237 = vector.shape_cast %236 : vector<1x1x32xf32> to vector<1x32xf32>
    %c1_136 = arith.constant 1 : index
    %c0_137 = arith.constant 0 : index
    %c0_138 = arith.constant 0 : index
    %238 = vector.load %arg4[%c1_136, %c0_137, %c0_138] : memref<2x1x32xf32, #tpu.memory_space<vmem>>, vector<1x1x32xf32>
    %239 = vector.shape_cast %238 : vector<1x1x32xf32> to vector<1x32xf32>
    %cst_139 = arith.constant dense<0.000000e+00> : vector<5xf32>
    %240 = vector.multi_reduction <add>, %3, %cst_139 [1] : vector<5x32xf32> to vector<5xf32>
    %241 = vector.shape_cast %240 : vector<5xf32> to vector<5x1xf32>
    %cst_140 = arith.constant 3.200000e+01 : f32
    %242 = vector.broadcast %cst_140 : f32 to vector<5x1xf32>
    %243 = arith.divf %241, %242 : vector<5x1xf32>
    %244 = arith.mulf %3, %3 : vector<5x32xf32>
    %cst_141 = arith.constant dense<0.000000e+00> : vector<5xf32>
    %245 = vector.multi_reduction <add>, %244, %cst_141 [1] : vector<5x32xf32> to vector<5xf32>
    %246 = vector.shape_cast %245 : vector<5xf32> to vector<5x1xf32>
    %cst_142 = arith.constant 3.200000e+01 : f32
    %247 = vector.broadcast %cst_142 : f32 to vector<5x1xf32>
    %248 = arith.divf %246, %247 : vector<5x1xf32>
    %249 = arith.mulf %243, %243 : vector<5x1xf32>
    %250 = arith.subf %248, %249 : vector<5x1xf32>
    %251 = vector.broadcast %243 : vector<5x1xf32> to vector<5x32xf32>
    %252 = arith.subf %3, %251 : vector<5x32xf32>
    %cst_143 = arith.constant 9.99999974E-6 : f32
    %253 = vector.broadcast %cst_143 : f32 to vector<5x1xf32>
    %254 = arith.addf %250, %253 : vector<5x1xf32>
    %255 = math.rsqrt %254 : vector<5x1xf32>
    %256 = vector.broadcast %255 : vector<5x1xf32> to vector<5x32xf32>
    %257 = arith.mulf %252, %256 : vector<5x32xf32>
    %258 = vector.broadcast %237 : vector<1x32xf32> to vector<5x32xf32>
    %259 = arith.mulf %257, %258 : vector<5x32xf32>
    %260 = vector.broadcast %239 : vector<1x32xf32> to vector<5x32xf32>
    %261 = arith.addf %259, %260 : vector<5x32xf32>
    %c1_144 = arith.constant 1 : index
    %c0_145 = arith.constant 0 : index
    %c0_146 = arith.constant 0 : index
    %262 = vector.load %arg5[%c1_144, %c0_145, %c0_146] : memref<2x32x32xbf16, #tpu.memory_space<vmem>>, vector<1x32x32xbf16>
    %263 = vector.shape_cast %262 : vector<1x32x32xbf16> to vector<32x32xbf16>
    %264 = arith.truncf %235 : vector<8x32xf32> to vector<8x32xbf16>
    %cst_147 = arith.constant dense<0.000000e+00> : vector<8x32xf32>
    %265 = tpu.matmul %264, %263, %cst_147 {dimension_numbers = #tpu.dot_dimension_numbers<[1], [0], [0], [1], [0, 0, 1, 1], [], []>} : vector<8x32xbf16>, vector<32x32xbf16>, vector<8x32xf32> -> vector<8x32xf32>
    %c1_148 = arith.constant 1 : index
    %c0_149 = arith.constant 0 : index
    %c0_150 = arith.constant 0 : index
    %266 = vector.load %arg6[%c1_148, %c0_149, %c0_150] : memref<2x1x32xf32, #tpu.memory_space<vmem>>, vector<1x1x32xf32>
    %267 = vector.shape_cast %266 : vector<1x1x32xf32> to vector<1x32xf32>
    %268 = vector.broadcast %267 : vector<1x32xf32> to vector<8x32xf32>
    %269 = arith.addf %265, %268 : vector<8x32xf32>
    %270 = arith.truncf %269 : vector<8x32xf32> to vector<8x32xbf16>
    %c0_151 = arith.constant 0 : index
    %c0_152 = arith.constant 0 : index
    %271 = vector.load %arg16[%c0_151, %c0_152] : memref<8x32xbf16, #tpu.memory_space<vmem>>, vector<8x32xbf16>
    tpu.vector_store %arg16[%c0_151, %c0_152], %270 {strides = array<i32>} : memref<8x32xbf16, #tpu.memory_space<vmem>>, vector<8x32xbf16>,
    %c1_153 = arith.constant 1 : index
    %c0_154 = arith.constant 0 : index
    %c0_155 = arith.constant 0 : index
    %272 = vector.load %arg7[%c1_153, %c0_154, %c0_155] : memref<2x32x64xbf16, #tpu.memory_space<vmem>>, vector<1x32x64xbf16>
    %273 = vector.shape_cast %272 : vector<1x32x64xbf16> to vector<32x64xbf16>
    %274 = arith.truncf %261 : vector<5x32xf32> to vector<5x32xbf16>
    %cst_156 = arith.constant dense<0.000000e+00> : vector<5x64xf32>
    %275 = tpu.matmul %274, %273, %cst_156 {dimension_numbers = #tpu.dot_dimension_numbers<[1], [0], [0], [1], [0, 0, 1, 1], [], []>} : vector<5x32xbf16>, vector<32x64xbf16>, vector<5x64xf32> -> vector<5x64xf32>
    %c1_157 = arith.constant 1 : index
    %c0_158 = arith.constant 0 : index
    %c0_159 = arith.constant 0 : index
    %276 = vector.load %arg8[%c1_157, %c0_158, %c0_159] : memref<2x1x64xf32, #tpu.memory_space<vmem>>, vector<1x1x64xf32>
    %277 = vector.shape_cast %276 : vector<1x1x64xf32> to vector<1x64xf32>
    %278 = vector.broadcast %277 : vector<1x64xf32> to vector<5x64xf32>
    %279 = arith.addf %275, %278 : vector<5x64xf32>
    %280 = arith.truncf %279 : vector<5x64xf32> to vector<5x64xbf16>
    %c0_160 = arith.constant 0 : index
    %c0_161 = arith.constant 0 : index
    %281 = vector.load %arg17[%c0_160, %c0_161] : memref<5x64xbf16, #tpu.memory_space<vmem>>, vector<5x64xbf16>
    tpu.vector_store %arg17[%c0_160, %c0_161], %280 {strides = array<i32>} : memref<5x64xbf16, #tpu.memory_space<vmem>>, vector<5x64xbf16>,
    %c0_162 = arith.constant 0 : index
    %c0_163 = arith.constant 0 : index
    %282 = vector.load %arg16[%c0_162, %c0_163] : memref<8x32xbf16, #tpu.memory_space<vmem>>, vector<8x8xbf16>
    %c0_164 = arith.constant 0 : index
    %c0_165 = arith.constant 0 : index
    %283 = vector.load %arg17[%c0_164, %c0_165] : memref<5x64xbf16, #tpu.memory_space<vmem>>, vector<5x8xbf16>
    %c0_166 = arith.constant 0 : index
    %c32_167 = arith.constant 32 : index
    %284 = vector.load %arg17[%c0_166, %c32_167] : memref<5x64xbf16, #tpu.memory_space<vmem>>, vector<5x8xbf16>
    "tpu.trace_start"() <{level = 10 : i32, message = "qd,kd->qk"}> : () -> ()
    %cst_168 = arith.constant dense<0.000000e+00> : vector<8x5xf32>
    %285 = tpu.matmul %282, %283, %cst_168 {dimension_numbers = #tpu.dot_dimension_numbers<[1], [1], [0], [0], [0, 0, 1, 0], [], []>} : vector<8x8xbf16>, vector<5x8xbf16>, vector<8x5xf32> -> vector<8x5xf32>
    "tpu.trace_stop"() : () -> ()
    %cst_169 = arith.constant dense<0xFF800000> : vector<8xf32>
    %286 = vector.multi_reduction <maximumf>, %285, %cst_169 [1] : vector<8x5xf32> to vector<8xf32>
    %287 = vector.shape_cast %286 : vector<8xf32> to vector<8x1xf32>
    %288 = vector.broadcast %287 : vector<8x1xf32> to vector<8x5xf32>
    %289 = arith.subf %285, %288 : vector<8x5xf32>
    %290 = math.exp %289 : vector<8x5xf32>
    %cst_170 = arith.constant dense<0.000000e+00> : vector<8xf32>
    %291 = vector.multi_reduction <add>, %290, %cst_170 [1] : vector<8x5xf32> to vector<8xf32>
    %292 = vector.shape_cast %291 : vector<8xf32> to vector<8x1xf32>
    %293 = tpu.reciprocal %292 {approx = true} : vector<8x1xf32> -> vector<8x1xf32>
    %294 = vector.broadcast %293 : vector<8x1xf32> to vector<8x5xf32>
    %295 = arith.mulf %290, %294 : vector<8x5xf32>
    %296 = arith.truncf %295 : vector<8x5xf32> to vector<8x5xbf16>
    %cst_171 = arith.constant dense<0.000000e+00> : vector<8x8xf32>
    %297 = tpu.matmul %296, %284, %cst_171 {dimension_numbers = #tpu.dot_dimension_numbers<[1], [0], [0], [1], [0, 0, 1, 1], [], []>} : vector<8x5xbf16>, vector<5x8xbf16>, vector<8x8xf32> -> vector<8x8xf32>
    %c0_172 = arith.constant 0 : index
    %c0_173 = arith.constant 0 : index
    %298 = vector.load %arg18[%c0_172, %c0_173] : memref<8x32xf32, #tpu.memory_space<vmem>>, vector<8x8xf32>
    tpu.vector_store %arg18[%c0_172, %c0_173], %297 {strides = array<i32>} : memref<8x32xf32, #tpu.memory_space<vmem>>, vector<8x8xf32>,
    %c0_174 = arith.constant 0 : index
    %c8_175 = arith.constant 8 : index
    %299 = vector.load %arg16[%c0_174, %c8_175] : memref<8x32xbf16, #tpu.memory_space<vmem>>, vector<8x8xbf16>
    %c0_176 = arith.constant 0 : index
    %c8_177 = arith.constant 8 : index
    %300 = vector.load %arg17[%c0_176, %c8_177] : memref<5x64xbf16, #tpu.memory_space<vmem>>, vector<5x8xbf16>
    %c0_178 = arith.constant 0 : index
    %c40_179 = arith.constant 40 : index
    %301 = vector.load %arg17[%c0_178, %c40_179] : memref<5x64xbf16, #tpu.memory_space<vmem>>, vector<5x8xbf16>
    "tpu.trace_start"() <{level = 10 : i32, message = "qd,kd->qk"}> : () -> ()
    %cst_180 = arith.constant dense<0.000000e+00> : vector<8x5xf32>
    %302 = tpu.matmul %299, %300, %cst_180 {dimension_numbers = #tpu.dot_dimension_numbers<[1], [1], [0], [0], [0, 0, 1, 0], [], []>} : vector<8x8xbf16>, vector<5x8xbf16>, vector<8x5xf32> -> vector<8x5xf32>
    "tpu.trace_stop"() : () -> ()
    %cst_181 = arith.constant dense<0xFF800000> : vector<8xf32>
    %303 = vector.multi_reduction <maximumf>, %302, %cst_181 [1] : vector<8x5xf32> to vector<8xf32>
    %304 = vector.shape_cast %303 : vector<8xf32> to vector<8x1xf32>
    %305 = vector.broadcast %304 : vector<8x1xf32> to vector<8x5xf32>
    %306 = arith.subf %302, %305 : vector<8x5xf32>
    %307 = math.exp %306 : vector<8x5xf32>
    %cst_182 = arith.constant dense<0.000000e+00> : vector<8xf32>
    %308 = vector.multi_reduction <add>, %307, %cst_182 [1] : vector<8x5xf32> to vector<8xf32>
    %309 = vector.shape_cast %308 : vector<8xf32> to vector<8x1xf32>
    %310 = tpu.reciprocal %309 {approx = true} : vector<8x1xf32> -> vector<8x1xf32>
    %311 = vector.broadcast %310 : vector<8x1xf32> to vector<8x5xf32>
    %312 = arith.mulf %307, %311 : vector<8x5xf32>
    %313 = arith.truncf %312 : vector<8x5xf32> to vector<8x5xbf16>
    %cst_183 = arith.constant dense<0.000000e+00> : vector<8x8xf32>
    %314 = tpu.matmul %313, %301, %cst_183 {dimension_numbers = #tpu.dot_dimension_numbers<[1], [0], [0], [1], [0, 0, 1, 1], [], []>} : vector<8x5xbf16>, vector<5x8xbf16>, vector<8x8xf32> -> vector<8x8xf32>
    %c0_184 = arith.constant 0 : index
    %c8_185 = arith.constant 8 : index
    %315 = vector.load %arg18[%c0_184, %c8_185] : memref<8x32xf32, #tpu.memory_space<vmem>>, vector<8x8xf32>
    tpu.vector_store %arg18[%c0_184, %c8_185], %314 {strides = array<i32>} : memref<8x32xf32, #tpu.memory_space<vmem>>, vector<8x8xf32>,
    %c0_186 = arith.constant 0 : index
    %c16_187 = arith.constant 16 : index
    %316 = vector.load %arg16[%c0_186, %c16_187] : memref<8x32xbf16, #tpu.memory_space<vmem>>, vector<8x8xbf16>
    %c0_188 = arith.constant 0 : index
    %c16_189 = arith.constant 16 : index
    %317 = vector.load %arg17[%c0_188, %c16_189] : memref<5x64xbf16, #tpu.memory_space<vmem>>, vector<5x8xbf16>
    %c0_190 = arith.constant 0 : index
    %c48_191 = arith.constant 48 : index
    %318 = vector.load %arg17[%c0_190, %c48_191] : memref<5x64xbf16, #tpu.memory_space<vmem>>, vector<5x8xbf16>
    "tpu.trace_start"() <{level = 10 : i32, message = "qd,kd->qk"}> : () -> ()
    %cst_192 = arith.constant dense<0.000000e+00> : vector<8x5xf32>
    %319 = tpu.matmul %316, %317, %cst_192 {dimension_numbers = #tpu.dot_dimension_numbers<[1], [1], [0], [0], [0, 0, 1, 0], [], []>} : vector<8x8xbf16>, vector<5x8xbf16>, vector<8x5xf32> -> vector<8x5xf32>
    "tpu.trace_stop"() : () -> ()
    %cst_193 = arith.constant dense<0xFF800000> : vector<8xf32>
    %320 = vector.multi_reduction <maximumf>, %319, %cst_193 [1] : vector<8x5xf32> to vector<8xf32>
    %321 = vector.shape_cast %320 : vector<8xf32> to vector<8x1xf32>
    %322 = vector.broadcast %321 : vector<8x1xf32> to vector<8x5xf32>
    %323 = arith.subf %319, %322 : vector<8x5xf32>
    %324 = math.exp %323 : vector<8x5xf32>
    %cst_194 = arith.constant dense<0.000000e+00> : vector<8xf32>
    %325 = vector.multi_reduction <add>, %324, %cst_194 [1] : vector<8x5xf32> to vector<8xf32>
    %326 = vector.shape_cast %325 : vector<8xf32> to vector<8x1xf32>
    %327 = tpu.reciprocal %326 {approx = true} : vector<8x1xf32> -> vector<8x1xf32>
    %328 = vector.broadcast %327 : vector<8x1xf32> to vector<8x5xf32>
    %329 = arith.mulf %324, %328 : vector<8x5xf32>
    %330 = arith.truncf %329 : vector<8x5xf32> to vector<8x5xbf16>
    %cst_195 = arith.constant dense<0.000000e+00> : vector<8x8xf32>
    %331 = tpu.matmul %330, %318, %cst_195 {dimension_numbers = #tpu.dot_dimension_numbers<[1], [0], [0], [1], [0, 0, 1, 1], [], []>} : vector<8x5xbf16>, vector<5x8xbf16>, vector<8x8xf32> -> vector<8x8xf32>
    %c0_196 = arith.constant 0 : index
    %c16_197 = arith.constant 16 : index
    %332 = vector.load %arg18[%c0_196, %c16_197] : memref<8x32xf32, #tpu.memory_space<vmem>>, vector<8x8xf32>
    tpu.vector_store %arg18[%c0_196, %c16_197], %331 {strides = array<i32>} : memref<8x32xf32, #tpu.memory_space<vmem>>, vector<8x8xf32>,
    %c0_198 = arith.constant 0 : index
    %c24_199 = arith.constant 24 : index
    %333 = vector.load %arg16[%c0_198, %c24_199] : memref<8x32xbf16, #tpu.memory_space<vmem>>, vector<8x8xbf16>
    %c0_200 = arith.constant 0 : index
    %c24_201 = arith.constant 24 : index
    %334 = vector.load %arg17[%c0_200, %c24_201] : memref<5x64xbf16, #tpu.memory_space<vmem>>, vector<5x8xbf16>
    %c0_202 = arith.constant 0 : index
    %c56_203 = arith.constant 56 : index
    %335 = vector.load %arg17[%c0_202, %c56_203] : memref<5x64xbf16, #tpu.memory_space<vmem>>, vector<5x8xbf16>
    "tpu.trace_start"() <{level = 10 : i32, message = "qd,kd->qk"}> : () -> ()
    %cst_204 = arith.constant dense<0.000000e+00> : vector<8x5xf32>
    %336 = tpu.matmul %333, %334, %cst_204 {dimension_numbers = #tpu.dot_dimension_numbers<[1], [1], [0], [0], [0, 0, 1, 0], [], []>} : vector<8x8xbf16>, vector<5x8xbf16>, vector<8x5xf32> -> vector<8x5xf32>
    "tpu.trace_stop"() : () -> ()
    %cst_205 = arith.constant dense<0xFF800000> : vector<8xf32>
    %337 = vector.multi_reduction <maximumf>, %336, %cst_205 [1] : vector<8x5xf32> to vector<8xf32>
    %338 = vector.shape_cast %337 : vector<8xf32> to vector<8x1xf32>
    %339 = vector.broadcast %338 : vector<8x1xf32> to vector<8x5xf32>
    %340 = arith.subf %336, %339 : vector<8x5xf32>
    %341 = math.exp %340 : vector<8x5xf32>
    %cst_206 = arith.constant dense<0.000000e+00> : vector<8xf32>
    %342 = vector.multi_reduction <add>, %341, %cst_206 [1] : vector<8x5xf32> to vector<8xf32>
    %343 = vector.shape_cast %342 : vector<8xf32> to vector<8x1xf32>
    %344 = tpu.reciprocal %343 {approx = true} : vector<8x1xf32> -> vector<8x1xf32>
    %345 = vector.broadcast %344 : vector<8x1xf32> to vector<8x5xf32>
    %346 = arith.mulf %341, %345 : vector<8x5xf32>
    %347 = arith.truncf %346 : vector<8x5xf32> to vector<8x5xbf16>
    %cst_207 = arith.constant dense<0.000000e+00> : vector<8x8xf32>
    %348 = tpu.matmul %347, %335, %cst_207 {dimension_numbers = #tpu.dot_dimension_numbers<[1], [0], [0], [1], [0, 0, 1, 1], [], []>} : vector<8x5xbf16>, vector<5x8xbf16>, vector<8x8xf32> -> vector<8x8xf32>
    %c0_208 = arith.constant 0 : index
    %c24_209 = arith.constant 24 : index
    %349 = vector.load %arg18[%c0_208, %c24_209] : memref<8x32xf32, #tpu.memory_space<vmem>>, vector<8x8xf32>
    tpu.vector_store %arg18[%c0_208, %c24_209], %348 {strides = array<i32>} : memref<8x32xf32, #tpu.memory_space<vmem>>, vector<8x8xf32>,
    %c0_210 = arith.constant 0 : index
    %c0_211 = arith.constant 0 : index
    %350 = vector.load %arg18[%c0_210, %c0_211] : memref<8x32xf32, #tpu.memory_space<vmem>>, vector<8x32xf32>
    %c1_212 = arith.constant 1 : index
    %c0_213 = arith.constant 0 : index
    %c0_214 = arith.constant 0 : index
    %351 = vector.load %arg9[%c1_212, %c0_213, %c0_214] : memref<2x32x32xbf16, #tpu.memory_space<vmem>>, vector<1x32x32xbf16>
    %352 = vector.shape_cast %351 : vector<1x32x32xbf16> to vector<32x32xbf16>
    %353 = arith.truncf %350 : vector<8x32xf32> to vector<8x32xbf16>
    %cst_215 = arith.constant dense<0.000000e+00> : vector<8x32xf32>
    %354 = tpu.matmul %353, %352, %cst_215 {dimension_numbers = #tpu.dot_dimension_numbers<[1], [0], [0], [1], [0, 0, 1, 1], [], []>} : vector<8x32xbf16>, vector<32x32xbf16>, vector<8x32xf32> -> vector<8x32xf32>
    %355 = arith.addf %209, %354 : vector<8x32xf32>
    %c1_216 = arith.constant 1 : index
    %c0_217 = arith.constant 0 : index
    %c0_218 = arith.constant 0 : index
    %356 = vector.load %arg10[%c1_216, %c0_217, %c0_218] : memref<2x1x32xf32, #tpu.memory_space<vmem>>, vector<1x1x32xf32>
    %357 = vector.shape_cast %356 : vector<1x1x32xf32> to vector<1x32xf32>
    %358 = vector.broadcast %357 : vector<1x32xf32> to vector<8x32xf32>
    %359 = arith.addf %355, %358 : vector<8x32xf32>
    %c1_219 = arith.constant 1 : index
    %c0_220 = arith.constant 0 : index
    %c0_221 = arith.constant 0 : index
    %360 = vector.load %arg3[%c1_219, %c0_220, %c0_221] : memref<2x1x32xf32, #tpu.memory_space<vmem>>, vector<1x1x32xf32>
    %361 = vector.shape_cast %360 : vector<1x1x32xf32> to vector<1x32xf32>
    %c1_222 = arith.constant 1 : index
    %c0_223 = arith.constant 0 : index
    %c0_224 = arith.constant 0 : index
    %362 = vector.load %arg4[%c1_222, %c0_223, %c0_224] : memref<2x1x32xf32, #tpu.memory_space<vmem>>, vector<1x1x32xf32>
    %363 = vector.shape_cast %362 : vector<1x1x32xf32> to vector<1x32xf32>
    %cst_225 = arith.constant dense<0.000000e+00> : vector<8xf32>
    %364 = vector.multi_reduction <add>, %359, %cst_225 [1] : vector<8x32xf32> to vector<8xf32>
    %365 = vector.shape_cast %364 : vector<8xf32> to vector<8x1xf32>
    %cst_226 = arith.constant 3.200000e+01 : f32
    %366 = vector.broadcast %cst_226 : f32 to vector<8x1xf32>
    %367 = arith.divf %365, %366 : vector<8x1xf32>
    %368 = arith.mulf %359, %359 : vector<8x32xf32>
    %cst_227 = arith.constant dense<0.000000e+00> : vector<8xf32>
    %369 = vector.multi_reduction <add>, %368, %cst_227 [1] : vector<8x32xf32> to vector<8xf32>
    %370 = vector.shape_cast %369 : vector<8xf32> to vector<8x1xf32>
    %cst_228 = arith.constant 3.200000e+01 : f32
    %371 = vector.broadcast %cst_228 : f32 to vector<8x1xf32>
    %372 = arith.divf %370, %371 : vector<8x1xf32>
    %373 = arith.mulf %367, %367 : vector<8x1xf32>
    %374 = arith.subf %372, %373 : vector<8x1xf32>
    %375 = vector.broadcast %367 : vector<8x1xf32> to vector<8x32xf32>
    %376 = arith.subf %359, %375 : vector<8x32xf32>
    %cst_229 = arith.constant 9.99999974E-6 : f32
    %377 = vector.broadcast %cst_229 : f32 to vector<8x1xf32>
    %378 = arith.addf %374, %377 : vector<8x1xf32>
    %379 = math.rsqrt %378 : vector<8x1xf32>
    %380 = vector.broadcast %379 : vector<8x1xf32> to vector<8x32xf32>
    %381 = arith.mulf %376, %380 : vector<8x32xf32>
    %382 = vector.broadcast %361 : vector<1x32xf32> to vector<8x32xf32>
    %383 = arith.mulf %381, %382 : vector<8x32xf32>
    %384 = vector.broadcast %363 : vector<1x32xf32> to vector<8x32xf32>
    %385 = arith.addf %383, %384 : vector<8x32xf32>
    %c1_230 = arith.constant 1 : index
    %c0_231 = arith.constant 0 : index
    %c0_232 = arith.constant 0 : index
    %386 = vector.load %arg11[%c1_230, %c0_231, %c0_232] : memref<2x32x128xbf16, #tpu.memory_space<vmem>>, vector<1x32x128xbf16>
    %387 = vector.shape_cast %386 : vector<1x32x128xbf16> to vector<32x128xbf16>
    %388 = arith.truncf %385 : vector<8x32xf32> to vector<8x32xbf16>
    %cst_233 = arith.constant dense<0.000000e+00> : vector<8x128xf32>
    %389 = tpu.matmul %388, %387, %cst_233 {dimension_numbers = #tpu.dot_dimension_numbers<[1], [0], [0], [1], [0, 0, 1, 1], [], []>} : vector<8x32xbf16>, vector<32x128xbf16>, vector<8x128xf32> -> vector<8x128xf32>
    %c1_234 = arith.constant 1 : index
    %c0_235 = arith.constant 0 : index
    %c0_236 = arith.constant 0 : index
    %390 = vector.load %arg12[%c1_234, %c0_235, %c0_236] : memref<2x1x128xf32, #tpu.memory_space<vmem>>, vector<1x1x128xf32>
    %391 = vector.shape_cast %390 : vector<1x1x128xf32> to vector<1x128xf32>
    %392 = vector.broadcast %391 : vector<1x128xf32> to vector<8x128xf32>
    %393 = arith.addf %389, %392 : vector<8x128xf32>
    %cst_237 = arith.constant 5.000000e-01 : f32
    %394 = vector.broadcast %cst_237 : f32 to vector<8x128xf32>
    %395 = arith.mulf %394, %393 : vector<8x128xf32>
    %cst_238 = arith.constant 4.471500e-02 : f32
    %396 = vector.broadcast %cst_238 : f32 to vector<8x128xf32>
    %397 = arith.mulf %396, %393 : vector<8x128xf32>
    %398 = arith.mulf %397, %393 : vector<8x128xf32>
    %399 = arith.mulf %398, %393 : vector<8x128xf32>
    %400 = arith.addf %393, %399 : vector<8x128xf32>
    %cst_239 = arith.constant 0.797884583 : f32
    %401 = vector.broadcast %cst_239 : f32 to vector<8x128xf32>
    %402 = arith.mulf %401, %400 : vector<8x128xf32>
    %403 = math.tanh %402 : vector<8x128xf32>
    %cst_240 = arith.constant 1.000000e+00 : f32
    %404 = vector.broadcast %cst_240 : f32 to vector<8x128xf32>
    %405 = arith.addf %404, %403 : vector<8x128xf32>
    %406 = arith.mulf %395, %405 : vector<8x128xf32>
    %c1_241 = arith.constant 1 : index
    %c0_242 = arith.constant 0 : index
    %c0_243 = arith.constant 0 : index
    %407 = vector.load %arg13[%c1_241, %c0_242, %c0_243] : memref<2x128x32xbf16, #tpu.memory_space<vmem>>, vector<1x128x32xbf16>
    %408 = vector.shape_cast %407 : vector<1x128x32xbf16> to vector<128x32xbf16>
    %409 = arith.truncf %406 : vector<8x128xf32> to vector<8x128xbf16>
    %cst_244 = arith.constant dense<0.000000e+00> : vector<8x32xf32>
    %410 = tpu.matmul %409, %408, %cst_244 {dimension_numbers = #tpu.dot_dimension_numbers<[1], [0], [0], [1], [0, 0, 1, 1], [], []>} : vector<8x128xbf16>, vector<128x32xbf16>, vector<8x32xf32> -> vector<8x32xf32>
    %411 = arith.addf %359, %410 : vector<8x32xf32>
    %c1_245 = arith.constant 1 : index
    %c0_246 = arith.constant 0 : index
    %c0_247 = arith.constant 0 : index
    %412 = vector.load %arg14[%c1_245, %c0_246, %c0_247] : memref<2x1x32xf32, #tpu.memory_space<vmem>>, vector<1x1x32xf32>
    %413 = vector.shape_cast %412 : vector<1x1x32xf32> to vector<1x32xf32>
    %414 = vector.broadcast %413 : vector<1x32xf32> to vector<8x32xf32>
    %415 = arith.addf %411, %414 : vector<8x32xf32>
    %c0_248 = arith.constant 0 : index
    %c0_249 = arith.constant 0 : index
    %c0_250 = arith.constant 0 : index
    %416 = vector.load %arg15[%c0_248, %c0_249, %c0_250] : memref<1x8x32xf32, #tpu.memory_space<vmem>>, vector<1x8x32xf32>
    %417 = vector.shape_cast %416 : vector<1x8x32xf32> to vector<8x32xf32>
    %418 = vector.shape_cast %415 : vector<8x32xf32> to vector<1x8x32xf32>
    tpu.vector_store %arg15[%c0_248, %c0_249, %c0_250], %418 {strides = array<i32>} : memref<1x8x32xf32, #tpu.memory_space<vmem>>, vector<1x8x32xf32>,
    return
  }
  func.func @transform_0(%arg0: i32) -> (i32, i32, i32) {
    %c0_i32 = arith.constant 0 : i32
    %c0_i32_0 = arith.constant 0 : i32
    %c0_i32_1 = arith.constant 0 : i32
    return %arg0, %c0_i32, %c0_i32_0 : i32, i32, i32
  }
  func.func @transform_1(%arg0: i32) -> (i32, i32, i32) {
    %c0_i32 = arith.constant 0 : i32
    %c0_i32_0 = arith.constant 0 : i32
    %c0_i32_1 = arith.constant 0 : i32
    return %arg0, %c0_i32, %c0_i32_0 : i32, i32, i32
  }
  func.func @transform_2(%arg0: i32) -> (i32, i32, i32) {
    %c0_i32 = arith.constant 0 : i32
    %c0_i32_0 = arith.constant 0 : i32
    %c0_i32_1 = arith.constant 0 : i32
    %c0_i32_2 = arith.constant 0 : i32
    return %c0_i32, %c0_i32_0, %c0_i32_1 : i32, i32, i32
  }
  func.func @transform_3(%arg0: i32) -> (i32, i32, i32) {
    %c0_i32 = arith.constant 0 : i32
    %c0_i32_0 = arith.constant 0 : i32
    %c0_i32_1 = arith.constant 0 : i32
    %c0_i32_2 = arith.constant 0 : i32
    return %c0_i32, %c0_i32_0, %c0_i32_1 : i32, i32, i32
  }
  func.func @transform_4(%arg0: i32) -> (i32, i32, i32) {
    %c0_i32 = arith.constant 0 : i32
    %c0_i32_0 = arith.constant 0 : i32
    %c0_i32_1 = arith.constant 0 : i32
    %c0_i32_2 = arith.constant 0 : i32
    return %c0_i32, %c0_i32_0, %c0_i32_1 : i32, i32, i32
  }
  func.func @transform_5(%arg0: i32) -> (i32, i32, i32) {
    %c0_i32 = arith.constant 0 : i32
    %c0_i32_0 = arith.constant 0 : i32
    %c0_i32_1 = arith.constant 0 : i32
    %c0_i32_2 = arith.constant 0 : i32
    return %c0_i32, %c0_i32_0, %c0_i32_1 : i32, i32, i32
  }
  func.func @transform_6(%arg0: i32) -> (i32, i32, i32) {
    %c0_i32 = arith.constant 0 : i32
    %c0_i32_0 = arith.constant 0 : i32
    %c0_i32_1 = arith.constant 0 : i32
    %c0_i32_2 = arith.constant 0 : i32
    return %c0_i32, %c0_i32_0, %c0_i32_1 : i32, i32, i32
  }
  func.func @transform_7(%arg0: i32) -> (i32, i32, i32) {
    %c0_i32 = arith.constant 0 : i32
    %c0_i32_0 = arith.constant 0 : i32
    %c0_i32_1 = arith.constant 0 : i32
    %c0_i32_2 = arith.constant 0 : i32
    return %c0_i32, %c0_i32_0, %c0_i32_1 : i32, i32, i32
  }
  func.func @transform_8(%arg0: i32) -> (i32, i32, i32) {
    %c0_i32 = arith.constant 0 : i32
    %c0_i32_0 = arith.constant 0 : i32
    %c0_i32_1 = arith.constant 0 : i32
    %c0_i32_2 = arith.constant 0 : i32
    return %c0_i32, %c0_i32_0, %c0_i32_1 : i32, i32, i32
  }
  func.func @transform_9(%arg0: i32) -> (i32, i32, i32) {
    %c0_i32 = arith.constant 0 : i32
    %c0_i32_0 = arith.constant 0 : i32
    %c0_i32_1 = arith.constant 0 : i32
    %c0_i32_2 = arith.constant 0 : i32
    return %c0_i32, %c0_i32_0, %c0_i32_1 : i32, i32, i32
  }
  func.func @transform_10(%arg0: i32) -> (i32, i32, i32) {
    %c0_i32 = arith.constant 0 : i32
    %c0_i32_0 = arith.constant 0 : i32
    %c0_i32_1 = arith.constant 0 : i32
    %c0_i32_2 = arith.constant 0 : i32
    return %c0_i32, %c0_i32_0, %c0_i32_1 : i32, i32, i32
  }
  func.func @transform_11(%arg0: i32) -> (i32, i32, i32) {
    %c0_i32 = arith.constant 0 : i32
    %c0_i32_0 = arith.constant 0 : i32
    %c0_i32_1 = arith.constant 0 : i32
    %c0_i32_2 = arith.constant 0 : i32
    return %c0_i32, %c0_i32_0, %c0_i32_1 : i32, i32, i32
  }
  func.func @transform_12(%arg0: i32) -> (i32, i32, i32) {
    %c0_i32 = arith.constant 0 : i32
    %c0_i32_0 = arith.constant 0 : i32
    %c0_i32_1 = arith.constant 0 : i32
    %c0_i32_2 = arith.constant 0 : i32
    return %c0_i32, %c0_i32_0, %c0_i32_1 : i32, i32, i32
  }
  func.func @transform_13(%arg0: i32) -> (i32, i32, i32) {
    %c0_i32 = arith.constant 0 : i32
    %c0_i32_0 = arith.constant 0 : i32
    %c0_i32_1 = arith.constant 0 : i32
    %c0_i32_2 = arith.constant 0 : i32
    return %c0_i32, %c0_i32_0, %c0_i32_1 : i32, i32, i32
  }
  func.func @transform_14(%arg0: i32) -> (i32, i32, i32) {
    %c0_i32 = arith.constant 0 : i32
    %c0_i32_0 = arith.constant 0 : i32
    %c0_i32_1 = arith.constant 0 : i32
    return %arg0, %c0_i32, %c0_i32_0 : i32, i32, i32
  }
}

</mosaic_0001>

<llo_original>
// kernel: _forward_impl.5
$region0: #{_forward_impl.5}
  #allocation0 [shape = 'u32[]', space=smem, size = 0x4, offset = 0x4, fixed_abs, tag = 'smem constant byte address 0x4 - core index']
  #allocation1 [shape = 'u32[144,128]{1,0:T(1,128)}', space=vmem, size = 0x12000, scoped, tag = 'internal scratch']
  %s0 = inlined_call_operand.vmem [shape: f32[16,32], index: 0, kind: input, shape index: {}]
  %s1 = inlined_call_operand.vmem [shape: bf16[32,128], index: 1, kind: input, shape index: {}]
  %s2 = inlined_call_operand.hbm [shape: f32[16,128], index: 2, kind: output, shape index: {}]
  %s3 = sld [smem:[#allocation0]]
  $region18: #{_forward_impl.5} parent=0
    _
  %s5 = ssub.s32 1, %s3
  %s6 = scalar_select 0, %s5, %s3
  $region1: #{_forward_impl.5} parent=0
    #allocation2 [shape = 'u8[8192]{0}', space=vmem, size = 0x2000, scoped, tag = 'output window, operand 0, single buffered']
    #allocation3 [shape = 's32[1]{0}', space=sflag, size = 0x4, scoped, tag = 'scoped memory for _forward_impl.5']
    %7 = vsyncpa [#allocation3], 0
    // Predicated region
    $region2: #{_forward_impl.5} parent=1 // pred_check
      _
    $region3: #{_forward_impl.5} parent=1 // pred_check_branch
      %9 = sbr.rel (0) target = $region5
    $region4: #{_forward_impl.5} parent=1 // pred_region
      _
    $region5: #{_forward_impl.5} parent=1 // pred_fallthru
      _
    // Predicated region
    $region6: #{_forward_impl.5} parent=1 // pred_check
      _
    $region7: #{_forward_impl.5} parent=1 // pred_check_branch
      %11 = sbr.rel (0) target = $region9
    $region8: #{_forward_impl.5} parent=1 // pred_region
      _
    $region9: #{_forward_impl.5} parent=1 // pred_fallthru
      _
    %v13 = vld [vmem:[%s0] sm:$0xff]
    %v14 = vld [vmem:[%s0 + $0x8] sm:$0xff]
    %v15 = vpack.c.bf16 %v14, %v13
    %v16 = vld [vmem:[%s1] sm:$0xf]
    %v17 = vld [vmem:[%s1 + $0x4] sm:$0xf]
    %v18 = vld [vmem:[%s1 + $0x8] sm:$0xf]
    %v19 = vld [vmem:[%s1 + $0xc] sm:$0xf]
    %v24 = vunpack.c.l.b16 %v16
    %v25 = vunpack.c.l.b16 %v17
    %v26 = vunpack.c.l.b16 %v18
    %v27 = vunpack.c.l.b16 %v19
    %v28 = vpack.c.b16 %v25, %v24
    %v29 = vpack.c.b16 %v27, %v26
    %vm32 = vcmask 261120
    %v34 = vsel %vm32, %v15, 0
    %36 = vmatprep.subr.bf16.mxu0 0
    %37 = vmatpush1.bf16.msra.mxu0 0
    %38 = vmatprep.subr.bf16.mxu0 0
    %39 = vmatpush1.bf16.msra.mxu0 0
    %40 = vmatprep.subr.bf16.mxu0 0
    %41 = vmatpush1.bf16.msra.mxu0 0
    %42 = vmatprep.subr.bf16.mxu0 0
    %43 = vmatpush1.bf16.msra.mxu0 0
    %44 = vmatprep.subr.bf16.mxu0 0
    %45 = vmatpush1.bf16.msra.mxu0 0
    %46 = vmatprep.subr.bf16.mxu0 0
    %47 = vmatpush1.bf16.msra.mxu0 0
    %48 = vmatprep.subr.bf16.mxu0 0
    %49 = vmatpush1.bf16.msra.mxu0 %v29
    %50 = vmatprep.subr.bf16.mxu0 0
    %51 = vmatpush1.bf16.msra.mxu0 %v28
    %52 = vmatprep.subr.bf16.mxu0 0
    %53 = vmatpush2.bf16.msra.mxu0 0
    %54 = vmatprep.subr.bf16.mxu0 0
    %55 = vmatpush2.bf16.msra.mxu0 0
    %56 = vmatprep.subr.bf16.mxu0 0
    %57 = vmatpush2.bf16.msra.mxu0 0
    %58 = vmatprep.subr.bf16.mxu0 0
    %59 = vmatpush2.bf16.msra.mxu0 0
    %60 = vmatprep.subr.bf16.mxu0 0
    %61 = vmatpush2.bf16.msra.mxu0 0
    %62 = vmatprep.subr.bf16.mxu0 0
    %63 = vmatpush2.bf16.msra.mxu0 0
    %64 = vmatprep.subr.bf16.mxu0 0
    %65 = vmatpush2.bf16.msra.mxu0 0
    %66 = vmatprep.subr.bf16.mxu0 0
    %67 = vmatpush2.bf16.msra.mxu0 0
    %68 = vmatprep.mubr.bf16.mxu0 0
    %69 = vmatmul.mubr.bf16.gmra.mxu0 %v34
    %v70 = vpop.f32.mrf.mxu0
    %v71 = vadd.f32 0.0, %v70
    %v72 = vpop.f32.mrf.mxu0
    %v73 = vpop.f32.mrf.mxu0
    %v74 = vadd.f32 0.0, %v73
    %v75 = vpop.f32.mrf.mxu0
    %76 = vdwg.mxu0
    %77 = vst [vmem:[#allocation2] sm:$0xff] %v71
    %78 = vst [vmem:[#allocation2 + $0x8] sm:$0xff] %v74
    // Predicated region
    $region10: #{_forward_impl.5} parent=1 // pred_check
      _
    $region11: #{_forward_impl.5} parent=1 // pred_check_branch
      %80 = sbr.rel (0) target = $region13
    $region12: #{_forward_impl.5} parent=1 // pred_region
      %s82 = ssub.s32 256, 256
      %83 = vsyncadd [#allocation3], %s82
      %s84 = sshll.u32 [#allocation2], 4
      %s85 = int_to_ptr.vmem [resolvable:$true] %s84
      %90 = dma.vmem_to_hbm [thread:$0]  %s85, 256, %s2, [#allocation3], 128, 128, 8
    $region13: #{_forward_impl.5} parent=1 // pred_fallthru
      _
    // Predicated region
    $region14: #{_forward_impl.5} parent=1 // pred_check
      _
    $region15: #{_forward_impl.5} parent=1 // pred_check_branch
      %92 = sbr.rel (0) target = $region17
    $region16: #{_forward_impl.5} parent=1 // pred_region
      %93 = dma.done [#allocation3], 256
    $region17: #{_forward_impl.5} parent=1 // pred_fallthru
      _
    %94 = vsyncpa [#allocation3], 1

// kernel: _forward_impl.3
$region0: #{_forward_impl.3}
  #allocation0 [shape = 'u32[]', space=smem, size = 0x4, offset = 0x4, fixed_abs, tag = 'smem constant byte address 0x4 - core index']
  #allocation1 [shape = 'u32[144,128]{1,0:T(1,128)}', space=vmem, size = 0x12000, scoped, tag = 'internal scratch']
  #allocation2 [shape = 'bf16[5,96]{1,0:T(8,128)(2,1)}', space=vmem, size = 0x800, scoped, tag = 'scratch operand']
  #allocation3 [shape = 'f32[5,32]{1,0:T(8,128)}', space=vmem, size = 0x1000, scoped, tag = 'scratch operand']
  %s0 = inlined_call_operand.vmem [shape: bf16[2,5,256], index: 0, kind: input, shape index: {}]
  %s1 = inlined_call_operand.vmem [shape: bf16[256,32], index: 1, kind: input, shape index: {}]
  %s2 = inlined_call_operand.vmem [shape: f32[5,32], index: 2, kind: input, shape index: {}]
  %s3 = inlined_call_operand.vmem [shape: f32[1,32], index: 3, kind: input, shape index: {}]
  %s4 = inlined_call_operand.vmem [shape: f32[1,32], index: 4, kind: input, shape index: {}]
  %s5 = inlined_call_operand.vmem [shape: f32[1,32], index: 5, kind: input, shape index: {}]
  %s6 = inlined_call_operand.vmem [shape: f32[1,32], index: 6, kind: input, shape index: {}]
  %s7 = inlined_call_operand.vmem [shape: bf16[32,96], index: 7, kind: input, shape index: {}]
  %s8 = inlined_call_operand.vmem [shape: f32[1,96], index: 8, kind: input, shape index: {}]
  %s9 = inlined_call_operand.vmem [shape: bf16[32,32], index: 9, kind: input, shape index: {}]
  %s10 = inlined_call_operand.vmem [shape: f32[1,32], index: 10, kind: input, shape index: {}]
  %s11 = inlined_call_operand.vmem [shape: f32[1,32], index: 11, kind: input, shape index: {}]
  %s12 = inlined_call_operand.vmem [shape: f32[1,32], index: 12, kind: input, shape index: {}]
  %s13 = inlined_call_operand.vmem [shape: bf16[32,128], index: 13, kind: input, shape index: {}]
  %s14 = inlined_call_operand.vmem [shape: f32[1,128], index: 14, kind: input, shape index: {}]
  %s15 = inlined_call_operand.vmem [shape: bf16[128,32], index: 15, kind: input, shape index: {}]
  %s16 = inlined_call_operand.vmem [shape: f32[1,32], index: 16, kind: input, shape index: {}]
  %s17 = inlined_call_operand.vmem [shape: f32[2,5,32], index: 17, kind: output, shape index: {}]
  %s18 = sld [smem:[#allocation0]]
  $region101: #{_forward_impl.3} parent=0
    _
  %s20 = ssub.s32 1, %s18
  %s21 = scalar_select 0, %s20, %s18
  loop: start=0, step=1, limit=4
  $region2: #{_forward_impl.3} parent=0 // loop_pre_header
    _
  $region3: #{_forward_impl.3} parent=0 // loop_header
    %s23 = sphi 0, %s27
    %p24 = scmp.ge.s32.totalorder %s23, 4
    %s33 = sphi 0, %s35
    %s36 = sphi 0, %s33
    %s37 = sphi 0, %s36
    %s53 = sphi 0, %s37
    %s57 = sphi 0, %s57
    %s59 = sphi 0, %s57
    %s60 = sphi 0, %s59
    %s74 = sphi 0, %s60
    %s78 = sphi 0, %s78
    %s80 = sphi 0, %s78
    %s81 = sphi 0, %s80
    %s95 = sphi 0, %s81
    %s99 = sphi 0, %s99
    %s101 = sphi 0, %s99
    %s102 = sphi 0, %s101
    %s116 = sphi 0, %s102
    %s120 = sphi 0, %s120
    %s122 = sphi 0, %s120
    %s123 = sphi 0, %s122
    %s137 = sphi 0, %s123
    %s141 = sphi 0, %s141
    %s143 = sphi 0, %s141
    %s144 = sphi 0, %s143
    %s158 = sphi 0, %s144
    %s162 = sphi 0, %s162
    %s164 = sphi 0, %s162
    %s165 = sphi 0, %s164
    %s179 = sphi 0, %s165
    %s183 = sphi 0, %s183
    %s185 = sphi 0, %s183
    %s186 = sphi 0, %s185
    %s200 = sphi 0, %s186
    %s204 = sphi 0, %s204
    %s206 = sphi 0, %s204
    %s207 = sphi 0, %s206
    %s221 = sphi 0, %s207
    %s225 = sphi 0, %s225
    %s227 = sphi 0, %s225
    %s228 = sphi 0, %s227
    %s242 = sphi 0, %s228
    %s246 = sphi 0, %s246
    %s248 = sphi 0, %s246
    %s249 = sphi 0, %s248
    %s263 = sphi 0, %s249
    %s267 = sphi 0, %s267
    %s269 = sphi 0, %s267
    %s270 = sphi 0, %s269
    %s284 = sphi 0, %s270
    %s288 = sphi 0, %s288
    %s290 = sphi 0, %s288
    %s291 = sphi 0, %s290
    %s305 = sphi 0, %s291
    %s309 = sphi 0, %s309
    %s311 = sphi 0, %s309
    %s312 = sphi 0, %s311
    %s326 = sphi 0, %s312
    %s330 = sphi 0, %s330
    %s332 = sphi 0, %s330
    %s333 = sphi 0, %s332
    %s347 = sphi 0, %s333
    %s351 = sphi 0, %s351
    %s353 = sphi 0, %s351
    %s354 = sphi 0, %s353
    %s368 = sphi 0, %s354
    %s372 = sphi 0, %s372
    %s374 = sphi 0, %s372
    %s375 = sphi 0, %s374
    %s389 = sphi 0, %s375
    %s395 = sphi 0, %s397
    %s398 = sphi 0, %s395
    %s399 = sphi 0, %s398
    %s415 = sphi 0, %s399
  $region4: #{_forward_impl.3} parent=0 // loop_header_branch
    %26 = sbr.rel (%p24) target = $region8
  $region5: #{_forward_impl.3} parent=0 // loop_body
    %s28 = ssub.s32 %s23, 1
    %s29 = ssub.s32 %s23, 2
    %s30 = sadd.s32 %s23, 1
    %s31 = ssub.s32 %s23, %s30
    %p32 = scmp.eq.s32.totalorder %s31, 0
    %s34 = sadd.s32 %s33, 1
    %s35 = scalar_select %p32, %s33, %s34
    %p38 = pneg %p32
    %p39 = scmp.eq.s32.totalorder %s23, 1
    %p40 = por %p38, %p39
    %p41 = scmp.ne.s32.totalorder %s33, %s36
    %p42 = scmp.eq.s32.totalorder %s23, 0
    %p43 = por %p41, %p42
    %p44 = scmp.ne.s32.totalorder %s33, %s36
    %p45 = scmp.eq.s32.totalorder %s28, 1
    %p46 = por %p44, %p45
    %p47 = scmp.ne.s32.totalorder %s36, %s37
    %p48 = scmp.eq.s32.totalorder %s28, 0
    %p49 = por %p47, %p48
    %p50 = scmp.ne.s32.totalorder %s36, %s37
    %p51 = scmp.eq.s32.totalorder %s29, 1
    %p52 = por %p50, %p51
    %p54 = scmp.ne.s32.totalorder %s37, %s53
    %p55 = scmp.eq.s32.totalorder %s29, 0
    %p56 = por %p54, %p55
    %s58 = sadd.s32 %s57, 1
    %p61 = scmp.eq.s32.totalorder %s23, 1
    %p62 = scmp.ne.s32.totalorder %s57, %s59
    %p63 = scmp.eq.s32.totalorder %s23, 0
    %p64 = por %p62, %p63
    %p65 = scmp.ne.s32.totalorder %s57, %s59
    %p66 = scmp.eq.s32.totalorder %s28, 1
    %p67 = por %p65, %p66
    %p68 = scmp.ne.s32.totalorder %s59, %s60
    %p69 = scmp.eq.s32.totalorder %s28, 0
    %p70 = por %p68, %p69
    %p71 = scmp.ne.s32.totalorder %s59, %s60
    %p72 = scmp.eq.s32.totalorder %s29, 1
    %p73 = por %p71, %p72
    %p75 = scmp.ne.s32.totalorder %s60, %s74
    %p76 = scmp.eq.s32.totalorder %s29, 0
    %p77 = por %p75, %p76
    %s79 = sadd.s32 %s78, 1
    %p82 = scmp.eq.s32.totalorder %s23, 1
    %p83 = scmp.ne.s32.totalorder %s78, %s80
    %p84 = scmp.eq.s32.totalorder %s23, 0
    %p85 = por %p83, %p84
    %p86 = scmp.ne.s32.totalorder %s78, %s80
    %p87 = scmp.eq.s32.totalorder %s28, 1
    %p88 = por %p86, %p87
    %p89 = scmp.ne.s32.totalorder %s80, %s81
    %p90 = scmp.eq.s32.totalorder %s28, 0
    %p91 = por %p89, %p90
    %p92 = scmp.ne.s32.totalorder %s80, %s81
    %p93 = scmp.eq.s32.totalorder %s29, 1
    %p94 = por %p92, %p93
    %p96 = scmp.ne.s32.totalorder %s81, %s95
    %p97 = scmp.eq.s32.totalorder %s29, 0
    %p98 = por %p96, %p97
    %s100 = sadd.s32 %s99, 1
    %p103 = scmp.eq.s32.totalorder %s23, 1
    %p104 = scmp.ne.s32.totalorder %s99, %s101
    %p105 = scmp.eq.s32.totalorder %s23, 0
    %p106 = por %p104, %p105
    %p107 = scmp.ne.s32.totalorder %s99, %s101
    %p108 = scmp.eq.s32.totalorder %s28, 1
    %p109 = por %p107, %p108
    %p110 = scmp.ne.s32.totalorder %s101, %s102
    %p111 = scmp.eq.s32.totalorder %s28, 0
    %p112 = por %p110, %p111
    %p113 = scmp.ne.s32.totalorder %s101, %s102
    %p114 = scmp.eq.s32.totalorder %s29, 1
    %p115 = por %p113, %p114
    %p117 = scmp.ne.s32.totalorder %s102, %s116
    %p118 = scmp.eq.s32.totalorder %s29, 0
    %p119 = por %p117, %p118
    %s121 = sadd.s32 %s120, 1
    %p124 = scmp.eq.s32.totalorder %s23, 1
    %p125 = scmp.ne.s32.totalorder %s120, %s122
    %p126 = scmp.eq.s32.totalorder %s23, 0
    %p127 = por %p125, %p126
    %p128 = scmp.ne.s32.totalorder %s120, %s122
    %p129 = scmp.eq.s32.totalorder %s28, 1
    %p130 = por %p128, %p129
    %p131 = scmp.ne.s32.totalorder %s122, %s123
    %p132 = scmp.eq.s32.totalorder %s28, 0
    %p133 = por %p131, %p132
    %p134 = scmp.ne.s32.totalorder %s122, %s123
    %p135 = scmp.eq.s32.totalorder %s29, 1
    %p136 = por %p134, %p135
    %p138 = scmp.ne.s32.totalorder %s123, %s137
    %p139 = scmp.eq.s32.totalorder %s29, 0
    %p140 = por %p138, %p139
    %s142 = sadd.s32 %s141, 1
    %p145 = scmp.eq.s32.totalorder %s23, 1
    %p146 = scmp.ne.s32.totalorder %s141, %s143
    %p147 = scmp.eq.s32.totalorder %s23, 0
    %p148 = por %p146, %p147
    %p149 = scmp.ne.s32.totalorder %s141, %s143
    %p150 = scmp.eq.s32.totalorder %s28, 1
    %p151 = por %p149, %p150
    %p152 = scmp.ne.s32.totalorder %s143, %s144
    %p153 = scmp.eq.s32.totalorder %s28, 0
    %p154 = por %p152, %p153
    %p155 = scmp.ne.s32.totalorder %s143, %s144
    %p156 = scmp.eq.s32.totalorder %s29, 1
    %p157 = por %p155, %p156
    %p159 = scmp.ne.s32.totalorder %s144, %s158
    %p160 = scmp.eq.s32.totalorder %s29, 0
    %p161 = por %p159, %p160
    %s163 = sadd.s32 %s162, 1
    %p166 = scmp.eq.s32.totalorder %s23, 1
    %p167 = scmp.ne.s32.totalorder %s162, %s164
    %p168 = scmp.eq.s32.totalorder %s23, 0
    %p169 = por %p167, %p168
    %p170 = scmp.ne.s32.totalorder %s162, %s164
    %p171 = scmp.eq.s32.totalorder %s28, 1
    %p172 = por %p170, %p171
    %p173 = scmp.ne.s32.totalorder %s164, %s165
    %p174 = scmp.eq.s32.totalorder %s28, 0
    %p175 = por %p173, %p174
    %p176 = scmp.ne.s32.totalorder %s164, %s165
    %p177 = scmp.eq.s32.totalorder %s29, 1
    %p178 = por %p176, %p177
    %p180 = scmp.ne.s32.totalorder %s165, %s179
    %p181 = scmp.eq.s32.totalorder %s29, 0
    %p182 = por %p180, %p181
    %s184 = sadd.s32 %s183, 1
    %p187 = scmp.eq.s32.totalorder %s23, 1
    %p188 = scmp.ne.s32.totalorder %s183, %s185
    %p189 = scmp.eq.s32.totalorder %s23, 0
    %p190 = por %p188, %p189
    %p191 = scmp.ne.s32.totalorder %s183, %s185
    %p192 = scmp.eq.s32.totalorder %s28, 1
    %p193 = por %p191, %p192
    %p194 = scmp.ne.s32.totalorder %s185, %s186
    %p195 = scmp.eq.s32.totalorder %s28, 0
    %p196 = por %p194, %p195
    %p197 = scmp.ne.s32.totalorder %s185, %s186
    %p198 = scmp.eq.s32.totalorder %s29, 1
    %p199 = por %p197, %p198
    %p201 = scmp.ne.s32.totalorder %s186, %s200
    %p202 = scmp.eq.s32.totalorder %s29, 0
    %p203 = por %p201, %p202
    %s205 = sadd.s32 %s204, 1
    %p208 = scmp.eq.s32.totalorder %s23, 1
    %p209 = scmp.ne.s32.totalorder %s204, %s206
    %p210 = scmp.eq.s32.totalorder %s23, 0
    %p211 = por %p209, %p210
    %p212 = scmp.ne.s32.totalorder %s204, %s206
    %p213 = scmp.eq.s32.totalorder %s28, 1
    %p214 = por %p212, %p213
    %p215 = scmp.ne.s32.totalorder %s206, %s207
    %p216 = scmp.eq.s32.totalorder %s28, 0
    %p217 = por %p215, %p216
    %p218 = scmp.ne.s32.totalorder %s206, %s207
    %p219 = scmp.eq.s32.totalorder %s29, 1
    %p220 = por %p218, %p219
    %p222 = scmp.ne.s32.totalorder %s207, %s221
    %p223 = scmp.eq.s32.totalorder %s29, 0
    %p224 = por %p222, %p223
    %s226 = sadd.s32 %s225, 1
    %p229 = scmp.eq.s32.totalorder %s23, 1
    %p230 = scmp.ne.s32.totalorder %s225, %s227
    %p231 = scmp.eq.s32.totalorder %s23, 0
    %p232 = por %p230, %p231
    %p233 = scmp.ne.s32.totalorder %s225, %s227
    %p234 = scmp.eq.s32.totalorder %s28, 1
    %p235 = por %p233, %p234
    %p236 = scmp.ne.s32.totalorder %s227, %s228
    %p237 = scmp.eq.s32.totalorder %s28, 0
    %p238 = por %p236, %p237
    %p239 = scmp.ne.s32.totalorder %s227, %s228
    %p240 = scmp.eq.s32.totalorder %s29, 1
    %p241 = por %p239, %p240
    %p243 = scmp.ne.s32.totalorder %s228, %s242
    %p244 = scmp.eq.s32.totalorder %s29, 0
    %p245 = por %p243, %p244
    %s247 = sadd.s32 %s246, 1
    %p250 = scmp.eq.s32.totalorder %s23, 1
    %p251 = scmp.ne.s32.totalorder %s246, %s248
    %p252 = scmp.eq.s32.totalorder %s23, 0
    %p253 = por %p251, %p252
    %p254 = scmp.ne.s32.totalorder %s246, %s248
    %p255 = scmp.eq.s32.totalorder %s28, 1
    %p256 = por %p254, %p255
    %p257 = scmp.ne.s32.totalorder %s248, %s249
    %p258 = scmp.eq.s32.totalorder %s28, 0
    %p259 = por %p257, %p258
    %p260 = scmp.ne.s32.totalorder %s248, %s249
    %p261 = scmp.eq.s32.totalorder %s29, 1
    %p262 = por %p260, %p261
    %p264 = scmp.ne.s32.totalorder %s249, %s263
    %p265 = scmp.eq.s32.totalorder %s29, 0
    %p266 = por %p264, %p265
    %s268 = sadd.s32 %s267, 1
    %p271 = scmp.eq.s32.totalorder %s23, 1
    %p272 = scmp.ne.s32.totalorder %s267, %s269
    %p273 = scmp.eq.s32.totalorder %s23, 0
    %p274 = por %p272, %p273
    %p275 = scmp.ne.s32.totalorder %s267, %s269
    %p276 = scmp.eq.s32.totalorder %s28, 1
    %p277 = por %p275, %p276
    %p278 = scmp.ne.s32.totalorder %s269, %s270
    %p279 = scmp.eq.s32.totalorder %s28, 0
    %p280 = por %p278, %p279
    %p281 = scmp.ne.s32.totalorder %s269, %s270
    %p282 = scmp.eq.s32.totalorder %s29, 1
    %p283 = por %p281, %p282
    %p285 = scmp.ne.s32.totalorder %s270, %s284
    %p286 = scmp.eq.s32.totalorder %s29, 0
    %p287 = por %p285, %p286
    %s289 = sadd.s32 %s288, 1
    %p292 = scmp.eq.s32.totalorder %s23, 1
    %p293 = scmp.ne.s32.totalorder %s288, %s290
    %p294 = scmp.eq.s32.totalorder %s23, 0
    %p295 = por %p293, %p294
    %p296 = scmp.ne.s32.totalorder %s288, %s290
    %p297 = scmp.eq.s32.totalorder %s28, 1
    %p298 = por %p296, %p297
    %p299 = scmp.ne.s32.totalorder %s290, %s291
    %p300 = scmp.eq.s32.totalorder %s28, 0
    %p301 = por %p299, %p300
    %p302 = scmp.ne.s32.totalorder %s290, %s291
    %p303 = scmp.eq.s32.totalorder %s29, 1
    %p304 = por %p302, %p303
    %p306 = scmp.ne.s32.totalorder %s291, %s305
    %p307 = scmp.eq.s32.totalorder %s29, 0
    %p308 = por %p306, %p307
    %s310 = sadd.s32 %s309, 1
    %p313 = scmp.eq.s32.totalorder %s23, 1
    %p314 = scmp.ne.s32.totalorder %s309, %s311
    %p315 = scmp.eq.s32.totalorder %s23, 0
    %p316 = por %p314, %p315
    %p317 = scmp.ne.s32.totalorder %s309, %s311
    %p318 = scmp.eq.s32.totalorder %s28, 1
    %p319 = por %p317, %p318
    %p320 = scmp.ne.s32.totalorder %s311, %s312
    %p321 = scmp.eq.s32.totalorder %s28, 0
    %p322 = por %p320, %p321
    %p323 = scmp.ne.s32.totalorder %s311, %s312
    %p324 = scmp.eq.s32.totalorder %s29, 1
    %p325 = por %p323, %p324
    %p327 = scmp.ne.s32.totalorder %s312, %s326
    %p328 = scmp.eq.s32.totalorder %s29, 0
    %p329 = por %p327, %p328
    %s331 = sadd.s32 %s330, 1
    %p334 = scmp.eq.s32.totalorder %s23, 1
    %p335 = scmp.ne.s32.totalorder %s330, %s332
    %p336 = scmp.eq.s32.totalorder %s23, 0
    %p337 = por %p335, %p336
    %p338 = scmp.ne.s32.totalorder %s330, %s332
    %p339 = scmp.eq.s32.totalorder %s28, 1
    %p340 = por %p338, %p339
    %p341 = scmp.ne.s32.totalorder %s332, %s333
    %p342 = scmp.eq.s32.totalorder %s28, 0
    %p343 = por %p341, %p342
    %p344 = scmp.ne.s32.totalorder %s332, %s333
    %p345 = scmp.eq.s32.totalorder %s29, 1
    %p346 = por %p344, %p345
    %p348 = scmp.ne.s32.totalorder %s333, %s347
    %p349 = scmp.eq.s32.totalorder %s29, 0
    %p350 = por %p348, %p349
    %s352 = sadd.s32 %s351, 1
    %p355 = scmp.eq.s32.totalorder %s23, 1
    %p356 = scmp.ne.s32.totalorder %s351, %s353
    %p357 = scmp.eq.s32.totalorder %s23, 0
    %p358 = por %p356, %p357
    %p359 = scmp.ne.s32.totalorder %s351, %s353
    %p360 = scmp.eq.s32.totalorder %s28, 1
    %p361 = por %p359, %p360
    %p362 = scmp.ne.s32.totalorder %s353, %s354
    %p363 = scmp.eq.s32.totalorder %s28, 0
    %p364 = por %p362, %p363
    %p365 = scmp.ne.s32.totalorder %s353, %s354
    %p366 = scmp.eq.s32.totalorder %s29, 1
    %p367 = por %p365, %p366
    %p369 = scmp.ne.s32.totalorder %s354, %s368
    %p370 = scmp.eq.s32.totalorder %s29, 0
    %p371 = por %p369, %p370
    %s373 = sadd.s32 %s372, 1
    %p376 = scmp.eq.s32.totalorder %s23, 1
    %p377 = scmp.ne.s32.totalorder %s372, %s374
    %p378 = scmp.eq.s32.totalorder %s23, 0
    %p379 = por %p377, %p378
    %p380 = scmp.ne.s32.totalorder %s372, %s374
    %p381 = scmp.eq.s32.totalorder %s28, 1
    %p382 = por %p380, %p381
    %p383 = scmp.ne.s32.totalorder %s374, %s375
    %p384 = scmp.eq.s32.totalorder %s28, 0
    %p385 = por %p383, %p384
    %p386 = scmp.ne.s32.totalorder %s374, %s375
    %p387 = scmp.eq.s32.totalorder %s29, 1
    %p388 = por %p386, %p387
    %p390 = scmp.ne.s32.totalorder %s375, %s389
    %p391 = scmp.eq.s32.totalorder %s29, 0
    %p392 = por %p390, %p391
    %s393 = ssub.s32 %s23, %s30
    %p394 = scmp.eq.s32.totalorder %s393, 0
    %s396 = sadd.s32 %s395, 1
    %s397 = scalar_select %p394, %s395, %s396
    %p400 = pneg %p394
    %p401 = scmp.eq.s32.totalorder %s23, 1
    %p402 = por %p400, %p401
    %p403 = scmp.ne.s32.totalorder %s395, %s398
    %p404 = scmp.eq.s32.totalorder %s23, 0
    %p405 = por %p403, %p404
    %p406 = scmp.ne.s32.totalorder %s395, %s398
    %p407 = scmp.eq.s32.totalorder %s28, 1
    %p408 = por %p406, %p407
    %p409 = scmp.ne.s32.totalorder %s398, %s399
    %p410 = scmp.eq.s32.totalorder %s28, 0
    %p411 = por %p409, %p410
    %p412 = scmp.ne.s32.totalorder %s398, %s399
    %p413 = scmp.eq.s32.totalorder %s29, 1
    %p414 = por %p412, %p413
    %p416 = scmp.ne.s32.totalorder %s399, %s415
    %p417 = scmp.eq.s32.totalorder %s29, 0
    %p418 = por %p416, %p417
    %p419 = scmp.le.s32.totalorder 1, %s23
    %p420 = scmp.lt.s32.totalorder %s23, 3
    %p421 = pnand %p419, %p420
    %p422 = pneg %p421
    // Predicated region
    $region9: #{_forward_impl.3} parent=5 // pred_check
      _
    $region10: #{_forward_impl.3} parent=5 // pred_check_branch
      %424 = sbr.rel (%p421) target = $region12
    $region11: #{_forward_impl.3} parent=5 // pred_region
      %s425 = ssub.s32 %s23, 1
      // Predicated region
      $region13: #{_forward_impl.3} parent=11 // pred_check
        %p426 = pneg %p70
      $region14: #{_forward_impl.3} parent=11 // pred_check_branch
        %428 = sbr.rel (%p426) target = $region16
      $region15: #{_forward_impl.3} parent=11 // pred_region
        _
      $region16: #{_forward_impl.3} parent=11 // pred_fallthru
        _
      // Predicated region
      $region17: #{_forward_impl.3} parent=11 // pred_check
        %p429 = pneg %p91
      $region18: #{_forward_impl.3} parent=11 // pred_check_branch
        %431 = sbr.rel (%p429) target = $region20
      $region19: #{_forward_impl.3} parent=11 // pred_region
        _
      $region20: #{_forward_impl.3} parent=11 // pred_fallthru
        _
      // Predicated region
      $region21: #{_forward_impl.3} parent=11 // pred_check
        %p432 = pneg %p112
      $region22: #{_forward_impl.3} parent=11 // pred_check_branch
        %434 = sbr.rel (%p432) target = $region24
      $region23: #{_forward_impl.3} parent=11 // pred_region
        _
      $region24: #{_forward_impl.3} parent=11 // pred_fallthru
        _
      // Predicated region
      $region25: #{_forward_impl.3} parent=11 // pred_check
        %p435 = pneg %p133
      $region26: #{_forward_impl.3} parent=11 // pred_check_branch
        %437 = sbr.rel (%p435) target = $region28
      $region27: #{_forward_impl.3} parent=11 // pred_region
        _
      $region28: #{_forward_impl.3} parent=11 // pred_fallthru
        _
      // Predicated region
      $region29: #{_forward_impl.3} parent=11 // pred_check
        %p438 = pneg %p154
      $region30: #{_forward_impl.3} parent=11 // pred_check_branch
        %440 = sbr.rel (%p438) target = $region32
      $region31: #{_forward_impl.3} parent=11 // pred_region
        _
      $region32: #{_forward_impl.3} parent=11 // pred_fallthru
        _
      // Predicated region
      $region33: #{_forward_impl.3} parent=11 // pred_check
        %p441 = pneg %p175
      $region34: #{_forward_impl.3} parent=11 // pred_check_branch
        %443 = sbr.rel (%p441) target = $region36
      $region35: #{_forward_impl.3} parent=11 // pred_region
        _
      $region36: #{_forward_impl.3} parent=11 // pred_fallthru
        _
      // Predicated region
      $region37: #{_forward_impl.3} parent=11 // pred_check
        %p444 = pneg %p196
      $region38: #{_forward_impl.3} parent=11 // pred_check_branch
        %446 = sbr.rel (%p444) target = $region40
      $region39: #{_forward_impl.3} parent=11 // pred_region
        _
      $region40: #{_forward_impl.3} parent=11 // pred_fallthru
        _
      // Predicated region
      $region41: #{_forward_impl.3} parent=11 // pred_check
        %p447 = pneg %p217
      $region42: #{_forward_impl.3} parent=11 // pred_check_branch
        %449 = sbr.rel (%p447) target = $region44
      $region43: #{_forward_impl.3} parent=11 // pred_region
        _
      $region44: #{_forward_impl.3} parent=11 // pred_fallthru
        _
      // Predicated region
      $region45: #{_forward_impl.3} parent=11 // pred_check
        %p450 = pneg %p238
      $region46: #{_forward_impl.3} parent=11 // pred_check_branch
        %452 = sbr.rel (%p450) target = $region48
      $region47: #{_forward_impl.3} parent=11 // pred_region
        _
      $region48: #{_forward_impl.3} parent=11 // pred_fallthru
        _
      // Predicated region
      $region49: #{_forward_impl.3} parent=11 // pred_check
        %p453 = pneg %p259
      $region50: #{_forward_impl.3} parent=11 // pred_check_branch
        %455 = sbr.rel (%p453) target = $region52
      $region51: #{_forward_impl.3} parent=11 // pred_region
        _
      $region52: #{_forward_impl.3} parent=11 // pred_fallthru
        _
      // Predicated region
      $region53: #{_forward_impl.3} parent=11 // pred_check
        %p456 = pneg %p280
      $region54: #{_forward_impl.3} parent=11 // pred_check_branch
        %458 = sbr.rel (%p456) target = $region56
      $region55: #{_forward_impl.3} parent=11 // pred_region
        _
      $region56: #{_forward_impl.3} parent=11 // pred_fallthru
        _
      // Predicated region
      $region57: #{_forward_impl.3} parent=11 // pred_check
        %p459 = pneg %p301
      $region58: #{_forward_impl.3} parent=11 // pred_check_branch
        %461 = sbr.rel (%p459) target = $region60
      $region59: #{_forward_impl.3} parent=11 // pred_region
        _
      $region60: #{_forward_impl.3} parent=11 // pred_fallthru
        _
      // Predicated region
      $region61: #{_forward_impl.3} parent=11 // pred_check
        %p462 = pneg %p322
      $region62: #{_forward_impl.3} parent=11 // pred_check_branch
        %464 = sbr.rel (%p462) target = $region64
      $region63: #{_forward_impl.3} parent=11 // pred_region
        _
      $region64: #{_forward_impl.3} parent=11 // pred_fallthru
        _
      // Predicated region
      $region65: #{_forward_impl.3} parent=11 // pred_check
        %p465 = pneg %p343
      $region66: #{_forward_impl.3} parent=11 // pred_check_branch
        %467 = sbr.rel (%p465) target = $region68
      $region67: #{_forward_impl.3} parent=11 // pred_region
        _
      $region68: #{_forward_impl.3} parent=11 // pred_fallthru
        _
      // Predicated region
      $region69: #{_forward_impl.3} parent=11 // pred_check
        %p468 = pneg %p364
      $region70: #{_forward_impl.3} parent=11 // pred_check_branch
        %470 = sbr.rel (%p468) target = $region72
      $region71: #{_forward_impl.3} parent=11 // pred_region
        _
      $region72: #{_forward_impl.3} parent=11 // pred_fallthru
        _
      // Predicated region
      $region73: #{_forward_impl.3} parent=11 // pred_check
        %p471 = pneg %p385
      $region74: #{_forward_impl.3} parent=11 // pred_check_branch
        %473 = sbr.rel (%p471) target = $region76
      $region75: #{_forward_impl.3} parent=11 // pred_region
        _
      $region76: #{_forward_impl.3} parent=11 // pred_fallthru
        _
    $region12: #{_forward_impl.3} parent=5 // pred_fallthru
      _
    %p474 = scmp.lt.s32.totalorder %s23, 2
    // Predicated region
    $region77: #{_forward_impl.3} parent=5 // pred_check
      %p475 = pneg %p474
    $region78: #{_forward_impl.3} parent=5 // pred_check_branch
      %477 = sbr.rel (%p475) target = $region80
    $region79: #{_forward_impl.3} parent=5 // pred_region
      // Predicated region
      $region81: #{_forward_impl.3} parent=79 // pred_check
        %p478 = pneg %p43
      $region82: #{_forward_impl.3} parent=79 // pred_check_branch
        %480 = sbr.rel (%p478) target = $region84
      $region83: #{_forward_impl.3} parent=79 // pred_region
        %p481 = scmp.lt.s32.totalorder %s23, 1
        %s482 = scalar_select %p481, %s23, 1
        %s483 = smul.addr %s482, 2
        %s484 = smul.addr %s483, 4
        %s485 = scalar_lea.vmem %s0, %s484
      $region84: #{_forward_impl.3} parent=79 // pred_fallthru
        _
    $region80: #{_forward_impl.3} parent=5 // pred_fallthru
      _
    %p486 = scmp.le.s32.totalorder 1, %s23
    %p487 = scmp.lt.s32.totalorder %s23, 3
    %p488 = pnand %p486, %p487
    %p489 = pneg %p488
    // Predicated region
    $region85: #{_forward_impl.3} parent=5 // pred_check
      _
    $region86: #{_forward_impl.3} parent=5 // pred_check_branch
      %491 = sbr.rel (%p488) target = $region88
    $region87: #{_forward_impl.3} parent=5 // pred_region
      %s492 = ssub.s32 %s23, 1
      %p493 = scmp.lt.s32.totalorder %s28, 1
      %s494 = scalar_select %p493, %s28, 1
      %s495 = smul.addr %s494, 2
      %s496 = smul.addr %s495, 4
      %s497 = scalar_lea.vmem %s0, %s496
      %p498 = pneg %p49
      %p499 = pneg %p46
      %p500 = pneg %p70
      %p501 = pneg %p67
      %p502 = pneg %p91
      %p503 = pneg %p88
      %p504 = pneg %p112
      %p505 = pneg %p109
      %p506 = pneg %p133
      %p507 = pneg %p130
      %p508 = pneg %p154
      %p509 = pneg %p151
      %p510 = pneg %p175
      %p511 = pneg %p172
      %p512 = pneg %p196
      %p513 = pneg %p193
      %p514 = pneg %p217
      %p515 = pneg %p214
      %p516 = pneg %p238
      %p517 = pneg %p235
      %p518 = pneg %p259
      %p519 = pneg %p256
      %p520 = pneg %p280
      %p521 = pneg %p277
      %p522 = pneg %p301
      %p523 = pneg %p298
      %p524 = pneg %p322
      %p525 = pneg %p319
      %p526 = pneg %p343
      %p527 = pneg %p340
      %p528 = pneg %p364
      %p529 = pneg %p361
      %p530 = pneg %p385
      %p531 = pneg %p382
      %p532 = pneg %p411
      %p533 = pneg %p408
      %p534 = scmp.lt.s32.totalorder %s28, 1
      %s535 = scalar_select %p534, %s28, 1
      %s536 = smul.addr %s535, 8
      %s537 = scalar_lea.vmem %s17, %s536
      %p538 = scmp.lt.s32.totalorder %s28, 1
      %s539 = scalar_select %p538, %s28, 1
      %s540 = smul.addr %s539, 2
      %s541 = smul.addr %s540, 4
      %s542 = scalar_lea.vmem %s0, %s541
      %p543 = scmp.lt.s32.totalorder %s28, 1
      %s544 = scalar_select %p543, %s28, 1
      %s545 = smul.addr %s544, 8
      %s546 = scalar_lea.vmem %s17, %s545
      %v548 = vld [vmem:[%s542] sm:$0x77]
      %v549 = vld [vmem:[%s1] sm:$0xf]
      %v550 = vld [vmem:[%s1 + $0x4] sm:$0xf]
      %v551 = vld [vmem:[%s1 + $0x8] sm:$0xf]
      %v552 = vld [vmem:[%s1 + $0xc] sm:$0xf]
      %v553 = vld [vmem:[%s1 + $0x10] sm:$0xf]
      %v554 = vld [vmem:[%s1 + $0x14] sm:$0xf]
      %v555 = vld [vmem:[%s1 + $0x18] sm:$0xf]
      %v556 = vld [vmem:[%s1 + $0x1c] sm:$0xf]
      %v557 = vld [vmem:[%s1 + $0x20] sm:$0xf]
      %v558 = vld [vmem:[%s1 + $0x24] sm:$0xf]
      %v559 = vld [vmem:[%s1 + $0x28] sm:$0xf]
      %v560 = vld [vmem:[%s1 + $0x2c] sm:$0xf]
      %v561 = vld [vmem:[%s1 + $0x30] sm:$0xf]
      %v562 = vld [vmem:[%s1 + $0x34] sm:$0xf]
      %v563 = vld [vmem:[%s1 + $0x38] sm:$0xf]
      %v564 = vld [vmem:[%s1 + $0x3c] sm:$0xf]
      %v565 = vld [vmem:[%s1 + $0x40] sm:$0xf]
      %v566 = vld [vmem:[%s1 + $0x44] sm:$0xf]
      %v567 = vld [vmem:[%s1 + $0x48] sm:$0xf]
      %v568 = vld [vmem:[%s1 + $0x4c] sm:$0xf]
      %v569 = vld [vmem:[%s1 + $0x50] sm:$0xf]
      %v570 = vld [vmem:[%s1 + $0x54] sm:$0xf]
      %v571 = vld [vmem:[%s1 + $0x58] sm:$0xf]
      %v572 = vld [vmem:[%s1 + $0x5c] sm:$0xf]
      %v573 = vld [vmem:[%s1 + $0x60] sm:$0xf]
      %v574 = vld [vmem:[%s1 + $0x64] sm:$0xf]
      %v575 = vld [vmem:[%s1 + $0x68] sm:$0xf]
      %v576 = vld [vmem:[%s1 + $0x6c] sm:$0xf]
      %v577 = vld [vmem:[%s1 + $0x70] sm:$0xf]
      %v578 = vld [vmem:[%s1 + $0x74] sm:$0xf]
      %v579 = vld [vmem:[%s1 + $0x78] sm:$0xf]
      %v580 = vld [vmem:[%s1 + $0x7c] sm:$0xf]
      %v581 = vld [vmem:[%s2] sm:$0x1f]
      %v583 = vunpack.c.l.b16 %v548
      %v584 = vunpack.c.h.b16 %v548
      %v585 = vpack.c.b16 %v583, %v583
      %v586 = vpack.c.b16 %v584, %v584
      %v621 = vunpack.c.l.b16 %v549
      %v622 = vunpack.c.l.b16 %v550
      %v623 = vunpack.c.l.b16 %v551
      %v624 = vunpack.c.l.b16 %v552
      %v625 = vunpack.c.l.b16 %v553
      %v626 = vunpack.c.l.b16 %v554
      %v627 = vunpack.c.l.b16 %v555
      %v628 = vunpack.c.l.b16 %v556
      %v629 = vunpack.c.l.b16 %v557
      %v630 = vunpack.c.l.b16 %v558
      %v631 = vunpack.c.l.b16 %v559
      %v632 = vunpack.c.l.b16 %v560
      %v633 = vunpack.c.l.b16 %v561
      %v634 = vunpack.c.l.b16 %v562
      %v635 = vunpack.c.l.b16 %v563
      %v636 = vunpack.c.l.b16 %v564
      %v637 = vunpack.c.l.b16 %v565
      %v638 = vunpack.c.l.b16 %v566
      %v639 = vunpack.c.l.b16 %v567
      %v640 = vunpack.c.l.b16 %v568
      %v641 = vunpack.c.l.b16 %v569
      %v642 = vunpack.c.l.b16 %v570
      %v643 = vunpack.c.l.b16 %v571
      %v644 = vunpack.c.l.b16 %v572
      %v645 = vunpack.c.l.b16 %v573
      %v646 = vunpack.c.l.b16 %v574
      %v647 = vunpack.c.l.b16 %v575
      %v648 = vunpack.c.l.b16 %v576
      %v649 = vunpack.c.l.b16 %v577
      %v650 = vunpack.c.l.b16 %v578
      %v651 = vunpack.c.l.b16 %v579
      %v652 = vunpack.c.l.b16 %v580
      %v653 = vpack.c.b16 %v622, %v621
      %v654 = vpack.c.b16 %v624, %v623
      %v655 = vpack.c.b16 %v626, %v625
      %v656 = vpack.c.b16 %v628, %v627
      %v657 = vpack.c.b16 %v630, %v629
      %v658 = vpack.c.b16 %v632, %v631
      %v659 = vpack.c.b16 %v634, %v633
      %v660 = vpack.c.b16 %v636, %v635
      %v661 = vpack.c.b16 %v638, %v637
      %v662 = vpack.c.b16 %v640, %v639
      %v663 = vpack.c.b16 %v642, %v641
      %v664 = vpack.c.b16 %v644, %v643
      %v665 = vpack.c.b16 %v646, %v645
      %v666 = vpack.c.b16 %v648, %v647
      %v667 = vpack.c.b16 %v650, %v649
      %v668 = vpack.c.b16 %v652, %v651
      %685 = vmatprep.subr.bf16.mxu0 0
      %686 = vmatpush1.bf16.msra.mxu0 %v660
      %687 = vmatprep.subr.bf16.mxu0 0
      %688 = vmatpush1.bf16.msra.mxu0 %v659
      %689 = vmatprep.subr.bf16.mxu0 0
      %690 = vmatpush1.bf16.msra.mxu0 %v658
      %691 = vmatprep.subr.bf16.mxu0 0
      %692 = vmatpush1.bf16.msra.mxu0 %v657
      %693 = vmatprep.subr.bf16.mxu0 0
      %694 = vmatpush1.bf16.msra.mxu0 %v656
      %695 = vmatprep.subr.bf16.mxu0 0
      %696 = vmatpush1.bf16.msra.mxu0 %v655
      %697 = vmatprep.subr.bf16.mxu0 0
      %698 = vmatpush1.bf16.msra.mxu0 %v654
      %699 = vmatprep.subr.bf16.mxu0 0
      %700 = vmatpush1.bf16.msra.mxu0 %v653
      %701 = vmatprep.subr.bf16.mxu0 0
      %702 = vmatpush2.bf16.msra.mxu0 %v668
      %703 = vmatprep.subr.bf16.mxu0 0
      %704 = vmatpush2.bf16.msra.mxu0 %v667
      %705 = vmatprep.subr.bf16.mxu0 0
      %706 = vmatpush2.bf16.msra.mxu0 %v666
      %707 = vmatprep.subr.bf16.mxu0 0
      %708 = vmatpush2.bf16.msra.mxu0 %v665
      %709 = vmatprep.subr.bf16.mxu0 0
      %710 = vmatpush2.bf16.msra.mxu0 %v664
      %711 = vmatprep.subr.bf16.mxu0 0
      %712 = vmatpush2.bf16.msra.mxu0 %v663
      %713 = vmatprep.subr.bf16.mxu0 0
      %714 = vmatpush2.bf16.msra.mxu0 %v662
      %715 = vmatprep.subr.bf16.mxu0 0
      %716 = vmatpush2.bf16.msra.mxu0 %v661
      %717 = vmatprep.mubr.bf16.mxu0 %v586
      %718 = vmatmul.mubr.bf16.gmra.mxu0 %v585
      %v719 = vpop.f32.mrf.mxu0
      %v720 = vadd.f32 %v581, %v719
      %v721 = vpop.f32.mrf.mxu0
      %v722 = vpop.f32.mrf.mxu0
      %v723 = vpop.f32.mrf.mxu0
      %724 = vdwg.mxu0
      %v725 = vld [vmem:[%s3] sm:$0x1]
      %v726 = vld [vmem:[%s4] sm:$0x1]
      %vm727 = vcmask 258048
      %v728 = vsel %vm727, %v720, 0.0
      %729 = vadd.xlane.f32.xlu0 %v728
      %v730 = vpop.xlane.xlu0 %729
      %v731 = vrcp.pop 32.0
      %v732 = vmul.f32 %v730, %v731
      %v733 = vmul.f32 %v720, %v720
      %v734 = vsel %vm727, %v733, 0.0
      %735 = vadd.xlane.f32.xlu0 %v734
      %v736 = vpop.xlane.xlu0 %735
      %v737 = vmul.f32 %v736, %v731
      %v738 = vmul.f32 %v732, %v732
      %v739 = vsub.f32 %v737, %v738
      %v740 = vsub.f32 %v720, %v732
      %v741 = vadd.f32 %v739, 1e-05
      %v742 = vrsqrt.pop %v741
      %v743 = vmul.f32 %v740, %v742
      %v745 = vlaneseq
      %v746 = vshrl.u32 %v745, 7
      %v747 = vsub.s32 0, %v746
      %v748 = vrot.slane %v725, %v747
      %v750 = vmul.f32 %v743, %v748
      %v752 = vlaneseq
      %v753 = vshrl.u32 %v752, 7
      %v754 = vsub.s32 0, %v753
      %v755 = vrot.slane %v726, %v754
      %v757 = vadd.f32 %v750, %v755
      %v758 = vld [vmem:[%s5] sm:$0x1]
      %v759 = vld [vmem:[%s6] sm:$0x1]
      %v760 = vsel %vm727, %v757, 0.0
      %761 = vadd.xlane.f32.xlu0 %v760
      %v762 = vpop.xlane.xlu0 %761
      %v763 = vmul.f32 %v762, %v731
      %v764 = vmul.f32 %v757, %v757
      %v765 = vsel %vm727, %v764, 0.0
      %766 = vadd.xlane.f32.xlu0 %v765
      %v767 = vpop.xlane.xlu0 %766
      %v768 = vmul.f32 %v767, %v731
      %v769 = vmul.f32 %v763, %v763
      %v770 = vsub.f32 %v768, %v769
      %v771 = vsub.f32 %v757, %v763
      %v772 = vadd.f32 %v770, 1e-05
      %v773 = vrsqrt.pop %v772
      %v774 = vmul.f32 %v771, %v773
      %v776 = vlaneseq
      %v777 = vshrl.u32 %v776, 7
      %v778 = vsub.s32 0, %v777
      %v779 = vrot.slane %v758, %v778
      %v781 = vmul.f32 %v774, %v779
      %v783 = vlaneseq
      %v784 = vshrl.u32 %v783, 7
      %v785 = vsub.s32 0, %v784
      %v786 = vrot.slane %v759, %v785
      %v788 = vadd.f32 %v781, %v786
      %v789 = vld [vmem:[%s7] sm:$0xf]
      %v790 = vld [vmem:[%s7 + $0x4] sm:$0xf]
      %v791 = vld [vmem:[%s7 + $0x8] sm:$0xf]
      %v792 = vld [vmem:[%s7 + $0xc] sm:$0xf]
      %v793 = vpack.c.bf16 %v788, %v788
      %v794 = vld [vmem:[%s8] sm:$0x1]
      %v796 = vlaneseq
      %v797 = vshrl.u32 %v796, 7
      %v798 = vsub.s32 0, %v797
      %v799 = vrot.slane %v794, %v798
      %v805 = vunpack.c.l.b16 %v789
      %v806 = vunpack.c.l.b16 %v790
      %v807 = vunpack.c.l.b16 %v791
      %v808 = vunpack.c.l.b16 %v792
      %v809 = vpack.c.b16 %v806, %v805
      %v810 = vpack.c.b16 %v808, %v807
      %vm813 = vcmask 261120
      %v815 = vsel %vm813, %v793, 0
      %817 = vmatprep.subr.bf16.mxu0 0
      %818 = vmatpush1.bf16.msra.mxu0 0
      %819 = vmatprep.subr.bf16.mxu0 0
      %820 = vmatpush1.bf16.msra.mxu0 0
      %821 = vmatprep.subr.bf16.mxu0 0
      %822 = vmatpush1.bf16.msra.mxu0 0
      %823 = vmatprep.subr.bf16.mxu0 0
      %824 = vmatpush1.bf16.msra.mxu0 0
      %825 = vmatprep.subr.bf16.mxu0 0
      %826 = vmatpush1.bf16.msra.mxu0 0
      %827 = vmatprep.subr.bf16.mxu0 0
      %828 = vmatpush1.bf16.msra.mxu0 0
      %829 = vmatprep.subr.bf16.mxu0 0
      %830 = vmatpush1.bf16.msra.mxu0 %v810
      %831 = vmatprep.subr.bf16.mxu0 0
      %832 = vmatpush1.bf16.msra.mxu0 %v809
      %833 = vmatprep.subr.bf16.mxu0 0
      %834 = vmatpush2.bf16.msra.mxu0 0
      %835 = vmatprep.subr.bf16.mxu0 0
      %836 = vmatpush2.bf16.msra.mxu0 0
      %837 = vmatprep.subr.bf16.mxu0 0
      %838 = vmatpush2.bf16.msra.mxu0 0
      %839 = vmatprep.subr.bf16.mxu0 0
      %840 = vmatpush2.bf16.msra.mxu0 0
      %841 = vmatprep.subr.bf16.mxu0 0
      %842 = vmatpush2.bf16.msra.mxu0 0
      %843 = vmatprep.subr.bf16.mxu0 0
      %844 = vmatpush2.bf16.msra.mxu0 0
      %845 = vmatprep.subr.bf16.mxu0 0
      %846 = vmatpush2.bf16.msra.mxu0 0
      %847 = vmatprep.subr.bf16.mxu0 0
      %848 = vmatpush2.bf16.msra.mxu0 0
      %849 = vmatprep.mubr.bf16.mxu0 0
      %850 = vmatmul.mubr.bf16.gmra.mxu0 %v815
      %v851 = vpop.f32.mrf.mxu0
      %v852 = vadd.f32 %v799, %v851
      %v853 = vpop.f32.mrf.mxu0
      %v854 = vpop.f32.mrf.mxu0
      %v855 = vpop.f32.mrf.mxu0
      %856 = vdwg.mxu0
      %v857 = vpack.c.bf16 %v852, %v852
      %vm858 = vcmask 780288
      %vm859 = vsmask.f32 2304
      %vm860 = vmand %vm858, %vm859
      %v861 = vld [vmem:[#allocation2] sm:$0x7]
      %v862 = vsel %vm860, %v857, %v861
      %863 = vst [vmem:[#allocation2] sm:$0x7] %v862
      %v864 = vld [vmem:[#allocation2] sm:$0x7]
      %v866 = vunpack.c.l.b16 %v864
      %v867 = vpack.c.b16 %v866, %v866
      %868 = vrot.lane.b32.xlu0 %v867, 96
      %v869 = vpop.permute.xlu0 %868
      %vm870 = vcmask 64512
      %v872 = vsel %vm870, %v864, 0
      %v875 = vsel %vm870, %v869, 0
      %877 = vmatprep.subr.bf16.mxu0 0
      %878 = vmatpush1.bf16.xpose.msra.mxu0 0
      %879 = vmatprep.subr.bf16.mxu0 0
      %880 = vmatpush1.bf16.xpose.msra.mxu0 0
      %881 = vmatprep.subr.bf16.mxu0 0
      %882 = vmatpush1.bf16.xpose.msra.mxu0 0
      %883 = vmatprep.subr.bf16.mxu0 0
      %884 = vmatpush1.bf16.xpose.msra.mxu0 0
      %885 = vmatprep.subr.bf16.mxu0 0
      %886 = vmatpush1.bf16.xpose.msra.mxu0 0
      %887 = vmatprep.subr.bf16.mxu0 0
      %888 = vmatpush1.bf16.xpose.msra.mxu0 0
      %889 = vmatprep.subr.bf16.mxu0 0
      %890 = vmatpush1.bf16.xpose.msra.mxu0 0
      %891 = vmatprep.subr.bf16.mxu0 0
      %892 = vmatpush1.bf16.xpose.msra.mxu0 %v875
      %893 = vmatprep.subr.bf16.mxu0 0
      %894 = vmatpush2.bf16.xpose.msra.mxu0 0
      %895 = vmatprep.subr.bf16.mxu0 0
      %896 = vmatpush2.bf16.xpose.msra.mxu0 0
      %897 = vmatprep.subr.bf16.mxu0 0
      %898 = vmatpush2.bf16.xpose.msra.mxu0 0
      %899 = vmatprep.subr.bf16.mxu0 0
      %900 = vmatpush2.bf16.xpose.msra.mxu0 0
      %901 = vmatprep.subr.bf16.mxu0 0
      %902 = vmatpush2.bf16.xpose.msra.mxu0 0
      %903 = vmatprep.subr.bf16.mxu0 0
      %904 = vmatpush2.bf16.xpose.msra.mxu0 0
      %905 = vmatprep.subr.bf16.mxu0 0
      %906 = vmatpush2.bf16.xpose.msra.mxu0 0
      %907 = vmatprep.subr.bf16.mxu0 0
      %908 = vmatpush2.bf16.xpose.msra.mxu0 0
      %909 = vmatprep.mubr.bf16.mxu0 0
      %910 = vmatmul.mubr.bf16.gmra.mxu0 %v872
      %v911 = vpop.f32.mrf.mxu0
      %v912 = vadd.f32 0.0, %v911
      %v913 = vpop.f32.mrf.mxu0
      %v914 = vpop.f32.mrf.mxu0
      %v915 = vpop.f32.mrf.mxu0
      %916 = vdwg.mxu0
      %vm917 = vcmask 36864
      %v918 = vsel %vm917, %v912, -inf
      %919 = vmax.xlane.f32.xlu0 %v918
      %v920 = vpop.xlane.xlu0 %919
      %v921 = vsub.f32 %v912, %v920
      %v922 = vmul.f32 %v921, 1.442695
      %v923 = vpow.pop %v922
      %v924 = vsel %vm917, %v923, 0.0
      %925 = vadd.xlane.f32.xlu0 %v924
      %v926 = vpop.xlane.xlu0 %925
      %v927 = vrcp.pop %v926
      %v928 = vmul.f32 %v923, %v927
      %v929 = vpack.c.bf16 %v928, %v928
      %930 = vrot.lane.b32.xlu0 %v867, 64
      %v931 = vpop.permute.xlu0 %930
      %vm932 = vcmask 39936
      %v934 = vsel %vm932, %v929, 0
      %vm936 = vcmask 1041408
      %vm937 = vcmask 1042432
      %v938 = vsel %vm936, 4294967295, 65535
      %v939 = vsel %vm937, %v938, 0
      %v941 = vand.u32 %v931, %v939
      %943 = vmatprep.subr.bf16.mxu0 0
      %944 = vmatpush1.bf16.msra.mxu0 0
      %945 = vmatprep.subr.bf16.mxu0 0
      %946 = vmatpush1.bf16.msra.mxu0 0
      %947 = vmatprep.subr.bf16.mxu0 0
      %948 = vmatpush1.bf16.msra.mxu0 0
      %949 = vmatprep.subr.bf16.mxu0 0
      %950 = vmatpush1.bf16.msra.mxu0 0
      %951 = vmatprep.subr.bf16.mxu0 0
      %952 = vmatpush1.bf16.msra.mxu0 0
      %953 = vmatprep.subr.bf16.mxu0 0
      %954 = vmatpush1.bf16.msra.mxu0 0
      %955 = vmatprep.subr.bf16.mxu0 0
      %956 = vmatpush1.bf16.msra.mxu0 0
      %957 = vmatprep.subr.bf16.mxu0 0
      %958 = vmatpush1.bf16.msra.mxu0 %v941
      %959 = vmatprep.subr.bf16.mxu0 0
      %960 = vmatpush2.bf16.msra.mxu0 0
      %961 = vmatprep.subr.bf16.mxu0 0
      %962 = vmatpush2.bf16.msra.mxu0 0
      %963 = vmatprep.subr.bf16.mxu0 0
      %964 = vmatpush2.bf16.msra.mxu0 0
      %965 = vmatprep.subr.bf16.mxu0 0
      %966 = vmatpush2.bf16.msra.mxu0 0
      %967 = vmatprep.subr.bf16.mxu0 0
      %968 = vmatpush2.bf16.msra.mxu0 0
      %969 = vmatprep.subr.bf16.mxu0 0
      %970 = vmatpush2.bf16.msra.mxu0 0
      %971 = vmatprep.subr.bf16.mxu0 0
      %972 = vmatpush2.bf16.msra.mxu0 0
      %973 = vmatprep.subr.bf16.mxu0 0
      %974 = vmatpush2.bf16.msra.mxu0 0
      %975 = vmatprep.mubr.bf16.mxu0 0
      %976 = vmatmul.mubr.bf16.gmra.mxu0 %v934
      %v977 = vpop.f32.mrf.mxu0
      %v978 = vadd.f32 0.0, %v977
      %v979 = vpop.f32.mrf.mxu0
      %v980 = vpop.f32.mrf.mxu0
      %v981 = vpop.f32.mrf.mxu0
      %982 = vdwg.mxu0
      %vm983 = vcmask 61440
      %984 = vst.msk [vmem:[#allocation3] sm:$0x1f] %vm983, %v978
      %v985 = vld [vmem:[#allocation2] sm:$0x7]
      %v987 = vunpack.c.l.b16 %v985
      %v988 = vpack.c.b16 %v987, %v987
      %989 = vrot.lane.b32.xlu0 %v988, 120
      %v990 = vpop.permute.xlu0 %989
      %991 = vrot.lane.b32.xlu0 %v988, 88
      %v992 = vpop.permute.xlu0 %991
      %v994 = vsel %vm870, %v990, 0
      %v997 = vsel %vm870, %v992, 0
      %999 = vmatprep.subr.bf16.mxu0 0
      %1000 = vmatpush1.bf16.xpose.msra.mxu0 0
      %1001 = vmatprep.subr.bf16.mxu0 0
      %1002 = vmatpush1.bf16.xpose.msra.mxu0 0
      %1003 = vmatprep.subr.bf16.mxu0 0
      %1004 = vmatpush1.bf16.xpose.msra.mxu0 0
      %1005 = vmatprep.subr.bf16.mxu0 0
      %1006 = vmatpush1.bf16.xpose.msra.mxu0 0
      %1007 = vmatprep.subr.bf16.mxu0 0
      %1008 = vmatpush1.bf16.xpose.msra.mxu0 0
      %1009 = vmatprep.subr.bf16.mxu0 0
      %1010 = vmatpush1.bf16.xpose.msra.mxu0 0
      %1011 = vmatprep.subr.bf16.mxu0 0
      %1012 = vmatpush1.bf16.xpose.msra.mxu0 0
      %1013 = vmatprep.subr.bf16.mxu0 0
      %1014 = vmatpush1.bf16.xpose.msra.mxu0 %v997
      %1015 = vmatprep.subr.bf16.mxu0 0
      %1016 = vmatpush2.bf16.xpose.msra.mxu0 0
      %1017 = vmatprep.subr.bf16.mxu0 0
      %1018 = vmatpush2.bf16.xpose.msra.mxu0 0
      %1019 = vmatprep.subr.bf16.mxu0 0
      %1020 = vmatpush2.bf16.xpose.msra.mxu0 0
      %1021 = vmatprep.subr.bf16.mxu0 0
      %1022 = vmatpush2.bf16.xpose.msra.mxu0 0
      %1023 = vmatprep.subr.bf16.mxu0 0
      %1024 = vmatpush2.bf16.xpose.msra.mxu0 0
      %1025 = vmatprep.subr.bf16.mxu0 0
      %1026 = vmatpush2.bf16.xpose.msra.mxu0 0
      %1027 = vmatprep.subr.bf16.mxu0 0
      %1028 = vmatpush2.bf16.xpose.msra.mxu0 0
      %1029 = vmatprep.subr.bf16.mxu0 0
      %1030 = vmatpush2.bf16.xpose.msra.mxu0 0
      %1031 = vmatprep.mubr.bf16.mxu0 0
      %1032 = vmatmul.mubr.bf16.gmra.mxu0 %v994
      %v1033 = vpop.f32.mrf.mxu0
      %v1034 = vadd.f32 0.0, %v1033
      %v1035 = vpop.f32.mrf.mxu0
      %v1036 = vpop.f32.mrf.mxu0
      %v1037 = vpop.f32.mrf.mxu0
      %1038 = vdwg.mxu0
      %v1039 = vsel %vm917, %v1034, -inf
      %1040 = vmax.xlane.f32.xlu0 %v1039
      %v1041 = vpop.xlane.xlu0 %1040
      %v1042 = vsub.f32 %v1034, %v1041
      %v1043 = vmul.f32 %v1042, 1.442695
      %v1044 = vpow.pop %v1043
      %v1045 = vsel %vm917, %v1044, 0.0
      %1046 = vadd.xlane.f32.xlu0 %v1045
      %v1047 = vpop.xlane.xlu0 %1046
      %v1048 = vrcp.pop %v1047
      %v1049 = vmul.f32 %v1044, %v1048
      %v1050 = vpack.c.bf16 %v1049, %v1049
      %1051 = vrot.lane.b32.xlu0 %v988, 56
      %v1052 = vpop.permute.xlu0 %1051
      %v1054 = vsel %vm932, %v1050, 0
      %v1057 = vand.u32 %v1052, %v939
      %1059 = vmatprep.subr.bf16.mxu0 0
      %1060 = vmatpush1.bf16.msra.mxu0 0
      %1061 = vmatprep.subr.bf16.mxu0 0
      %1062 = vmatpush1.bf16.msra.mxu0 0
      %1063 = vmatprep.subr.bf16.mxu0 0
      %1064 = vmatpush1.bf16.msra.mxu0 0
      %1065 = vmatprep.subr.bf16.mxu0 0
      %1066 = vmatpush1.bf16.msra.mxu0 0
      %1067 = vmatprep.subr.bf16.mxu0 0
      %1068 = vmatpush1.bf16.msra.mxu0 0
      %1069 = vmatprep.subr.bf16.mxu0 0
      %1070 = vmatpush1.bf16.msra.mxu0 0
      %1071 = vmatprep.subr.bf16.mxu0 0
      %1072 = vmatpush1.bf16.msra.mxu0 0
      %1073 = vmatprep.subr.bf16.mxu0 0
      %1074 = vmatpush1.bf16.msra.mxu0 %v1057
      %1075 = vmatprep.subr.bf16.mxu0 0
      %1076 = vmatpush2.bf16.msra.mxu0 0
      %1077 = vmatprep.subr.bf16.mxu0 0
      %1078 = vmatpush2.bf16.msra.mxu0 0
      %1079 = vmatprep.subr.bf16.mxu0 0
      %1080 = vmatpush2.bf16.msra.mxu0 0
      %1081 = vmatprep.subr.bf16.mxu0 0
      %1082 = vmatpush2.bf16.msra.mxu0 0
      %1083 = vmatprep.subr.bf16.mxu0 0
      %1084 = vmatpush2.bf16.msra.mxu0 0
      %1085 = vmatprep.subr.bf16.mxu0 0
      %1086 = vmatpush2.bf16.msra.mxu0 0
      %1087 = vmatprep.subr.bf16.mxu0 0
      %1088 = vmatpush2.bf16.msra.mxu0 0
      %1089 = vmatprep.subr.bf16.mxu0 0
      %1090 = vmatpush2.bf16.msra.mxu0 0
      %1091 = vmatprep.mubr.bf16.mxu0 0
      %1092 = vmatmul.mubr.bf16.gmra.mxu0 %v1054
      %v1093 = vpop.f32.mrf.mxu0
      %v1094 = vadd.f32 0.0, %v1093
      %v1095 = vpop.f32.mrf.mxu0
      %v1096 = vpop.f32.mrf.mxu0
      %v1097 = vpop.f32.mrf.mxu0
      %1098 = vdwg.mxu0
      %1100 = vrot.lane.b32.xlu0 %v1094, 8
      %v1101 = vpop.permute.xlu0 %1100
      %vm1103 = vcmask 127040
      %1104 = vst.msk [vmem:[#allocation3] sm:$0x1f] %vm1103, %v1101
      %v1105 = vld [vmem:[#allocation2] sm:$0x7]
      %v1107 = vunpack.c.l.b16 %v1105
      %v1108 = vpack.c.b16 %v1107, %v1107
      %1109 = vrot.lane.b32.xlu0 %v1108, 112
      %v1110 = vpop.permute.xlu0 %1109
      %1111 = vrot.lane.b32.xlu0 %v1108, 80
      %v1112 = vpop.permute.xlu0 %1111
      %v1114 = vsel %vm870, %v1110, 0
      %v1117 = vsel %vm870, %v1112, 0
      %1119 = vmatprep.subr.bf16.mxu0 0
      %1120 = vmatpush1.bf16.xpose.msra.mxu0 0
      %1121 = vmatprep.subr.bf16.mxu0 0
      %1122 = vmatpush1.bf16.xpose.msra.mxu0 0
      %1123 = vmatprep.subr.bf16.mxu0 0
      %1124 = vmatpush1.bf16.xpose.msra.mxu0 0
      %1125 = vmatprep.subr.bf16.mxu0 0
      %1126 = vmatpush1.bf16.xpose.msra.mxu0 0
      %1127 = vmatprep.subr.bf16.mxu0 0
      %1128 = vmatpush1.bf16.xpose.msra.mxu0 0
      %1129 = vmatprep.subr.bf16.mxu0 0
      %1130 = vmatpush1.bf16.xpose.msra.mxu0 0
      %1131 = vmatprep.subr.bf16.mxu0 0
      %1132 = vmatpush1.bf16.xpose.msra.mxu0 0
      %1133 = vmatprep.subr.bf16.mxu0 0
      %1134 = vmatpush1.bf16.xpose.msra.mxu0 %v1117
      %1135 = vmatprep.subr.bf16.mxu0 0
      %1136 = vmatpush2.bf16.xpose.msra.mxu0 0
      %1137 = vmatprep.subr.bf16.mxu0 0
      %1138 = vmatpush2.bf16.xpose.msra.mxu0 0
      %1139 = vmatprep.subr.bf16.mxu0 0
      %1140 = vmatpush2.bf16.xpose.msra.mxu0 0
      %1141 = vmatprep.subr.bf16.mxu0 0
      %1142 = vmatpush2.bf16.xpose.msra.mxu0 0
      %1143 = vmatprep.subr.bf16.mxu0 0
      %1144 = vmatpush2.bf16.xpose.msra.mxu0 0
      %1145 = vmatprep.subr.bf16.mxu0 0
      %1146 = vmatpush2.bf16.xpose.msra.mxu0 0
      %1147 = vmatprep.subr.bf16.mxu0 0
      %1148 = vmatpush2.bf16.xpose.msra.mxu0 0
      %1149 = vmatprep.subr.bf16.mxu0 0
      %1150 = vmatpush2.bf16.xpose.msra.mxu0 0
      %1151 = vmatprep.mubr.bf16.mxu0 0
      %1152 = vmatmul.mubr.bf16.gmra.mxu0 %v1114
      %v1153 = vpop.f32.mrf.mxu0
      %v1154 = vadd.f32 0.0, %v1153
      %v1155 = vpop.f32.mrf.mxu0
      %v1156 = vpop.f32.mrf.mxu0
      %v1157 = vpop.f32.mrf.mxu0
      %1158 = vdwg.mxu0
      %v1159 = vsel %vm917, %v1154, -inf
      %1160 = vmax.xlane.f32.xlu0 %v1159
      %v1161 = vpop.xlane.xlu0 %1160
      %v1162 = vsub.f32 %v1154, %v1161
      %v1163 = vmul.f32 %v1162, 1.442695
      %v1164 = vpow.pop %v1163
      %v1165 = vsel %vm917, %v1164, 0.0
      %1166 = vadd.xlane.f32.xlu0 %v1165
      %v1167 = vpop.xlane.xlu0 %1166
      %v1168 = vrcp.pop %v1167
      %v1169 = vmul.f32 %v1164, %v1168
      %v1170 = vpack.c.bf16 %v1169, %v1169
      %1171 = vrot.lane.b32.xlu0 %v1108, 48
      %v1172 = vpop.permute.xlu0 %1171
      %v1174 = vsel %vm932, %v1170, 0
      %v1177 = vand.u32 %v1172, %v939
      %1179 = vmatprep.subr.bf16.mxu0 0
      %1180 = vmatpush1.bf16.msra.mxu0 0
      %1181 = vmatprep.subr.bf16.mxu0 0
      %1182 = vmatpush1.bf16.msra.mxu0 0
      %1183 = vmatprep.subr.bf16.mxu0 0
      %1184 = vmatpush1.bf16.msra.mxu0 0
      %1185 = vmatprep.subr.bf16.mxu0 0
      %1186 = vmatpush1.bf16.msra.mxu0 0
      %1187 = vmatprep.subr.bf16.mxu0 0
      %1188 = vmatpush1.bf16.msra.mxu0 0
      %1189 = vmatprep.subr.bf16.mxu0 0
      %1190 = vmatpush1.bf16.msra.mxu0 0
      %1191 = vmatprep.subr.bf16.mxu0 0
      %1192 = vmatpush1.bf16.msra.mxu0 0
      %1193 = vmatprep.subr.bf16.mxu0 0
      %1194 = vmatpush1.bf16.msra.mxu0 %v1177
      %1195 = vmatprep.subr.bf16.mxu0 0
      %1196 = vmatpush2.bf16.msra.mxu0 0
      %1197 = vmatprep.subr.bf16.mxu0 0
      %1198 = vmatpush2.bf16.msra.mxu0 0
      %1199 = vmatprep.subr.bf16.mxu0 0
      %1200 = vmatpush2.bf16.msra.mxu0 0
      %1201 = vmatprep.subr.bf16.mxu0 0
      %1202 = vmatpush2.bf16.msra.mxu0 0
      %1203 = vmatprep.subr.bf16.mxu0 0
      %1204 = vmatpush2.bf16.msra.mxu0 0
      %1205 = vmatprep.subr.bf16.mxu0 0
      %1206 = vmatpush2.bf16.msra.mxu0 0
      %1207 = vmatprep.subr.bf16.mxu0 0
      %1208 = vmatpush2.bf16.msra.mxu0 0
      %1209 = vmatprep.subr.bf16.mxu0 0
      %1210 = vmatpush2.bf16.msra.mxu0 0
      %1211 = vmatprep.mubr.bf16.mxu0 0
      %1212 = vmatmul.mubr.bf16.gmra.mxu0 %v1174
      %v1213 = vpop.f32.mrf.mxu0
      %v1214 = vadd.f32 0.0, %v1213
      %v1215 = vpop.f32.mrf.mxu0
      %v1216 = vpop.f32.mrf.mxu0
      %v1217 = vpop.f32.mrf.mxu0
      %1218 = vdwg.mxu0
      %1220 = vrot.lane.b32.xlu0 %v1214, 16
      %v1221 = vpop.permute.xlu0 %1220
      %vm1223 = vcmask 192640
      %1224 = vst.msk [vmem:[#allocation3] sm:$0x1f] %vm1223, %v1221
      %v1225 = vld [vmem:[#allocation2] sm:$0x7]
      %v1227 = vunpack.c.l.b16 %v1225
      %v1228 = vpack.c.b16 %v1227, %v1227
      %1229 = vrot.lane.b32.xlu0 %v1228, 104
      %v1230 = vpop.permute.xlu0 %1229
      %1231 = vrot.lane.b32.xlu0 %v1228, 72
      %v1232 = vpop.permute.xlu0 %1231
      %v1234 = vsel %vm870, %v1230, 0
      %v1237 = vsel %vm870, %v1232, 0
      %1239 = vmatprep.subr.bf16.mxu0 0
      %1240 = vmatpush1.bf16.xpose.msra.mxu0 0
      %1241 = vmatprep.subr.bf16.mxu0 0
      %1242 = vmatpush1.bf16.xpose.msra.mxu0 0
      %1243 = vmatprep.subr.bf16.mxu0 0
      %1244 = vmatpush1.bf16.xpose.msra.mxu0 0
      %1245 = vmatprep.subr.bf16.mxu0 0
      %1246 = vmatpush1.bf16.xpose.msra.mxu0 0
      %1247 = vmatprep.subr.bf16.mxu0 0
      %1248 = vmatpush1.bf16.xpose.msra.mxu0 0
      %1249 = vmatprep.subr.bf16.mxu0 0
      %1250 = vmatpush1.bf16.xpose.msra.mxu0 0
      %1251 = vmatprep.subr.bf16.mxu0 0
      %1252 = vmatpush1.bf16.xpose.msra.mxu0 0
      %1253 = vmatprep.subr.bf16.mxu0 0
      %1254 = vmatpush1.bf16.xpose.msra.mxu0 %v1237
      %1255 = vmatprep.subr.bf16.mxu0 0
      %1256 = vmatpush2.bf16.xpose.msra.mxu0 0
      %1257 = vmatprep.subr.bf16.mxu0 0
      %1258 = vmatpush2.bf16.xpose.msra.mxu0 0
      %1259 = vmatprep.subr.bf16.mxu0 0
      %1260 = vmatpush2.bf16.xpose.msra.mxu0 0
      %1261 = vmatprep.subr.bf16.mxu0 0
      %1262 = vmatpush2.bf16.xpose.msra.mxu0 0
      %1263 = vmatprep.subr.bf16.mxu0 0
      %1264 = vmatpush2.bf16.xpose.msra.mxu0 0
      %1265 = vmatprep.subr.bf16.mxu0 0
      %1266 = vmatpush2.bf16.xpose.msra.mxu0 0
      %1267 = vmatprep.subr.bf16.mxu0 0
      %1268 = vmatpush2.bf16.xpose.msra.mxu0 0
      %1269 = vmatprep.subr.bf16.mxu0 0
      %1270 = vmatpush2.bf16.xpose.msra.mxu0 0
      %1271 = vmatprep.mubr.bf16.mxu0 0
      %1272 = vmatmul.mubr.bf16.gmra.mxu0 %v1234
      %v1273 = vpop.f32.mrf.mxu0
      %v1274 = vadd.f32 0.0, %v1273
      %v1275 = vpop.f32.mrf.mxu0
      %v1276 = vpop.f32.mrf.mxu0
      %v1277 = vpop.f32.mrf.mxu0
      %1278 = vdwg.mxu0
      %v1279 = vsel %vm917, %v1274, -inf
      %1280 = vmax.xlane.f32.xlu0 %v1279
      %v1281 = vpop.xlane.xlu0 %1280
      %v1282 = vsub.f32 %v1274, %v1281
      %v1283 = vmul.f32 %v1282, 1.442695
      %v1284 = vpow.pop %v1283
      %v1285 = vsel %vm917, %v1284, 0.0
      %1286 = vadd.xlane.f32.xlu0 %v1285
      %v1287 = vpop.xlane.xlu0 %1286
      %v1288 = vrcp.pop %v1287
      %v1289 = vmul.f32 %v1284, %v1288
      %v1290 = vpack.c.bf16 %v1289, %v1289
      %1291 = vrot.lane.b32.xlu0 %v1228, 40
      %v1292 = vpop.permute.xlu0 %1291
      %v1294 = vsel %vm932, %v1290, 0
      %v1297 = vand.u32 %v1292, %v939
      %1299 = vmatprep.subr.bf16.mxu0 0
      %1300 = vmatpush1.bf16.msra.mxu0 0
      %1301 = vmatprep.subr.bf16.mxu0 0
      %1302 = vmatpush1.bf16.msra.mxu0 0
      %1303 = vmatprep.subr.bf16.mxu0 0
      %1304 = vmatpush1.bf16.msra.mxu0 0
      %1305 = vmatprep.subr.bf16.mxu0 0
      %1306 = vmatpush1.bf16.msra.mxu0 0
      %1307 = vmatprep.subr.bf16.mxu0 0
      %1308 = vmatpush1.bf16.msra.mxu0 0
      %1309 = vmatprep.subr.bf16.mxu0 0
      %1310 = vmatpush1.bf16.msra.mxu0 0
      %1311 = vmatprep.subr.bf16.mxu0 0
      %1312 = vmatpush1.bf16.msra.mxu0 0
      %1313 = vmatprep.subr.bf16.mxu0 0
      %1314 = vmatpush1.bf16.msra.mxu0 %v1297
      %1315 = vmatprep.subr.bf16.mxu0 0
      %1316 = vmatpush2.bf16.msra.mxu0 0
      %1317 = vmatprep.subr.bf16.mxu0 0
      %1318 = vmatpush2.bf16.msra.mxu0 0
      %1319 = vmatprep.subr.bf16.mxu0 0
      %1320 = vmatpush2.bf16.msra.mxu0 0
      %1321 = vmatprep.subr.bf16.mxu0 0
      %1322 = vmatpush2.bf16.msra.mxu0 0
      %1323 = vmatprep.subr.bf16.mxu0 0
      %1324 = vmatpush2.bf16.msra.mxu0 0
      %1325 = vmatprep.subr.bf16.mxu0 0
      %1326 = vmatpush2.bf16.msra.mxu0 0
      %1327 = vmatprep.subr.bf16.mxu0 0
      %1328 = vmatpush2.bf16.msra.mxu0 0
      %1329 = vmatprep.subr.bf16.mxu0 0
      %1330 = vmatpush2.bf16.msra.mxu0 0
      %1331 = vmatprep.mubr.bf16.mxu0 0
      %1332 = vmatmul.mubr.bf16.gmra.mxu0 %v1294
      %v1333 = vpop.f32.mrf.mxu0
      %v1334 = vadd.f32 0.0, %v1333
      %v1335 = vpop.f32.mrf.mxu0
      %v1336 = vpop.f32.mrf.mxu0
      %v1337 = vpop.f32.mrf.mxu0
      %1338 = vdwg.mxu0
      %1340 = vrot.lane.b32.xlu0 %v1334, 24
      %v1341 = vpop.permute.xlu0 %1340
      %vm1343 = vcmask 258240
      %1344 = vst.msk [vmem:[#allocation3] sm:$0x1f] %vm1343, %v1341
      %v1345 = vld [vmem:[#allocation3] sm:$0x1f]
      %v1346 = vld [vmem:[%s9] sm:$0xf]
      %v1347 = vld [vmem:[%s9 + $0x4] sm:$0xf]
      %v1348 = vld [vmem:[%s9 + $0x8] sm:$0xf]
      %v1349 = vld [vmem:[%s9 + $0xc] sm:$0xf]
      %v1350 = vpack.c.bf16 %v1345, %v1345
      %v1355 = vunpack.c.l.b16 %v1346
      %v1356 = vunpack.c.l.b16 %v1347
      %v1357 = vunpack.c.l.b16 %v1348
      %v1358 = vunpack.c.l.b16 %v1349
      %v1359 = vpack.c.b16 %v1356, %v1355
      %v1360 = vpack.c.b16 %v1358, %v1357
      %v1364 = vsel %vm813, %v1350, 0
      %1366 = vmatprep.subr.bf16.mxu0 0
      %1367 = vmatpush1.bf16.msra.mxu0 0
      %1368 = vmatprep.subr.bf16.mxu0 0
      %1369 = vmatpush1.bf16.msra.mxu0 0
      %1370 = vmatprep.subr.bf16.mxu0 0
      %1371 = vmatpush1.bf16.msra.mxu0 0
      %1372 = vmatprep.subr.bf16.mxu0 0
      %1373 = vmatpush1.bf16.msra.mxu0 0
      %1374 = vmatprep.subr.bf16.mxu0 0
      %1375 = vmatpush1.bf16.msra.mxu0 0
      %1376 = vmatprep.subr.bf16.mxu0 0
      %1377 = vmatpush1.bf16.msra.mxu0 0
      %1378 = vmatprep.subr.bf16.mxu0 0
      %1379 = vmatpush1.bf16.msra.mxu0 %v1360
      %1380 = vmatprep.subr.bf16.mxu0 0
      %1381 = vmatpush1.bf16.msra.mxu0 %v1359
      %1382 = vmatprep.subr.bf16.mxu0 0
      %1383 = vmatpush2.bf16.msra.mxu0 0
      %1384 = vmatprep.subr.bf16.mxu0 0
      %1385 = vmatpush2.bf16.msra.mxu0 0
      %1386 = vmatprep.subr.bf16.mxu0 0
      %1387 = vmatpush2.bf16.msra.mxu0 0
      %1388 = vmatprep.subr.bf16.mxu0 0
      %1389 = vmatpush2.bf16.msra.mxu0 0
      %1390 = vmatprep.subr.bf16.mxu0 0
      %1391 = vmatpush2.bf16.msra.mxu0 0
      %1392 = vmatprep.subr.bf16.mxu0 0
      %1393 = vmatpush2.bf16.msra.mxu0 0
      %1394 = vmatprep.subr.bf16.mxu0 0
      %1395 = vmatpush2.bf16.msra.mxu0 0
      %1396 = vmatprep.subr.bf16.mxu0 0
      %1397 = vmatpush2.bf16.msra.mxu0 0
      %1398 = vmatprep.mubr.bf16.mxu0 0
      %1399 = vmatmul.mubr.bf16.gmra.mxu0 %v1364
      %v1400 = vpop.f32.mrf.mxu0
      %v1401 = vadd.f32 0.0, %v1400
      %v1402 = vpop.f32.mrf.mxu0
      %v1403 = vpop.f32.mrf.mxu0
      %v1404 = vpop.f32.mrf.mxu0
      %1405 = vdwg.mxu0
      %v1406 = vadd.f32 %v757, %v1401
      %v1407 = vld [vmem:[%s10] sm:$0x1]
      %v1409 = vlaneseq
      %v1410 = vshrl.u32 %v1409, 7
      %v1411 = vsub.s32 0, %v1410
      %v1412 = vrot.slane %v1407, %v1411
      %v1414 = vadd.f32 %v1406, %v1412
      %v1415 = vld [vmem:[%s11] sm:$0x1]
      %v1416 = vld [vmem:[%s12] sm:$0x1]
      %v1417 = vsel %vm727, %v1414, 0.0
      %1418 = vadd.xlane.f32.xlu0 %v1417
      %v1419 = vpop.xlane.xlu0 %1418
      %v1420 = vmul.f32 %v1419, %v731
      %v1421 = vmul.f32 %v1414, %v1414
      %v1422 = vsel %vm727, %v1421, 0.0
      %1423 = vadd.xlane.f32.xlu0 %v1422
      %v1424 = vpop.xlane.xlu0 %1423
      %v1425 = vmul.f32 %v1424, %v731
      %v1426 = vmul.f32 %v1420, %v1420
      %v1427 = vsub.f32 %v1425, %v1426
      %v1428 = vsub.f32 %v1414, %v1420
      %v1429 = vadd.f32 %v1427, 1e-05
      %v1430 = vrsqrt.pop %v1429
      %v1431 = vmul.f32 %v1428, %v1430
      %v1433 = vlaneseq
      %v1434 = vshrl.u32 %v1433, 7
      %v1435 = vsub.s32 0, %v1434
      %v1436 = vrot.slane %v1415, %v1435
      %v1438 = vmul.f32 %v1431, %v1436
      %v1440 = vlaneseq
      %v1441 = vshrl.u32 %v1440, 7
      %v1442 = vsub.s32 0, %v1441
      %v1443 = vrot.slane %v1416, %v1442
      %v1445 = vadd.f32 %v1438, %v1443
      %v1446 = vld [vmem:[%s13] sm:$0xf]
      %v1447 = vld [vmem:[%s13 + $0x4] sm:$0xf]
      %v1448 = vld [vmem:[%s13 + $0x8] sm:$0xf]
      %v1449 = vld [vmem:[%s13 + $0xc] sm:$0xf]
      %v1450 = vpack.c.bf16 %v1445, %v1445
      %v1451 = vld [vmem:[%s14] sm:$0x1]
      %v1453 = vlaneseq
      %v1454 = vshrl.u32 %v1453, 7
      %v1455 = vsub.s32 0, %v1454
      %v1456 = vrot.slane %v1451, %v1455
      %v1462 = vunpack.c.l.b16 %v1446
      %v1463 = vunpack.c.l.b16 %v1447
      %v1464 = vunpack.c.l.b16 %v1448
      %v1465 = vunpack.c.l.b16 %v1449
      %v1466 = vpack.c.b16 %v1463, %v1462
      %v1467 = vpack.c.b16 %v1465, %v1464
      %v1471 = vsel %vm813, %v1450, 0
      %1473 = vmatprep.subr.bf16.mxu0 0
      %1474 = vmatpush1.bf16.msra.mxu0 0
      %1475 = vmatprep.subr.bf16.mxu0 0
      %1476 = vmatpush1.bf16.msra.mxu0 0
      %1477 = vmatprep.subr.bf16.mxu0 0
      %1478 = vmatpush1.bf16.msra.mxu0 0
      %1479 = vmatprep.subr.bf16.mxu0 0
      %1480 = vmatpush1.bf16.msra.mxu0 0
      %1481 = vmatprep.subr.bf16.mxu0 0
      %1482 = vmatpush1.bf16.msra.mxu0 0
      %1483 = vmatprep.subr.bf16.mxu0 0
      %1484 = vmatpush1.bf16.msra.mxu0 0
      %1485 = vmatprep.subr.bf16.mxu0 0
      %1486 = vmatpush1.bf16.msra.mxu0 %v1467
      %1487 = vmatprep.subr.bf16.mxu0 0
      %1488 = vmatpush1.bf16.msra.mxu0 %v1466
      %1489 = vmatprep.subr.bf16.mxu0 0
      %1490 = vmatpush2.bf16.msra.mxu0 0
      %1491 = vmatprep.subr.bf16.mxu0 0
      %1492 = vmatpush2.bf16.msra.mxu0 0
      %1493 = vmatprep.subr.bf16.mxu0 0
      %1494 = vmatpush2.bf16.msra.mxu0 0
      %1495 = vmatprep.subr.bf16.mxu0 0
      %1496 = vmatpush2.bf16.msra.mxu0 0
      %1497 = vmatprep.subr.bf16.mxu0 0
      %1498 = vmatpush2.bf16.msra.mxu0 0
      %1499 = vmatprep.subr.bf16.mxu0 0
      %1500 = vmatpush2.bf16.msra.mxu0 0
      %1501 = vmatprep.subr.bf16.mxu0 0
      %1502 = vmatpush2.bf16.msra.mxu0 0
      %1503 = vmatprep.subr.bf16.mxu0 0
      %1504 = vmatpush2.bf16.msra.mxu0 0
      %1505 = vmatprep.mubr.bf16.mxu0 0
      %1506 = vmatmul.mubr.bf16.gmra.mxu0 %v1471
      %v1507 = vpop.f32.mrf.mxu0
      %v1508 = vadd.f32 %v1456, %v1507
      %v1509 = vpop.f32.mrf.mxu0
      %v1510 = vpop.f32.mrf.mxu0
      %v1511 = vpop.f32.mrf.mxu0
      %1512 = vdwg.mxu0
      %v1513 = vmul.f32 %v1508, 0.5
      %v1514 = vmul.f32 %v1508, 0.044715
      %v1515 = vmul.f32 %v1514, %v1508
      %v1516 = vmul.f32 %v1515, %v1508
      %v1517 = vadd.f32 %v1508, %v1516
      %v1518 = vmul.f32 %v1517, 0.7978846
      %v1519 = vtanh.pop %v1518
      %v1520 = vadd.f32 %v1519, 1.0
      %v1521 = vmul.f32 %v1513, %v1520
      %v1522 = vld [vmem:[%s15] sm:$0xf]
      %v1523 = vld [vmem:[%s15 + $0x4] sm:$0xf]
      %v1524 = vld [vmem:[%s15 + $0x8] sm:$0xf]
      %v1525 = vld [vmem:[%s15 + $0xc] sm:$0xf]
      %v1526 = vld [vmem:[%s15 + $0x10] sm:$0xf]
      %v1527 = vld [vmem:[%s15 + $0x14] sm:$0xf]
      %v1528 = vld [vmem:[%s15 + $0x18] sm:$0xf]
      %v1529 = vld [vmem:[%s15 + $0x1c] sm:$0xf]
      %v1530 = vld [vmem:[%s15 + $0x20] sm:$0xf]
      %v1531 = vld [vmem:[%s15 + $0x24] sm:$0xf]
      %v1532 = vld [vmem:[%s15 + $0x28] sm:$0xf]
      %v1533 = vld [vmem:[%s15 + $0x2c] sm:$0xf]
      %v1534 = vld [vmem:[%s15 + $0x30] sm:$0xf]
      %v1535 = vld [vmem:[%s15 + $0x34] sm:$0xf]
      %v1536 = vld [vmem:[%s15 + $0x38] sm:$0xf]
      %v1537 = vld [vmem:[%s15 + $0x3c] sm:$0xf]
      %v1538 = vpack.c.bf16 %v1521, %v1521
      %v1555 = vunpack.c.l.b16 %v1522
      %v1556 = vunpack.c.l.b16 %v1523
      %v1557 = vunpack.c.l.b16 %v1524
      %v1558 = vunpack.c.l.b16 %v1525
      %v1559 = vunpack.c.l.b16 %v1526
      %v1560 = vunpack.c.l.b16 %v1527
      %v1561 = vunpack.c.l.b16 %v1528
      %v1562 = vunpack.c.l.b16 %v1529
      %v1563 = vunpack.c.l.b16 %v1530
      %v1564 = vunpack.c.l.b16 %v1531
      %v1565 = vunpack.c.l.b16 %v1532
      %v1566 = vunpack.c.l.b16 %v1533
      %v1567 = vunpack.c.l.b16 %v1534
      %v1568 = vunpack.c.l.b16 %v1535
      %v1569 = vunpack.c.l.b16 %v1536
      %v1570 = vunpack.c.l.b16 %v1537
      %v1571 = vpack.c.b16 %v1556, %v1555
      %v1572 = vpack.c.b16 %v1558, %v1557
      %v1573 = vpack.c.b16 %v1560, %v1559
      %v1574 = vpack.c.b16 %v1562, %v1561
      %v1575 = vpack.c.b16 %v1564, %v1563
      %v1576 = vpack.c.b16 %v1566, %v1565
      %v1577 = vpack.c.b16 %v1568, %v1567
      %v1578 = vpack.c.b16 %v1570, %v1569
      %1587 = vmatprep.subr.bf16.mxu0 0
      %1588 = vmatpush1.bf16.msra.mxu0 %v1578
      %1589 = vmatprep.subr.bf16.mxu0 0
      %1590 = vmatpush1.bf16.msra.mxu0 %v1577
      %1591 = vmatprep.subr.bf16.mxu0 0
      %1592 = vmatpush1.bf16.msra.mxu0 %v1576
      %1593 = vmatprep.subr.bf16.mxu0 0
      %1594 = vmatpush1.bf16.msra.mxu0 %v1575
      %1595 = vmatprep.subr.bf16.mxu0 0
      %1596 = vmatpush1.bf16.msra.mxu0 %v1574
      %1597 = vmatprep.subr.bf16.mxu0 0
      %1598 = vmatpush1.bf16.msra.mxu0 %v1573
      %1599 = vmatprep.subr.bf16.mxu0 0
      %1600 = vmatpush1.bf16.msra.mxu0 %v1572
      %1601 = vmatprep.subr.bf16.mxu0 0
      %1602 = vmatpush1.bf16.msra.mxu0 %v1571
      %1603 = vmatprep.subr.bf16.mxu0 0
      %1604 = vmatpush2.bf16.msra.mxu0 0
      %1605 = vmatprep.subr.bf16.mxu0 0
      %1606 = vmatpush2.bf16.msra.mxu0 0
      %1607 = vmatprep.subr.bf16.mxu0 0
      %1608 = vmatpush2.bf16.msra.mxu0 0
      %1609 = vmatprep.subr.bf16.mxu0 0
      %1610 = vmatpush2.bf16.msra.mxu0 0
      %1611 = vmatprep.subr.bf16.mxu0 0
      %1612 = vmatpush2.bf16.msra.mxu0 0
      %1613 = vmatprep.subr.bf16.mxu0 0
      %1614 = vmatpush2.bf16.msra.mxu0 0
      %1615 = vmatprep.subr.bf16.mxu0 0
      %1616 = vmatpush2.bf16.msra.mxu0 0
      %1617 = vmatprep.subr.bf16.mxu0 0
      %1618 = vmatpush2.bf16.msra.mxu0 0
      %1619 = vmatprep.mubr.bf16.mxu0 0
      %1620 = vmatmul.mubr.bf16.gmra.mxu0 %v1538
      %v1621 = vpop.f32.mrf.mxu0
      %v1622 = vadd.f32 0.0, %v1621
      %v1623 = vpop.f32.mrf.mxu0
      %v1624 = vpop.f32.mrf.mxu0
      %v1625 = vpop.f32.mrf.mxu0
      %1626 = vdwg.mxu0
      %v1627 = vadd.f32 %v1414, %v1622
      %v1628 = vld [vmem:[%s16] sm:$0x1]
      %v1630 = vlaneseq
      %v1631 = vshrl.u32 %v1630, 7
      %v1632 = vsub.s32 0, %v1631
      %v1633 = vrot.slane %v1628, %v1632
      %v1635 = vadd.f32 %v1627, %v1633
      %1636 = vst.msk [vmem:[%s546] sm:$0x1f] %vm727, %v1635
      %p1637 = scmp.lt.s32.totalorder %s28, 1
      %s1638 = scalar_select %p1637, %s28, 1
      %s1639 = smul.addr %s1638, 8
      %s1640 = scalar_lea.vmem %s17, %s1639
      // Predicated region
      $region89: #{_forward_impl.3} parent=87 // pred_check
        %p1641 = pneg %p408
      $region90: #{_forward_impl.3} parent=87 // pred_check_branch
        %1643 = sbr.rel (%p1641) target = $region92
      $region91: #{_forward_impl.3} parent=87 // pred_region
        _
      $region92: #{_forward_impl.3} parent=87 // pred_fallthru
        _
    $region88: #{_forward_impl.3} parent=5 // pred_fallthru
      _
    %p1644 = scmp.le.s32.totalorder 2, %s23
    // Predicated region
    $region93: #{_forward_impl.3} parent=5 // pred_check
      %p1645 = pneg %p1644
    $region94: #{_forward_impl.3} parent=5 // pred_check_branch
      %1647 = sbr.rel (%p1645) target = $region96
    $region95: #{_forward_impl.3} parent=5 // pred_region
      %s1648 = ssub.s32 %s23, 2
      // Predicated region
      $region97: #{_forward_impl.3} parent=95 // pred_check
        %p1649 = pneg %p414
      $region98: #{_forward_impl.3} parent=95 // pred_check_branch
        %1651 = sbr.rel (%p1649) target = $region100
      $region99: #{_forward_impl.3} parent=95 // pred_region
        %p1652 = scmp.lt.s32.totalorder %s29, 1
        %s1653 = scalar_select %p1652, %s29, 1
        %s1654 = smul.addr %s1653, 8
        %s1655 = scalar_lea.vmem %s17, %s1654
      $region100: #{_forward_impl.3} parent=95 // pred_fallthru
        _
    $region96: #{_forward_impl.3} parent=5 // pred_fallthru
      _
  $region6: #{_forward_impl.3} parent=0 // loop_footer
    %s27 = sadd.s32 1, %s23
  $region7: #{_forward_impl.3} parent=0 // loop_footer_branch
    %22 = sbr.rel target = $region3
  $region8: #{_forward_impl.3} parent=0 // loop_exit
    _

// kernel: _forward_impl.4
$region0: #{_forward_impl.4}
  #allocation0 [shape = 'u32[]', space=smem, size = 0x4, offset = 0x4, fixed_abs, tag = 'smem constant byte address 0x4 - core index']
  #allocation1 [shape = 'u32[144,128]{1,0:T(1,128)}', space=vmem, size = 0x12000, scoped, tag = 'internal scratch']
  #allocation2 [shape = 'bf16[8,32]{1,0:T(8,128)(2,1)}', space=vmem, size = 0x800, scoped, tag = 'scratch operand']
  #allocation3 [shape = 'bf16[5,64]{1,0:T(8,128)(2,1)}', space=vmem, size = 0x800, scoped, tag = 'scratch operand']
  #allocation4 [shape = 'f32[8,32]{1,0:T(8,128)}', space=vmem, size = 0x1000, scoped, tag = 'scratch operand']
  %s0 = inlined_call_operand.vmem [shape: f32[2,8,32], index: 0, kind: input, shape index: {}, may-alias: {0,14}]
  %s1 = inlined_call_operand.vmem [shape: f32[2,5,32], index: 1, kind: input, shape index: {}]
  %s2 = inlined_call_operand.vmem [shape: f32[2,1,32], index: 2, kind: input, shape index: {}]
  %s3 = inlined_call_operand.vmem [shape: f32[2,1,32], index: 3, kind: input, shape index: {}]
  %s4 = inlined_call_operand.vmem [shape: bf16[2,32,32], index: 4, kind: input, shape index: {}]
  %s5 = inlined_call_operand.vmem [shape: f32[2,1,32], index: 5, kind: input, shape index: {}]
  %s6 = inlined_call_operand.vmem [shape: bf16[2,32,64], index: 6, kind: input, shape index: {}]
  %s7 = inlined_call_operand.vmem [shape: f32[2,1,64], index: 7, kind: input, shape index: {}]
  %s8 = inlined_call_operand.vmem [shape: bf16[2,32,32], index: 8, kind: input, shape index: {}]
  %s9 = inlined_call_operand.vmem [shape: f32[2,1,32], index: 9, kind: input, shape index: {}]
  %s10 = inlined_call_operand.vmem [shape: bf16[2,32,128], index: 10, kind: input, shape index: {}]
  %s11 = inlined_call_operand.vmem [shape: f32[2,1,128], index: 11, kind: input, shape index: {}]
  %s12 = inlined_call_operand.vmem [shape: bf16[2,128,32], index: 12, kind: input, shape index: {}]
  %s13 = inlined_call_operand.vmem [shape: f32[2,1,32], index: 13, kind: input, shape index: {}]
  %s14 = inlined_call_operand.vmem [shape: f32[2,8,32], index: 14, kind: output, shape index: {}, may-alias: {0,14}]
  %s15 = sld [smem:[#allocation0]]
  $region89: #{_forward_impl.4} parent=0
    _
  %s17 = ssub.s32 1, %s15
  %s18 = scalar_select 0, %s17, %s15
  loop: start=0, step=1, limit=4
  $region2: #{_forward_impl.4} parent=0 // loop_pre_header
    _
  $region3: #{_forward_impl.4} parent=0 // loop_header
    %s20 = sphi 0, %s24
    %p21 = scmp.ge.s32.totalorder %s20, 4
    %s30 = sphi 0, %s32
    %s33 = sphi 0, %s30
    %s34 = sphi 0, %s33
    %s50 = sphi 0, %s34
    %s56 = sphi 0, %s58
    %s59 = sphi 0, %s56
    %s60 = sphi 0, %s59
    %s76 = sphi 0, %s60
    %s80 = sphi 0, %s80
    %s82 = sphi 0, %s80
    %s83 = sphi 0, %s82
    %s97 = sphi 0, %s83
    %s101 = sphi 0, %s101
    %s103 = sphi 0, %s101
    %s104 = sphi 0, %s103
    %s118 = sphi 0, %s104
    %s122 = sphi 0, %s122
    %s124 = sphi 0, %s122
    %s125 = sphi 0, %s124
    %s139 = sphi 0, %s125
    %s143 = sphi 0, %s143
    %s145 = sphi 0, %s143
    %s146 = sphi 0, %s145
    %s160 = sphi 0, %s146
    %s164 = sphi 0, %s164
    %s166 = sphi 0, %s164
    %s167 = sphi 0, %s166
    %s181 = sphi 0, %s167
    %s185 = sphi 0, %s185
    %s187 = sphi 0, %s185
    %s188 = sphi 0, %s187
    %s202 = sphi 0, %s188
    %s206 = sphi 0, %s206
    %s208 = sphi 0, %s206
    %s209 = sphi 0, %s208
    %s223 = sphi 0, %s209
    %s227 = sphi 0, %s227
    %s229 = sphi 0, %s227
    %s230 = sphi 0, %s229
    %s244 = sphi 0, %s230
    %s248 = sphi 0, %s248
    %s250 = sphi 0, %s248
    %s251 = sphi 0, %s250
    %s265 = sphi 0, %s251
    %s269 = sphi 0, %s269
    %s271 = sphi 0, %s269
    %s272 = sphi 0, %s271
    %s286 = sphi 0, %s272
    %s290 = sphi 0, %s290
    %s292 = sphi 0, %s290
    %s293 = sphi 0, %s292
    %s307 = sphi 0, %s293
    %s311 = sphi 0, %s311
    %s313 = sphi 0, %s311
    %s314 = sphi 0, %s313
    %s328 = sphi 0, %s314
    %s334 = sphi 0, %s336
    %s337 = sphi 0, %s334
    %s338 = sphi 0, %s337
    %s354 = sphi 0, %s338
  $region4: #{_forward_impl.4} parent=0 // loop_header_branch
    %23 = sbr.rel (%p21) target = $region8
  $region5: #{_forward_impl.4} parent=0 // loop_body
    %s25 = ssub.s32 %s20, 1
    %s26 = ssub.s32 %s20, 2
    %s27 = sadd.s32 %s20, 1
    %s28 = ssub.s32 %s20, %s27
    %p29 = scmp.eq.s32.totalorder %s28, 0
    %s31 = sadd.s32 %s30, 1
    %s32 = scalar_select %p29, %s30, %s31
    %p35 = pneg %p29
    %p36 = scmp.eq.s32.totalorder %s20, 1
    %p37 = por %p35, %p36
    %p38 = scmp.ne.s32.totalorder %s30, %s33
    %p39 = scmp.eq.s32.totalorder %s20, 0
    %p40 = por %p38, %p39
    %p41 = scmp.ne.s32.totalorder %s30, %s33
    %p42 = scmp.eq.s32.totalorder %s25, 1
    %p43 = por %p41, %p42
    %p44 = scmp.ne.s32.totalorder %s33, %s34
    %p45 = scmp.eq.s32.totalorder %s25, 0
    %p46 = por %p44, %p45
    %p47 = scmp.ne.s32.totalorder %s33, %s34
    %p48 = scmp.eq.s32.totalorder %s26, 1
    %p49 = por %p47, %p48
    %p51 = scmp.ne.s32.totalorder %s34, %s50
    %p52 = scmp.eq.s32.totalorder %s26, 0
    %p53 = por %p51, %p52
    %s54 = ssub.s32 %s20, %s27
    %p55 = scmp.eq.s32.totalorder %s54, 0
    %s57 = sadd.s32 %s56, 1
    %s58 = scalar_select %p55, %s56, %s57
    %p61 = pneg %p55
    %p62 = scmp.eq.s32.totalorder %s20, 1
    %p63 = por %p61, %p62
    %p64 = scmp.ne.s32.totalorder %s56, %s59
    %p65 = scmp.eq.s32.totalorder %s20, 0
    %p66 = por %p64, %p65
    %p67 = scmp.ne.s32.totalorder %s56, %s59
    %p68 = scmp.eq.s32.totalorder %s25, 1
    %p69 = por %p67, %p68
    %p70 = scmp.ne.s32.totalorder %s59, %s60
    %p71 = scmp.eq.s32.totalorder %s25, 0
    %p72 = por %p70, %p71
    %p73 = scmp.ne.s32.totalorder %s59, %s60
    %p74 = scmp.eq.s32.totalorder %s26, 1
    %p75 = por %p73, %p74
    %p77 = scmp.ne.s32.totalorder %s60, %s76
    %p78 = scmp.eq.s32.totalorder %s26, 0
    %p79 = por %p77, %p78
    %s81 = sadd.s32 %s80, 1
    %p84 = scmp.eq.s32.totalorder %s20, 1
    %p85 = scmp.ne.s32.totalorder %s80, %s82
    %p86 = scmp.eq.s32.totalorder %s20, 0
    %p87 = por %p85, %p86
    %p88 = scmp.ne.s32.totalorder %s80, %s82
    %p89 = scmp.eq.s32.totalorder %s25, 1
    %p90 = por %p88, %p89
    %p91 = scmp.ne.s32.totalorder %s82, %s83
    %p92 = scmp.eq.s32.totalorder %s25, 0
    %p93 = por %p91, %p92
    %p94 = scmp.ne.s32.totalorder %s82, %s83
    %p95 = scmp.eq.s32.totalorder %s26, 1
    %p96 = por %p94, %p95
    %p98 = scmp.ne.s32.totalorder %s83, %s97
    %p99 = scmp.eq.s32.totalorder %s26, 0
    %p100 = por %p98, %p99
    %s102 = sadd.s32 %s101, 1
    %p105 = scmp.eq.s32.totalorder %s20, 1
    %p106 = scmp.ne.s32.totalorder %s101, %s103
    %p107 = scmp.eq.s32.totalorder %s20, 0
    %p108 = por %p106, %p107
    %p109 = scmp.ne.s32.totalorder %s101, %s103
    %p110 = scmp.eq.s32.totalorder %s25, 1
    %p111 = por %p109, %p110
    %p112 = scmp.ne.s32.totalorder %s103, %s104
    %p113 = scmp.eq.s32.totalorder %s25, 0
    %p114 = por %p112, %p113
    %p115 = scmp.ne.s32.totalorder %s103, %s104
    %p116 = scmp.eq.s32.totalorder %s26, 1
    %p117 = por %p115, %p116
    %p119 = scmp.ne.s32.totalorder %s104, %s118
    %p120 = scmp.eq.s32.totalorder %s26, 0
    %p121 = por %p119, %p120
    %s123 = sadd.s32 %s122, 1
    %p126 = scmp.eq.s32.totalorder %s20, 1
    %p127 = scmp.ne.s32.totalorder %s122, %s124
    %p128 = scmp.eq.s32.totalorder %s20, 0
    %p129 = por %p127, %p128
    %p130 = scmp.ne.s32.totalorder %s122, %s124
    %p131 = scmp.eq.s32.totalorder %s25, 1
    %p132 = por %p130, %p131
    %p133 = scmp.ne.s32.totalorder %s124, %s125
    %p134 = scmp.eq.s32.totalorder %s25, 0
    %p135 = por %p133, %p134
    %p136 = scmp.ne.s32.totalorder %s124, %s125
    %p137 = scmp.eq.s32.totalorder %s26, 1
    %p138 = por %p136, %p137
    %p140 = scmp.ne.s32.totalorder %s125, %s139
    %p141 = scmp.eq.s32.totalorder %s26, 0
    %p142 = por %p140, %p141
    %s144 = sadd.s32 %s143, 1
    %p147 = scmp.eq.s32.totalorder %s20, 1
    %p148 = scmp.ne.s32.totalorder %s143, %s145
    %p149 = scmp.eq.s32.totalorder %s20, 0
    %p150 = por %p148, %p149
    %p151 = scmp.ne.s32.totalorder %s143, %s145
    %p152 = scmp.eq.s32.totalorder %s25, 1
    %p153 = por %p151, %p152
    %p154 = scmp.ne.s32.totalorder %s145, %s146
    %p155 = scmp.eq.s32.totalorder %s25, 0
    %p156 = por %p154, %p155
    %p157 = scmp.ne.s32.totalorder %s145, %s146
    %p158 = scmp.eq.s32.totalorder %s26, 1
    %p159 = por %p157, %p158
    %p161 = scmp.ne.s32.totalorder %s146, %s160
    %p162 = scmp.eq.s32.totalorder %s26, 0
    %p163 = por %p161, %p162
    %s165 = sadd.s32 %s164, 1
    %p168 = scmp.eq.s32.totalorder %s20, 1
    %p169 = scmp.ne.s32.totalorder %s164, %s166
    %p170 = scmp.eq.s32.totalorder %s20, 0
    %p171 = por %p169, %p170
    %p172 = scmp.ne.s32.totalorder %s164, %s166
    %p173 = scmp.eq.s32.totalorder %s25, 1
    %p174 = por %p172, %p173
    %p175 = scmp.ne.s32.totalorder %s166, %s167
    %p176 = scmp.eq.s32.totalorder %s25, 0
    %p177 = por %p175, %p176
    %p178 = scmp.ne.s32.totalorder %s166, %s167
    %p179 = scmp.eq.s32.totalorder %s26, 1
    %p180 = por %p178, %p179
    %p182 = scmp.ne.s32.totalorder %s167, %s181
    %p183 = scmp.eq.s32.totalorder %s26, 0
    %p184 = por %p182, %p183
    %s186 = sadd.s32 %s185, 1
    %p189 = scmp.eq.s32.totalorder %s20, 1
    %p190 = scmp.ne.s32.totalorder %s185, %s187
    %p191 = scmp.eq.s32.totalorder %s20, 0
    %p192 = por %p190, %p191
    %p193 = scmp.ne.s32.totalorder %s185, %s187
    %p194 = scmp.eq.s32.totalorder %s25, 1
    %p195 = por %p193, %p194
    %p196 = scmp.ne.s32.totalorder %s187, %s188
    %p197 = scmp.eq.s32.totalorder %s25, 0
    %p198 = por %p196, %p197
    %p199 = scmp.ne.s32.totalorder %s187, %s188
    %p200 = scmp.eq.s32.totalorder %s26, 1
    %p201 = por %p199, %p200
    %p203 = scmp.ne.s32.totalorder %s188, %s202
    %p204 = scmp.eq.s32.totalorder %s26, 0
    %p205 = por %p203, %p204
    %s207 = sadd.s32 %s206, 1
    %p210 = scmp.eq.s32.totalorder %s20, 1
    %p211 = scmp.ne.s32.totalorder %s206, %s208
    %p212 = scmp.eq.s32.totalorder %s20, 0
    %p213 = por %p211, %p212
    %p214 = scmp.ne.s32.totalorder %s206, %s208
    %p215 = scmp.eq.s32.totalorder %s25, 1
    %p216 = por %p214, %p215
    %p217 = scmp.ne.s32.totalorder %s208, %s209
    %p218 = scmp.eq.s32.totalorder %s25, 0
    %p219 = por %p217, %p218
    %p220 = scmp.ne.s32.totalorder %s208, %s209
    %p221 = scmp.eq.s32.totalorder %s26, 1
    %p222 = por %p220, %p221
    %p224 = scmp.ne.s32.totalorder %s209, %s223
    %p225 = scmp.eq.s32.totalorder %s26, 0
    %p226 = por %p224, %p225
    %s228 = sadd.s32 %s227, 1
    %p231 = scmp.eq.s32.totalorder %s20, 1
    %p232 = scmp.ne.s32.totalorder %s227, %s229
    %p233 = scmp.eq.s32.totalorder %s20, 0
    %p234 = por %p232, %p233
    %p235 = scmp.ne.s32.totalorder %s227, %s229
    %p236 = scmp.eq.s32.totalorder %s25, 1
    %p237 = por %p235, %p236
    %p238 = scmp.ne.s32.totalorder %s229, %s230
    %p239 = scmp.eq.s32.totalorder %s25, 0
    %p240 = por %p238, %p239
    %p241 = scmp.ne.s32.totalorder %s229, %s230
    %p242 = scmp.eq.s32.totalorder %s26, 1
    %p243 = por %p241, %p242
    %p245 = scmp.ne.s32.totalorder %s230, %s244
    %p246 = scmp.eq.s32.totalorder %s26, 0
    %p247 = por %p245, %p246
    %s249 = sadd.s32 %s248, 1
    %p252 = scmp.eq.s32.totalorder %s20, 1
    %p253 = scmp.ne.s32.totalorder %s248, %s250
    %p254 = scmp.eq.s32.totalorder %s20, 0
    %p255 = por %p253, %p254
    %p256 = scmp.ne.s32.totalorder %s248, %s250
    %p257 = scmp.eq.s32.totalorder %s25, 1
    %p258 = por %p256, %p257
    %p259 = scmp.ne.s32.totalorder %s250, %s251
    %p260 = scmp.eq.s32.totalorder %s25, 0
    %p261 = por %p259, %p260
    %p262 = scmp.ne.s32.totalorder %s250, %s251
    %p263 = scmp.eq.s32.totalorder %s26, 1
    %p264 = por %p262, %p263
    %p266 = scmp.ne.s32.totalorder %s251, %s265
    %p267 = scmp.eq.s32.totalorder %s26, 0
    %p268 = por %p266, %p267
    %s270 = sadd.s32 %s269, 1
    %p273 = scmp.eq.s32.totalorder %s20, 1
    %p274 = scmp.ne.s32.totalorder %s269, %s271
    %p275 = scmp.eq.s32.totalorder %s20, 0
    %p276 = por %p274, %p275
    %p277 = scmp.ne.s32.totalorder %s269, %s271
    %p278 = scmp.eq.s32.totalorder %s25, 1
    %p279 = por %p277, %p278
    %p280 = scmp.ne.s32.totalorder %s271, %s272
    %p281 = scmp.eq.s32.totalorder %s25, 0
    %p282 = por %p280, %p281
    %p283 = scmp.ne.s32.totalorder %s271, %s272
    %p284 = scmp.eq.s32.totalorder %s26, 1
    %p285 = por %p283, %p284
    %p287 = scmp.ne.s32.totalorder %s272, %s286
    %p288 = scmp.eq.s32.totalorder %s26, 0
    %p289 = por %p287, %p288
    %s291 = sadd.s32 %s290, 1
    %p294 = scmp.eq.s32.totalorder %s20, 1
    %p295 = scmp.ne.s32.totalorder %s290, %s292
    %p296 = scmp.eq.s32.totalorder %s20, 0
    %p297 = por %p295, %p296
    %p298 = scmp.ne.s32.totalorder %s290, %s292
    %p299 = scmp.eq.s32.totalorder %s25, 1
    %p300 = por %p298, %p299
    %p301 = scmp.ne.s32.totalorder %s292, %s293
    %p302 = scmp.eq.s32.totalorder %s25, 0
    %p303 = por %p301, %p302
    %p304 = scmp.ne.s32.totalorder %s292, %s293
    %p305 = scmp.eq.s32.totalorder %s26, 1
    %p306 = por %p304, %p305
    %p308 = scmp.ne.s32.totalorder %s293, %s307
    %p309 = scmp.eq.s32.totalorder %s26, 0
    %p310 = por %p308, %p309
    %s312 = sadd.s32 %s311, 1
    %p315 = scmp.eq.s32.totalorder %s20, 1
    %p316 = scmp.ne.s32.totalorder %s311, %s313
    %p317 = scmp.eq.s32.totalorder %s20, 0
    %p318 = por %p316, %p317
    %p319 = scmp.ne.s32.totalorder %s311, %s313
    %p320 = scmp.eq.s32.totalorder %s25, 1
    %p321 = por %p319, %p320
    %p322 = scmp.ne.s32.totalorder %s313, %s314
    %p323 = scmp.eq.s32.totalorder %s25, 0
    %p324 = por %p322, %p323
    %p325 = scmp.ne.s32.totalorder %s313, %s314
    %p326 = scmp.eq.s32.totalorder %s26, 1
    %p327 = por %p325, %p326
    %p329 = scmp.ne.s32.totalorder %s314, %s328
    %p330 = scmp.eq.s32.totalorder %s26, 0
    %p331 = por %p329, %p330
    %s332 = ssub.s32 %s20, %s27
    %p333 = scmp.eq.s32.totalorder %s332, 0
    %s335 = sadd.s32 %s334, 1
    %s336 = scalar_select %p333, %s334, %s335
    %p339 = pneg %p333
    %p340 = scmp.eq.s32.totalorder %s20, 1
    %p341 = por %p339, %p340
    %p342 = scmp.ne.s32.totalorder %s334, %s337
    %p343 = scmp.eq.s32.totalorder %s20, 0
    %p344 = por %p342, %p343
    %p345 = scmp.ne.s32.totalorder %s334, %s337
    %p346 = scmp.eq.s32.totalorder %s25, 1
    %p347 = por %p345, %p346
    %p348 = scmp.ne.s32.totalorder %s337, %s338
    %p349 = scmp.eq.s32.totalorder %s25, 0
    %p350 = por %p348, %p349
    %p351 = scmp.ne.s32.totalorder %s337, %s338
    %p352 = scmp.eq.s32.totalorder %s26, 1
    %p353 = por %p351, %p352
    %p355 = scmp.ne.s32.totalorder %s338, %s354
    %p356 = scmp.eq.s32.totalorder %s26, 0
    %p357 = por %p355, %p356
    %p358 = scmp.le.s32.totalorder 1, %s20
    %p359 = scmp.lt.s32.totalorder %s20, 3
    %p360 = pnand %p358, %p359
    %p361 = pneg %p360
    // Predicated region
    $region9: #{_forward_impl.4} parent=5 // pred_check
      _
    $region10: #{_forward_impl.4} parent=5 // pred_check_branch
      %363 = sbr.rel (%p360) target = $region12
    $region11: #{_forward_impl.4} parent=5 // pred_region
      %s364 = ssub.s32 %s20, 1
      // Predicated region
      $region13: #{_forward_impl.4} parent=11 // pred_check
        %p365 = pneg %p93
      $region14: #{_forward_impl.4} parent=11 // pred_check_branch
        %367 = sbr.rel (%p365) target = $region16
      $region15: #{_forward_impl.4} parent=11 // pred_region
        _
      $region16: #{_forward_impl.4} parent=11 // pred_fallthru
        _
      // Predicated region
      $region17: #{_forward_impl.4} parent=11 // pred_check
        %p368 = pneg %p114
      $region18: #{_forward_impl.4} parent=11 // pred_check_branch
        %370 = sbr.rel (%p368) target = $region20
      $region19: #{_forward_impl.4} parent=11 // pred_region
        _
      $region20: #{_forward_impl.4} parent=11 // pred_fallthru
        _
      // Predicated region
      $region21: #{_forward_impl.4} parent=11 // pred_check
        %p371 = pneg %p135
      $region22: #{_forward_impl.4} parent=11 // pred_check_branch
        %373 = sbr.rel (%p371) target = $region24
      $region23: #{_forward_impl.4} parent=11 // pred_region
        _
      $region24: #{_forward_impl.4} parent=11 // pred_fallthru
        _
      // Predicated region
      $region25: #{_forward_impl.4} parent=11 // pred_check
        %p374 = pneg %p156
      $region26: #{_forward_impl.4} parent=11 // pred_check_branch
        %376 = sbr.rel (%p374) target = $region28
      $region27: #{_forward_impl.4} parent=11 // pred_region
        _
      $region28: #{_forward_impl.4} parent=11 // pred_fallthru
        _
      // Predicated region
      $region29: #{_forward_impl.4} parent=11 // pred_check
        %p377 = pneg %p177
      $region30: #{_forward_impl.4} parent=11 // pred_check_branch
        %379 = sbr.rel (%p377) target = $region32
      $region31: #{_forward_impl.4} parent=11 // pred_region
        _
      $region32: #{_forward_impl.4} parent=11 // pred_fallthru
        _
      // Predicated region
      $region33: #{_forward_impl.4} parent=11 // pred_check
        %p380 = pneg %p198
      $region34: #{_forward_impl.4} parent=11 // pred_check_branch
        %382 = sbr.rel (%p380) target = $region36
      $region35: #{_forward_impl.4} parent=11 // pred_region
        _
      $region36: #{_forward_impl.4} parent=11 // pred_fallthru
        _
      // Predicated region
      $region37: #{_forward_impl.4} parent=11 // pred_check
        %p383 = pneg %p219
      $region38: #{_forward_impl.4} parent=11 // pred_check_branch
        %385 = sbr.rel (%p383) target = $region40
      $region39: #{_forward_impl.4} parent=11 // pred_region
        _
      $region40: #{_forward_impl.4} parent=11 // pred_fallthru
        _
      // Predicated region
      $region41: #{_forward_impl.4} parent=11 // pred_check
        %p386 = pneg %p240
      $region42: #{_forward_impl.4} parent=11 // pred_check_branch
        %388 = sbr.rel (%p386) target = $region44
      $region43: #{_forward_impl.4} parent=11 // pred_region
        _
      $region44: #{_forward_impl.4} parent=11 // pred_fallthru
        _
      // Predicated region
      $region45: #{_forward_impl.4} parent=11 // pred_check
        %p389 = pneg %p261
      $region46: #{_forward_impl.4} parent=11 // pred_check_branch
        %391 = sbr.rel (%p389) target = $region48
      $region47: #{_forward_impl.4} parent=11 // pred_region
        _
      $region48: #{_forward_impl.4} parent=11 // pred_fallthru
        _
      // Predicated region
      $region49: #{_forward_impl.4} parent=11 // pred_check
        %p392 = pneg %p282
      $region50: #{_forward_impl.4} parent=11 // pred_check_branch
        %394 = sbr.rel (%p392) target = $region52
      $region51: #{_forward_impl.4} parent=11 // pred_region
        _
      $region52: #{_forward_impl.4} parent=11 // pred_fallthru
        _
      // Predicated region
      $region53: #{_forward_impl.4} parent=11 // pred_check
        %p395 = pneg %p303
      $region54: #{_forward_impl.4} parent=11 // pred_check_branch
        %397 = sbr.rel (%p395) target = $region56
      $region55: #{_forward_impl.4} parent=11 // pred_region
        _
      $region56: #{_forward_impl.4} parent=11 // pred_fallthru
        _
      // Predicated region
      $region57: #{_forward_impl.4} parent=11 // pred_check
        %p398 = pneg %p324
      $region58: #{_forward_impl.4} parent=11 // pred_check_branch
        %400 = sbr.rel (%p398) target = $region60
      $region59: #{_forward_impl.4} parent=11 // pred_region
        _
      $region60: #{_forward_impl.4} parent=11 // pred_fallthru
        _
    $region12: #{_forward_impl.4} parent=5 // pred_fallthru
      _
    %p401 = scmp.lt.s32.totalorder %s20, 2
    // Predicated region
    $region61: #{_forward_impl.4} parent=5 // pred_check
      %p402 = pneg %p401
    $region62: #{_forward_impl.4} parent=5 // pred_check_branch
      %404 = sbr.rel (%p402) target = $region64
    $region63: #{_forward_impl.4} parent=5 // pred_region
      // Predicated region
      $region65: #{_forward_impl.4} parent=63 // pred_check
        %p405 = pneg %p40
      $region66: #{_forward_impl.4} parent=63 // pred_check_branch
        %407 = sbr.rel (%p405) target = $region68
      $region67: #{_forward_impl.4} parent=63 // pred_region
        %p408 = scmp.lt.s32.totalorder %s20, 1
        %s409 = scalar_select %p408, %s20, 1
        %s410 = smul.addr %s409, 8
        %s411 = scalar_lea.vmem %s0, %s410
      $region68: #{_forward_impl.4} parent=63 // pred_fallthru
        _
      // Predicated region
      $region69: #{_forward_impl.4} parent=63 // pred_check
        %p412 = pneg %p66
      $region70: #{_forward_impl.4} parent=63 // pred_check_branch
        %414 = sbr.rel (%p412) target = $region72
      $region71: #{_forward_impl.4} parent=63 // pred_region
        %p415 = scmp.lt.s32.totalorder %s20, 1
        %s416 = scalar_select %p415, %s20, 1
        %s417 = smul.addr %s416, 8
        %s418 = scalar_lea.vmem %s1, %s417
      $region72: #{_forward_impl.4} parent=63 // pred_fallthru
        _
    $region64: #{_forward_impl.4} parent=5 // pred_fallthru
      _
    %p419 = scmp.le.s32.totalorder 1, %s20
    %p420 = scmp.lt.s32.totalorder %s20, 3
    %p421 = pnand %p419, %p420
    %p422 = pneg %p421
    // Predicated region
    $region73: #{_forward_impl.4} parent=5 // pred_check
      _
    $region74: #{_forward_impl.4} parent=5 // pred_check_branch
      %424 = sbr.rel (%p421) target = $region76
    $region75: #{_forward_impl.4} parent=5 // pred_region
      %s425 = ssub.s32 %s20, 1
      %p426 = scmp.lt.s32.totalorder %s25, 1
      %s427 = scalar_select %p426, %s25, 1
      %s428 = smul.addr %s427, 8
      %s429 = scalar_lea.vmem %s0, %s428
      %p430 = pneg %p46
      %p431 = pneg %p43
      %p432 = scmp.lt.s32.totalorder %s25, 1
      %s433 = scalar_select %p432, %s25, 1
      %s434 = smul.addr %s433, 8
      %s435 = scalar_lea.vmem %s1, %s434
      %p436 = pneg %p72
      %p437 = pneg %p69
      %p438 = pneg %p93
      %p439 = pneg %p90
      %p440 = pneg %p114
      %p441 = pneg %p111
      %p442 = pneg %p135
      %p443 = pneg %p132
      %p444 = pneg %p156
      %p445 = pneg %p153
      %p446 = pneg %p177
      %p447 = pneg %p174
      %p448 = pneg %p198
      %p449 = pneg %p195
      %p450 = pneg %p219
      %p451 = pneg %p216
      %p452 = pneg %p240
      %p453 = pneg %p237
      %p454 = pneg %p261
      %p455 = pneg %p258
      %p456 = pneg %p282
      %p457 = pneg %p279
      %p458 = pneg %p303
      %p459 = pneg %p300
      %p460 = pneg %p324
      %p461 = pneg %p321
      %p462 = pneg %p350
      %p463 = pneg %p347
      %p464 = scmp.lt.s32.totalorder %s25, 1
      %s465 = scalar_select %p464, %s25, 1
      %s466 = smul.addr %s465, 8
      %s467 = scalar_lea.vmem %s14, %s466
      %p468 = scmp.lt.s32.totalorder %s25, 1
      %s469 = scalar_select %p468, %s25, 1
      %s470 = smul.addr %s469, 8
      %s471 = scalar_lea.vmem %s0, %s470
      %p472 = scmp.lt.s32.totalorder %s25, 1
      %s473 = scalar_select %p472, %s25, 1
      %s474 = smul.addr %s473, 8
      %s475 = scalar_lea.vmem %s1, %s474
      %p476 = scmp.lt.s32.totalorder %s25, 1
      %s477 = scalar_select %p476, %s25, 1
      %s478 = smul.addr %s477, 8
      %s479 = scalar_lea.vmem %s14, %s478
      %v481 = vld [vmem:[%s471] sm:$0xff]
      %v482 = vld [vmem:[%s475] sm:$0x1f]
      %v483 = vld [vmem:[%s2] sm:$0x1]
      %v484 = vld [vmem:[%s3] sm:$0x1]
      %vm485 = vcmask 261120
      %v486 = vsel %vm485, %v481, 0.0
      %487 = vadd.xlane.f32.xlu0 %v486
      %v488 = vpop.xlane.xlu0 %487
      %v489 = vrcp.pop 32.0
      %v490 = vmul.f32 %v488, %v489
      %v491 = vmul.f32 %v481, %v481
      %v492 = vsel %vm485, %v491, 0.0
      %493 = vadd.xlane.f32.xlu0 %v492
      %v494 = vpop.xlane.xlu0 %493
      %v495 = vmul.f32 %v494, %v489
      %v496 = vmul.f32 %v490, %v490
      %v497 = vsub.f32 %v495, %v496
      %v498 = vsub.f32 %v481, %v490
      %v499 = vadd.f32 %v497, 1e-05
      %v500 = vrsqrt.pop %v499
      %v501 = vmul.f32 %v498, %v500
      %v503 = vlaneseq
      %v504 = vshrl.u32 %v503, 7
      %v505 = vsub.s32 0, %v504
      %v506 = vrot.slane %v483, %v505
      %v508 = vmul.f32 %v501, %v506
      %v510 = vlaneseq
      %v511 = vshrl.u32 %v510, 7
      %v512 = vsub.s32 0, %v511
      %v513 = vrot.slane %v484, %v512
      %v515 = vadd.f32 %v508, %v513
      %vm516 = vcmask 258048
      %v517 = vsel %vm516, %v482, 0.0
      %518 = vadd.xlane.f32.xlu0 %v517
      %v519 = vpop.xlane.xlu0 %518
      %v520 = vmul.f32 %v519, %v489
      %v521 = vmul.f32 %v482, %v482
      %v522 = vsel %vm516, %v521, 0.0
      %523 = vadd.xlane.f32.xlu0 %v522
      %v524 = vpop.xlane.xlu0 %523
      %v525 = vmul.f32 %v524, %v489
      %v526 = vmul.f32 %v520, %v520
      %v527 = vsub.f32 %v525, %v526
      %v528 = vsub.f32 %v482, %v520
      %v529 = vadd.f32 %v527, 1e-05
      %v530 = vrsqrt.pop %v529
      %v531 = vmul.f32 %v528, %v530
      %v532 = vmul.f32 %v531, %v506
      %v533 = vadd.f32 %v532, %v513
      %v534 = vld [vmem:[%s4] sm:$0xf]
      %v535 = vld [vmem:[%s4 + $0x4] sm:$0xf]
      %v536 = vld [vmem:[%s4 + $0x8] sm:$0xf]
      %v537 = vld [vmem:[%s4 + $0xc] sm:$0xf]
      %v538 = vpack.c.bf16 %v515, %v515
      %v539 = vld [vmem:[%s5] sm:$0x1]
      %v541 = vlaneseq
      %v542 = vshrl.u32 %v541, 7
      %v543 = vsub.s32 0, %v542
      %v544 = vrot.slane %v539, %v543
      %v550 = vunpack.c.l.b16 %v534
      %v551 = vunpack.c.l.b16 %v535
      %v552 = vunpack.c.l.b16 %v536
      %v553 = vunpack.c.l.b16 %v537
      %v554 = vpack.c.b16 %v551, %v550
      %v555 = vpack.c.b16 %v553, %v552
      %v559 = vsel %vm485, %v538, 0
      %561 = vmatprep.subr.bf16.mxu0 0
      %562 = vmatpush1.bf16.msra.mxu0 0
      %563 = vmatprep.subr.bf16.mxu0 0
      %564 = vmatpush1.bf16.msra.mxu0 0
      %565 = vmatprep.subr.bf16.mxu0 0
      %566 = vmatpush1.bf16.msra.mxu0 0
      %567 = vmatprep.subr.bf16.mxu0 0
      %568 = vmatpush1.bf16.msra.mxu0 0
      %569 = vmatprep.subr.bf16.mxu0 0
      %570 = vmatpush1.bf16.msra.mxu0 0
      %571 = vmatprep.subr.bf16.mxu0 0
      %572 = vmatpush1.bf16.msra.mxu0 0
      %573 = vmatprep.subr.bf16.mxu0 0
      %574 = vmatpush1.bf16.msra.mxu0 %v555
      %575 = vmatprep.subr.bf16.mxu0 0
      %576 = vmatpush1.bf16.msra.mxu0 %v554
      %577 = vmatprep.subr.bf16.mxu0 0
      %578 = vmatpush2.bf16.msra.mxu0 0
      %579 = vmatprep.subr.bf16.mxu0 0
      %580 = vmatpush2.bf16.msra.mxu0 0
      %581 = vmatprep.subr.bf16.mxu0 0
      %582 = vmatpush2.bf16.msra.mxu0 0
      %583 = vmatprep.subr.bf16.mxu0 0
      %584 = vmatpush2.bf16.msra.mxu0 0
      %585 = vmatprep.subr.bf16.mxu0 0
      %586 = vmatpush2.bf16.msra.mxu0 0
      %587 = vmatprep.subr.bf16.mxu0 0
      %588 = vmatpush2.bf16.msra.mxu0 0
      %589 = vmatprep.subr.bf16.mxu0 0
      %590 = vmatpush2.bf16.msra.mxu0 0
      %591 = vmatprep.subr.bf16.mxu0 0
      %592 = vmatpush2.bf16.msra.mxu0 0
      %593 = vmatprep.mubr.bf16.mxu0 0
      %594 = vmatmul.mubr.bf16.gmra.mxu0 %v559
      %v595 = vpop.f32.mrf.mxu0
      %v596 = vadd.f32 %v544, %v595
      %v597 = vpop.f32.mrf.mxu0
      %v598 = vpop.f32.mrf.mxu0
      %v599 = vpop.f32.mrf.mxu0
      %600 = vdwg.mxu0
      %v601 = vpack.c.bf16 %v596, %v596
      %vm602 = vcmask 257024
      %603 = vst.msk [vmem:[#allocation2] sm:$0xf] %vm602, %v601
      %v604 = vld [vmem:[%s6] sm:$0xf]
      %v605 = vld [vmem:[%s6 + $0x4] sm:$0xf]
      %v606 = vld [vmem:[%s6 + $0x8] sm:$0xf]
      %v607 = vld [vmem:[%s6 + $0xc] sm:$0xf]
      %v608 = vpack.c.bf16 %v533, %v533
      %v609 = vld [vmem:[%s7] sm:$0x1]
      %v611 = vlaneseq
      %v612 = vshrl.u32 %v611, 7
      %v613 = vsub.s32 0, %v612
      %v614 = vrot.slane %v609, %v613
      %v620 = vunpack.c.l.b16 %v604
      %v621 = vunpack.c.l.b16 %v605
      %v622 = vunpack.c.l.b16 %v606
      %v623 = vunpack.c.l.b16 %v607
      %v624 = vpack.c.b16 %v621, %v620
      %v625 = vpack.c.b16 %v623, %v622
      %v629 = vsel %vm485, %v608, 0
      %631 = vmatprep.subr.bf16.mxu0 0
      %632 = vmatpush1.bf16.msra.mxu0 0
      %633 = vmatprep.subr.bf16.mxu0 0
      %634 = vmatpush1.bf16.msra.mxu0 0
      %635 = vmatprep.subr.bf16.mxu0 0
      %636 = vmatpush1.bf16.msra.mxu0 0
      %637 = vmatprep.subr.bf16.mxu0 0
      %638 = vmatpush1.bf16.msra.mxu0 0
      %639 = vmatprep.subr.bf16.mxu0 0
      %640 = vmatpush1.bf16.msra.mxu0 0
      %641 = vmatprep.subr.bf16.mxu0 0
      %642 = vmatpush1.bf16.msra.mxu0 0
      %643 = vmatprep.subr.bf16.mxu0 0
      %644 = vmatpush1.bf16.msra.mxu0 %v625
      %645 = vmatprep.subr.bf16.mxu0 0
      %646 = vmatpush1.bf16.msra.mxu0 %v624
      %647 = vmatprep.subr.bf16.mxu0 0
      %648 = vmatpush2.bf16.msra.mxu0 0
      %649 = vmatprep.subr.bf16.mxu0 0
      %650 = vmatpush2.bf16.msra.mxu0 0
      %651 = vmatprep.subr.bf16.mxu0 0
      %652 = vmatpush2.bf16.msra.mxu0 0
      %653 = vmatprep.subr.bf16.mxu0 0
      %654 = vmatpush2.bf16.msra.mxu0 0
      %655 = vmatprep.subr.bf16.mxu0 0
      %656 = vmatpush2.bf16.msra.mxu0 0
      %657 = vmatprep.subr.bf16.mxu0 0
      %658 = vmatpush2.bf16.msra.mxu0 0
      %659 = vmatprep.subr.bf16.mxu0 0
      %660 = vmatpush2.bf16.msra.mxu0 0
      %661 = vmatprep.subr.bf16.mxu0 0
      %662 = vmatpush2.bf16.msra.mxu0 0
      %663 = vmatprep.mubr.bf16.mxu0 0
      %664 = vmatmul.mubr.bf16.gmra.mxu0 %v629
      %v665 = vpop.f32.mrf.mxu0
      %v666 = vadd.f32 %v614, %v665
      %v667 = vpop.f32.mrf.mxu0
      %v668 = vpop.f32.mrf.mxu0
      %v669 = vpop.f32.mrf.mxu0
      %670 = vdwg.mxu0
      %v671 = vpack.c.bf16 %v666, %v666
      %vm672 = vcmask 518144
      %vm673 = vsmask.f32 2304
      %vm674 = vmand %vm672, %vm673
      %v675 = vld [vmem:[#allocation3] sm:$0x7]
      %v676 = vsel %vm674, %v671, %v675
      %677 = vst [vmem:[#allocation3] sm:$0x7] %v676
      %v678 = vld [vmem:[#allocation2] sm:$0xf]
      %v679 = vld [vmem:[#allocation3] sm:$0x7]
      %vm680 = vcmask 64512
      %v682 = vsel %vm680, %v678, 0
      %v685 = vsel %vm680, %v679, 0
      %687 = vmatprep.subr.bf16.mxu0 0
      %688 = vmatpush1.bf16.xpose.msra.mxu0 0
      %689 = vmatprep.subr.bf16.mxu0 0
      %690 = vmatpush1.bf16.xpose.msra.mxu0 0
      %691 = vmatprep.subr.bf16.mxu0 0
      %692 = vmatpush1.bf16.xpose.msra.mxu0 0
      %693 = vmatprep.subr.bf16.mxu0 0
      %694 = vmatpush1.bf16.xpose.msra.mxu0 0
      %695 = vmatprep.subr.bf16.mxu0 0
      %696 = vmatpush1.bf16.xpose.msra.mxu0 0
      %697 = vmatprep.subr.bf16.mxu0 0
      %698 = vmatpush1.bf16.xpose.msra.mxu0 0
      %699 = vmatprep.subr.bf16.mxu0 0
      %700 = vmatpush1.bf16.xpose.msra.mxu0 0
      %701 = vmatprep.subr.bf16.mxu0 0
      %702 = vmatpush1.bf16.xpose.msra.mxu0 %v685
      %703 = vmatprep.subr.bf16.mxu0 0
      %704 = vmatpush2.bf16.xpose.msra.mxu0 0
      %705 = vmatprep.subr.bf16.mxu0 0
      %706 = vmatpush2.bf16.xpose.msra.mxu0 0
      %707 = vmatprep.subr.bf16.mxu0 0
      %708 = vmatpush2.bf16.xpose.msra.mxu0 0
      %709 = vmatprep.subr.bf16.mxu0 0
      %710 = vmatpush2.bf16.xpose.msra.mxu0 0
      %711 = vmatprep.subr.bf16.mxu0 0
      %712 = vmatpush2.bf16.xpose.msra.mxu0 0
      %713 = vmatprep.subr.bf16.mxu0 0
      %714 = vmatpush2.bf16.xpose.msra.mxu0 0
      %715 = vmatprep.subr.bf16.mxu0 0
      %716 = vmatpush2.bf16.xpose.msra.mxu0 0
      %717 = vmatprep.subr.bf16.mxu0 0
      %718 = vmatpush2.bf16.xpose.msra.mxu0 0
      %719 = vmatprep.mubr.bf16.mxu0 0
      %720 = vmatmul.mubr.bf16.gmra.mxu0 %v682
      %v721 = vpop.f32.mrf.mxu0
      %v722 = vadd.f32 0.0, %v721
      %v723 = vpop.f32.mrf.mxu0
      %v724 = vpop.f32.mrf.mxu0
      %v725 = vpop.f32.mrf.mxu0
      %726 = vdwg.mxu0
      %vm727 = vcmask 39936
      %v728 = vsel %vm727, %v722, -inf
      %729 = vmax.xlane.f32.xlu0 %v728
      %v730 = vpop.xlane.xlu0 %729
      %v731 = vsub.f32 %v722, %v730
      %v732 = vmul.f32 %v731, 1.442695
      %v733 = vpow.pop %v732
      %v734 = vsel %vm727, %v733, 0.0
      %735 = vadd.xlane.f32.xlu0 %v734
      %v736 = vpop.xlane.xlu0 %735
      %v737 = vrcp.pop %v736
      %v738 = vmul.f32 %v733, %v737
      %v739 = vpack.c.bf16 %v738, %v738
      %v741 = vunpack.c.l.b16 %v679
      %v742 = vpack.c.b16 %v741, %v741
      %743 = vrot.lane.b32.xlu0 %v742, 96
      %v744 = vpop.permute.xlu0 %743
      %v746 = vsel %vm727, %v739, 0
      %vm748 = vcmask 1041408
      %vm749 = vcmask 1042432
      %v750 = vsel %vm748, 4294967295, 65535
      %v751 = vsel %vm749, %v750, 0
      %v753 = vand.u32 %v744, %v751
      %755 = vmatprep.subr.bf16.mxu0 0
      %756 = vmatpush1.bf16.msra.mxu0 0
      %757 = vmatprep.subr.bf16.mxu0 0
      %758 = vmatpush1.bf16.msra.mxu0 0
      %759 = vmatprep.subr.bf16.mxu0 0
      %760 = vmatpush1.bf16.msra.mxu0 0
      %761 = vmatprep.subr.bf16.mxu0 0
      %762 = vmatpush1.bf16.msra.mxu0 0
      %763 = vmatprep.subr.bf16.mxu0 0
      %764 = vmatpush1.bf16.msra.mxu0 0
      %765 = vmatprep.subr.bf16.mxu0 0
      %766 = vmatpush1.bf16.msra.mxu0 0
      %767 = vmatprep.subr.bf16.mxu0 0
      %768 = vmatpush1.bf16.msra.mxu0 0
      %769 = vmatprep.subr.bf16.mxu0 0
      %770 = vmatpush1.bf16.msra.mxu0 %v753
      %771 = vmatprep.subr.bf16.mxu0 0
      %772 = vmatpush2.bf16.msra.mxu0 0
      %773 = vmatprep.subr.bf16.mxu0 0
      %774 = vmatpush2.bf16.msra.mxu0 0
      %775 = vmatprep.subr.bf16.mxu0 0
      %776 = vmatpush2.bf16.msra.mxu0 0
      %777 = vmatprep.subr.bf16.mxu0 0
      %778 = vmatpush2.bf16.msra.mxu0 0
      %779 = vmatprep.subr.bf16.mxu0 0
      %780 = vmatpush2.bf16.msra.mxu0 0
      %781 = vmatprep.subr.bf16.mxu0 0
      %782 = vmatpush2.bf16.msra.mxu0 0
      %783 = vmatprep.subr.bf16.mxu0 0
      %784 = vmatpush2.bf16.msra.mxu0 0
      %785 = vmatprep.subr.bf16.mxu0 0
      %786 = vmatpush2.bf16.msra.mxu0 0
      %787 = vmatprep.mubr.bf16.mxu0 0
      %788 = vmatmul.mubr.bf16.gmra.mxu0 %v746
      %v789 = vpop.f32.mrf.mxu0
      %v790 = vadd.f32 0.0, %v789
      %v791 = vpop.f32.mrf.mxu0
      %v792 = vpop.f32.mrf.mxu0
      %v793 = vpop.f32.mrf.mxu0
      %794 = vdwg.mxu0
      %795 = vst.msk [vmem:[#allocation4] sm:$0xff] %vm680, %v790
      %v796 = vld [vmem:[#allocation2] sm:$0xf]
      %v797 = vld [vmem:[#allocation3] sm:$0x7]
      %v799 = vunpack.c.l.b16 %v796
      %v800 = vpack.c.b16 %v799, %v799
      %801 = vrot.lane.b32.xlu0 %v800, 120
      %v802 = vpop.permute.xlu0 %801
      %v804 = vunpack.c.l.b16 %v797
      %v805 = vpack.c.b16 %v804, %v804
      %806 = vrot.lane.b32.xlu0 %v805, 120
      %v807 = vpop.permute.xlu0 %806
      %v809 = vsel %vm680, %v802, 0
      %v812 = vsel %vm680, %v807, 0
      %814 = vmatprep.subr.bf16.mxu0 0
      %815 = vmatpush1.bf16.xpose.msra.mxu0 0
      %816 = vmatprep.subr.bf16.mxu0 0
      %817 = vmatpush1.bf16.xpose.msra.mxu0 0
      %818 = vmatprep.subr.bf16.mxu0 0
      %819 = vmatpush1.bf16.xpose.msra.mxu0 0
      %820 = vmatprep.subr.bf16.mxu0 0
      %821 = vmatpush1.bf16.xpose.msra.mxu0 0
      %822 = vmatprep.subr.bf16.mxu0 0
      %823 = vmatpush1.bf16.xpose.msra.mxu0 0
      %824 = vmatprep.subr.bf16.mxu0 0
      %825 = vmatpush1.bf16.xpose.msra.mxu0 0
      %826 = vmatprep.subr.bf16.mxu0 0
      %827 = vmatpush1.bf16.xpose.msra.mxu0 0
      %828 = vmatprep.subr.bf16.mxu0 0
      %829 = vmatpush1.bf16.xpose.msra.mxu0 %v812
      %830 = vmatprep.subr.bf16.mxu0 0
      %831 = vmatpush2.bf16.xpose.msra.mxu0 0
      %832 = vmatprep.subr.bf16.mxu0 0
      %833 = vmatpush2.bf16.xpose.msra.mxu0 0
      %834 = vmatprep.subr.bf16.mxu0 0
      %835 = vmatpush2.bf16.xpose.msra.mxu0 0
      %836 = vmatprep.subr.bf16.mxu0 0
      %837 = vmatpush2.bf16.xpose.msra.mxu0 0
      %838 = vmatprep.subr.bf16.mxu0 0
      %839 = vmatpush2.bf16.xpose.msra.mxu0 0
      %840 = vmatprep.subr.bf16.mxu0 0
      %841 = vmatpush2.bf16.xpose.msra.mxu0 0
      %842 = vmatprep.subr.bf16.mxu0 0
      %843 = vmatpush2.bf16.xpose.msra.mxu0 0
      %844 = vmatprep.subr.bf16.mxu0 0
      %845 = vmatpush2.bf16.xpose.msra.mxu0 0
      %846 = vmatprep.mubr.bf16.mxu0 0
      %847 = vmatmul.mubr.bf16.gmra.mxu0 %v809
      %v848 = vpop.f32.mrf.mxu0
      %v849 = vadd.f32 0.0, %v848
      %v850 = vpop.f32.mrf.mxu0
      %v851 = vpop.f32.mrf.mxu0
      %v852 = vpop.f32.mrf.mxu0
      %853 = vdwg.mxu0
      %v854 = vsel %vm727, %v849, -inf
      %855 = vmax.xlane.f32.xlu0 %v854
      %v856 = vpop.xlane.xlu0 %855
      %v857 = vsub.f32 %v849, %v856
      %v858 = vmul.f32 %v857, 1.442695
      %v859 = vpow.pop %v858
      %v860 = vsel %vm727, %v859, 0.0
      %861 = vadd.xlane.f32.xlu0 %v860
      %v862 = vpop.xlane.xlu0 %861
      %v863 = vrcp.pop %v862
      %v864 = vmul.f32 %v859, %v863
      %v865 = vpack.c.bf16 %v864, %v864
      %866 = vrot.lane.b32.xlu0 %v805, 88
      %v867 = vpop.permute.xlu0 %866
      %v869 = vsel %vm727, %v865, 0
      %v872 = vand.u32 %v867, %v751
      %874 = vmatprep.subr.bf16.mxu0 0
      %875 = vmatpush1.bf16.msra.mxu0 0
      %876 = vmatprep.subr.bf16.mxu0 0
      %877 = vmatpush1.bf16.msra.mxu0 0
      %878 = vmatprep.subr.bf16.mxu0 0
      %879 = vmatpush1.bf16.msra.mxu0 0
      %880 = vmatprep.subr.bf16.mxu0 0
      %881 = vmatpush1.bf16.msra.mxu0 0
      %882 = vmatprep.subr.bf16.mxu0 0
      %883 = vmatpush1.bf16.msra.mxu0 0
      %884 = vmatprep.subr.bf16.mxu0 0
      %885 = vmatpush1.bf16.msra.mxu0 0
      %886 = vmatprep.subr.bf16.mxu0 0
      %887 = vmatpush1.bf16.msra.mxu0 0
      %888 = vmatprep.subr.bf16.mxu0 0
      %889 = vmatpush1.bf16.msra.mxu0 %v872
      %890 = vmatprep.subr.bf16.mxu0 0
      %891 = vmatpush2.bf16.msra.mxu0 0
      %892 = vmatprep.subr.bf16.mxu0 0
      %893 = vmatpush2.bf16.msra.mxu0 0
      %894 = vmatprep.subr.bf16.mxu0 0
      %895 = vmatpush2.bf16.msra.mxu0 0
      %896 = vmatprep.subr.bf16.mxu0 0
      %897 = vmatpush2.bf16.msra.mxu0 0
      %898 = vmatprep.subr.bf16.mxu0 0
      %899 = vmatpush2.bf16.msra.mxu0 0
      %900 = vmatprep.subr.bf16.mxu0 0
      %901 = vmatpush2.bf16.msra.mxu0 0
      %902 = vmatprep.subr.bf16.mxu0 0
      %903 = vmatpush2.bf16.msra.mxu0 0
      %904 = vmatprep.subr.bf16.mxu0 0
      %905 = vmatpush2.bf16.msra.mxu0 0
      %906 = vmatprep.mubr.bf16.mxu0 0
      %907 = vmatmul.mubr.bf16.gmra.mxu0 %v869
      %v908 = vpop.f32.mrf.mxu0
      %v909 = vadd.f32 0.0, %v908
      %v910 = vpop.f32.mrf.mxu0
      %v911 = vpop.f32.mrf.mxu0
      %v912 = vpop.f32.mrf.mxu0
      %913 = vdwg.mxu0
      %915 = vrot.lane.b32.xlu0 %v909, 8
      %v916 = vpop.permute.xlu0 %915
      %vm918 = vcmask 130112
      %919 = vst.msk [vmem:[#allocation4] sm:$0xff] %vm918, %v916
      %v920 = vld [vmem:[#allocation2] sm:$0xf]
      %v921 = vld [vmem:[#allocation3] sm:$0x7]
      %v923 = vunpack.c.l.b16 %v920
      %v924 = vpack.c.b16 %v923, %v923
      %925 = vrot.lane.b32.xlu0 %v924, 112
      %v926 = vpop.permute.xlu0 %925
      %v928 = vunpack.c.l.b16 %v921
      %v929 = vpack.c.b16 %v928, %v928
      %930 = vrot.lane.b32.xlu0 %v929, 112
      %v931 = vpop.permute.xlu0 %930
      %v933 = vsel %vm680, %v926, 0
      %v936 = vsel %vm680, %v931, 0
      %938 = vmatprep.subr.bf16.mxu0 0
      %939 = vmatpush1.bf16.xpose.msra.mxu0 0
      %940 = vmatprep.subr.bf16.mxu0 0
      %941 = vmatpush1.bf16.xpose.msra.mxu0 0
      %942 = vmatprep.subr.bf16.mxu0 0
      %943 = vmatpush1.bf16.xpose.msra.mxu0 0
      %944 = vmatprep.subr.bf16.mxu0 0
      %945 = vmatpush1.bf16.xpose.msra.mxu0 0
      %946 = vmatprep.subr.bf16.mxu0 0
      %947 = vmatpush1.bf16.xpose.msra.mxu0 0
      %948 = vmatprep.subr.bf16.mxu0 0
      %949 = vmatpush1.bf16.xpose.msra.mxu0 0
      %950 = vmatprep.subr.bf16.mxu0 0
      %951 = vmatpush1.bf16.xpose.msra.mxu0 0
      %952 = vmatprep.subr.bf16.mxu0 0
      %953 = vmatpush1.bf16.xpose.msra.mxu0 %v936
      %954 = vmatprep.subr.bf16.mxu0 0
      %955 = vmatpush2.bf16.xpose.msra.mxu0 0
      %956 = vmatprep.subr.bf16.mxu0 0
      %957 = vmatpush2.bf16.xpose.msra.mxu0 0
      %958 = vmatprep.subr.bf16.mxu0 0
      %959 = vmatpush2.bf16.xpose.msra.mxu0 0
      %960 = vmatprep.subr.bf16.mxu0 0
      %961 = vmatpush2.bf16.xpose.msra.mxu0 0
      %962 = vmatprep.subr.bf16.mxu0 0
      %963 = vmatpush2.bf16.xpose.msra.mxu0 0
      %964 = vmatprep.subr.bf16.mxu0 0
      %965 = vmatpush2.bf16.xpose.msra.mxu0 0
      %966 = vmatprep.subr.bf16.mxu0 0
      %967 = vmatpush2.bf16.xpose.msra.mxu0 0
      %968 = vmatprep.subr.bf16.mxu0 0
      %969 = vmatpush2.bf16.xpose.msra.mxu0 0
      %970 = vmatprep.mubr.bf16.mxu0 0
      %971 = vmatmul.mubr.bf16.gmra.mxu0 %v933
      %v972 = vpop.f32.mrf.mxu0
      %v973 = vadd.f32 0.0, %v972
      %v974 = vpop.f32.mrf.mxu0
      %v975 = vpop.f32.mrf.mxu0
      %v976 = vpop.f32.mrf.mxu0
      %977 = vdwg.mxu0
      %v978 = vsel %vm727, %v973, -inf
      %979 = vmax.xlane.f32.xlu0 %v978
      %v980 = vpop.xlane.xlu0 %979
      %v981 = vsub.f32 %v973, %v980
      %v982 = vmul.f32 %v981, 1.442695
      %v983 = vpow.pop %v982
      %v984 = vsel %vm727, %v983, 0.0
      %985 = vadd.xlane.f32.xlu0 %v984
      %v986 = vpop.xlane.xlu0 %985
      %v987 = vrcp.pop %v986
      %v988 = vmul.f32 %v983, %v987
      %v989 = vpack.c.bf16 %v988, %v988
      %990 = vrot.lane.b32.xlu0 %v929, 80
      %v991 = vpop.permute.xlu0 %990
      %v993 = vsel %vm727, %v989, 0
      %v996 = vand.u32 %v991, %v751
      %998 = vmatprep.subr.bf16.mxu0 0
      %999 = vmatpush1.bf16.msra.mxu0 0
      %1000 = vmatprep.subr.bf16.mxu0 0
      %1001 = vmatpush1.bf16.msra.mxu0 0
      %1002 = vmatprep.subr.bf16.mxu0 0
      %1003 = vmatpush1.bf16.msra.mxu0 0
      %1004 = vmatprep.subr.bf16.mxu0 0
      %1005 = vmatpush1.bf16.msra.mxu0 0
      %1006 = vmatprep.subr.bf16.mxu0 0
      %1007 = vmatpush1.bf16.msra.mxu0 0
      %1008 = vmatprep.subr.bf16.mxu0 0
      %1009 = vmatpush1.bf16.msra.mxu0 0
      %1010 = vmatprep.subr.bf16.mxu0 0
      %1011 = vmatpush1.bf16.msra.mxu0 0
      %1012 = vmatprep.subr.bf16.mxu0 0
      %1013 = vmatpush1.bf16.msra.mxu0 %v996
      %1014 = vmatprep.subr.bf16.mxu0 0
      %1015 = vmatpush2.bf16.msra.mxu0 0
      %1016 = vmatprep.subr.bf16.mxu0 0
      %1017 = vmatpush2.bf16.msra.mxu0 0
      %1018 = vmatprep.subr.bf16.mxu0 0
      %1019 = vmatpush2.bf16.msra.mxu0 0
      %1020 = vmatprep.subr.bf16.mxu0 0
      %1021 = vmatpush2.bf16.msra.mxu0 0
      %1022 = vmatprep.subr.bf16.mxu0 0
      %1023 = vmatpush2.bf16.msra.mxu0 0
      %1024 = vmatprep.subr.bf16.mxu0 0
      %1025 = vmatpush2.bf16.msra.mxu0 0
      %1026 = vmatprep.subr.bf16.mxu0 0
      %1027 = vmatpush2.bf16.msra.mxu0 0
      %1028 = vmatprep.subr.bf16.mxu0 0
      %1029 = vmatpush2.bf16.msra.mxu0 0
      %1030 = vmatprep.mubr.bf16.mxu0 0
      %1031 = vmatmul.mubr.bf16.gmra.mxu0 %v993
      %v1032 = vpop.f32.mrf.mxu0
      %v1033 = vadd.f32 0.0, %v1032
      %v1034 = vpop.f32.mrf.mxu0
      %v1035 = vpop.f32.mrf.mxu0
      %v1036 = vpop.f32.mrf.mxu0
      %1037 = vdwg.mxu0
      %1039 = vrot.lane.b32.xlu0 %v1033, 16
      %v1040 = vpop.permute.xlu0 %1039
      %vm1042 = vcmask 195712
      %1043 = vst.msk [vmem:[#allocation4] sm:$0xff] %vm1042, %v1040
      %v1044 = vld [vmem:[#allocation2] sm:$0xf]
      %v1045 = vld [vmem:[#allocation3] sm:$0x7]
      %v1047 = vunpack.c.l.b16 %v1044
      %v1048 = vpack.c.b16 %v1047, %v1047
      %1049 = vrot.lane.b32.xlu0 %v1048, 104
      %v1050 = vpop.permute.xlu0 %1049
      %v1052 = vunpack.c.l.b16 %v1045
      %v1053 = vpack.c.b16 %v1052, %v1052
      %1054 = vrot.lane.b32.xlu0 %v1053, 104
      %v1055 = vpop.permute.xlu0 %1054
      %v1057 = vsel %vm680, %v1050, 0
      %v1060 = vsel %vm680, %v1055, 0
      %1062 = vmatprep.subr.bf16.mxu0 0
      %1063 = vmatpush1.bf16.xpose.msra.mxu0 0
      %1064 = vmatprep.subr.bf16.mxu0 0
      %1065 = vmatpush1.bf16.xpose.msra.mxu0 0
      %1066 = vmatprep.subr.bf16.mxu0 0
      %1067 = vmatpush1.bf16.xpose.msra.mxu0 0
      %1068 = vmatprep.subr.bf16.mxu0 0
      %1069 = vmatpush1.bf16.xpose.msra.mxu0 0
      %1070 = vmatprep.subr.bf16.mxu0 0
      %1071 = vmatpush1.bf16.xpose.msra.mxu0 0
      %1072 = vmatprep.subr.bf16.mxu0 0
      %1073 = vmatpush1.bf16.xpose.msra.mxu0 0
      %1074 = vmatprep.subr.bf16.mxu0 0
      %1075 = vmatpush1.bf16.xpose.msra.mxu0 0
      %1076 = vmatprep.subr.bf16.mxu0 0
      %1077 = vmatpush1.bf16.xpose.msra.mxu0 %v1060
      %1078 = vmatprep.subr.bf16.mxu0 0
      %1079 = vmatpush2.bf16.xpose.msra.mxu0 0
      %1080 = vmatprep.subr.bf16.mxu0 0
      %1081 = vmatpush2.bf16.xpose.msra.mxu0 0
      %1082 = vmatprep.subr.bf16.mxu0 0
      %1083 = vmatpush2.bf16.xpose.msra.mxu0 0
      %1084 = vmatprep.subr.bf16.mxu0 0
      %1085 = vmatpush2.bf16.xpose.msra.mxu0 0
      %1086 = vmatprep.subr.bf16.mxu0 0
      %1087 = vmatpush2.bf16.xpose.msra.mxu0 0
      %1088 = vmatprep.subr.bf16.mxu0 0
      %1089 = vmatpush2.bf16.xpose.msra.mxu0 0
      %1090 = vmatprep.subr.bf16.mxu0 0
      %1091 = vmatpush2.bf16.xpose.msra.mxu0 0
      %1092 = vmatprep.subr.bf16.mxu0 0
      %1093 = vmatpush2.bf16.xpose.msra.mxu0 0
      %1094 = vmatprep.mubr.bf16.mxu0 0
      %1095 = vmatmul.mubr.bf16.gmra.mxu0 %v1057
      %v1096 = vpop.f32.mrf.mxu0
      %v1097 = vadd.f32 0.0, %v1096
      %v1098 = vpop.f32.mrf.mxu0
      %v1099 = vpop.f32.mrf.mxu0
      %v1100 = vpop.f32.mrf.mxu0
      %1101 = vdwg.mxu0
      %v1102 = vsel %vm727, %v1097, -inf
      %1103 = vmax.xlane.f32.xlu0 %v1102
      %v1104 = vpop.xlane.xlu0 %1103
      %v1105 = vsub.f32 %v1097, %v1104
      %v1106 = vmul.f32 %v1105, 1.442695
      %v1107 = vpow.pop %v1106
      %v1108 = vsel %vm727, %v1107, 0.0
      %1109 = vadd.xlane.f32.xlu0 %v1108
      %v1110 = vpop.xlane.xlu0 %1109
      %v1111 = vrcp.pop %v1110
      %v1112 = vmul.f32 %v1107, %v1111
      %v1113 = vpack.c.bf16 %v1112, %v1112
      %1114 = vrot.lane.b32.xlu0 %v1053, 72
      %v1115 = vpop.permute.xlu0 %1114
      %v1117 = vsel %vm727, %v1113, 0
      %v1120 = vand.u32 %v1115, %v751
      %1122 = vmatprep.subr.bf16.mxu0 0
      %1123 = vmatpush1.bf16.msra.mxu0 0
      %1124 = vmatprep.subr.bf16.mxu0 0
      %1125 = vmatpush1.bf16.msra.mxu0 0
      %1126 = vmatprep.subr.bf16.mxu0 0
      %1127 = vmatpush1.bf16.msra.mxu0 0
      %1128 = vmatprep.subr.bf16.mxu0 0
      %1129 = vmatpush1.bf16.msra.mxu0 0
      %1130 = vmatprep.subr.bf16.mxu0 0
      %1131 = vmatpush1.bf16.msra.mxu0 0
      %1132 = vmatprep.subr.bf16.mxu0 0
      %1133 = vmatpush1.bf16.msra.mxu0 0
      %1134 = vmatprep.subr.bf16.mxu0 0
      %1135 = vmatpush1.bf16.msra.mxu0 0
      %1136 = vmatprep.subr.bf16.mxu0 0
      %1137 = vmatpush1.bf16.msra.mxu0 %v1120
      %1138 = vmatprep.subr.bf16.mxu0 0
      %1139 = vmatpush2.bf16.msra.mxu0 0
      %1140 = vmatprep.subr.bf16.mxu0 0
      %1141 = vmatpush2.bf16.msra.mxu0 0
      %1142 = vmatprep.subr.bf16.mxu0 0
      %1143 = vmatpush2.bf16.msra.mxu0 0
      %1144 = vmatprep.subr.bf16.mxu0 0
      %1145 = vmatpush2.bf16.msra.mxu0 0
      %1146 = vmatprep.subr.bf16.mxu0 0
      %1147 = vmatpush2.bf16.msra.mxu0 0
      %1148 = vmatprep.subr.bf16.mxu0 0
      %1149 = vmatpush2.bf16.msra.mxu0 0
      %1150 = vmatprep.subr.bf16.mxu0 0
      %1151 = vmatpush2.bf16.msra.mxu0 0
      %1152 = vmatprep.subr.bf16.mxu0 0
      %1153 = vmatpush2.bf16.msra.mxu0 0
      %1154 = vmatprep.mubr.bf16.mxu0 0
      %1155 = vmatmul.mubr.bf16.gmra.mxu0 %v1117
      %v1156 = vpop.f32.mrf.mxu0
      %v1157 = vadd.f32 0.0, %v1156
      %v1158 = vpop.f32.mrf.mxu0
      %v1159 = vpop.f32.mrf.mxu0
      %v1160 = vpop.f32.mrf.mxu0
      %1161 = vdwg.mxu0
      %1163 = vrot.lane.b32.xlu0 %v1157, 24
      %v1164 = vpop.permute.xlu0 %1163
      %vm1166 = vcmask 261312
      %1167 = vst.msk [vmem:[#allocation4] sm:$0xff] %vm1166, %v1164
      %v1168 = vld [vmem:[#allocation4] sm:$0xff]
      %v1169 = vld [vmem:[%s8] sm:$0xf]
      %v1170 = vld [vmem:[%s8 + $0x4] sm:$0xf]
      %v1171 = vld [vmem:[%s8 + $0x8] sm:$0xf]
      %v1172 = vld [vmem:[%s8 + $0xc] sm:$0xf]
      %v1173 = vpack.c.bf16 %v1168, %v1168
      %v1178 = vunpack.c.l.b16 %v1169
      %v1179 = vunpack.c.l.b16 %v1170
      %v1180 = vunpack.c.l.b16 %v1171
      %v1181 = vunpack.c.l.b16 %v1172
      %v1182 = vpack.c.b16 %v1179, %v1178
      %v1183 = vpack.c.b16 %v1181, %v1180
      %v1187 = vsel %vm485, %v1173, 0
      %1189 = vmatprep.subr.bf16.mxu0 0
      %1190 = vmatpush1.bf16.msra.mxu0 0
      %1191 = vmatprep.subr.bf16.mxu0 0
      %1192 = vmatpush1.bf16.msra.mxu0 0
      %1193 = vmatprep.subr.bf16.mxu0 0
      %1194 = vmatpush1.bf16.msra.mxu0 0
      %1195 = vmatprep.subr.bf16.mxu0 0
      %1196 = vmatpush1.bf16.msra.mxu0 0
      %1197 = vmatprep.subr.bf16.mxu0 0
      %1198 = vmatpush1.bf16.msra.mxu0 0
      %1199 = vmatprep.subr.bf16.mxu0 0
      %1200 = vmatpush1.bf16.msra.mxu0 0
      %1201 = vmatprep.subr.bf16.mxu0 0
      %1202 = vmatpush1.bf16.msra.mxu0 %v1183
      %1203 = vmatprep.subr.bf16.mxu0 0
      %1204 = vmatpush1.bf16.msra.mxu0 %v1182
      %1205 = vmatprep.subr.bf16.mxu0 0
      %1206 = vmatpush2.bf16.msra.mxu0 0
      %1207 = vmatprep.subr.bf16.mxu0 0
      %1208 = vmatpush2.bf16.msra.mxu0 0
      %1209 = vmatprep.subr.bf16.mxu0 0
      %1210 = vmatpush2.bf16.msra.mxu0 0
      %1211 = vmatprep.subr.bf16.mxu0 0
      %1212 = vmatpush2.bf16.msra.mxu0 0
      %1213 = vmatprep.subr.bf16.mxu0 0
      %1214 = vmatpush2.bf16.msra.mxu0 0
      %1215 = vmatprep.subr.bf16.mxu0 0
      %1216 = vmatpush2.bf16.msra.mxu0 0
      %1217 = vmatprep.subr.bf16.mxu0 0
      %1218 = vmatpush2.bf16.msra.mxu0 0
      %1219 = vmatprep.subr.bf16.mxu0 0
      %1220 = vmatpush2.bf16.msra.mxu0 0
      %1221 = vmatprep.mubr.bf16.mxu0 0
      %1222 = vmatmul.mubr.bf16.gmra.mxu0 %v1187
      %v1223 = vpop.f32.mrf.mxu0
      %v1224 = vadd.f32 0.0, %v1223
      %v1225 = vpop.f32.mrf.mxu0
      %v1226 = vpop.f32.mrf.mxu0
      %v1227 = vpop.f32.mrf.mxu0
      %1228 = vdwg.mxu0
      %v1229 = vadd.f32 %v481, %v1224
      %v1230 = vld [vmem:[%s9] sm:$0x1]
      %v1232 = vlaneseq
      %v1233 = vshrl.u32 %v1232, 7
      %v1234 = vsub.s32 0, %v1233
      %v1235 = vrot.slane %v1230, %v1234
      %v1237 = vadd.f32 %v1229, %v1235
      %v1238 = vld [vmem:[%s2] sm:$0x1]
      %v1239 = vld [vmem:[%s3] sm:$0x1]
      %v1240 = vsel %vm485, %v1237, 0.0
      %1241 = vadd.xlane.f32.xlu0 %v1240
      %v1242 = vpop.xlane.xlu0 %1241
      %v1243 = vmul.f32 %v1242, %v489
      %v1244 = vmul.f32 %v1237, %v1237
      %v1245 = vsel %vm485, %v1244, 0.0
      %1246 = vadd.xlane.f32.xlu0 %v1245
      %v1247 = vpop.xlane.xlu0 %1246
      %v1248 = vmul.f32 %v1247, %v489
      %v1249 = vmul.f32 %v1243, %v1243
      %v1250 = vsub.f32 %v1248, %v1249
      %v1251 = vsub.f32 %v1237, %v1243
      %v1252 = vadd.f32 %v1250, 1e-05
      %v1253 = vrsqrt.pop %v1252
      %v1254 = vmul.f32 %v1251, %v1253
      %v1256 = vlaneseq
      %v1257 = vshrl.u32 %v1256, 7
      %v1258 = vsub.s32 0, %v1257
      %v1259 = vrot.slane %v1238, %v1258
      %v1261 = vmul.f32 %v1254, %v1259
      %v1263 = vlaneseq
      %v1264 = vshrl.u32 %v1263, 7
      %v1265 = vsub.s32 0, %v1264
      %v1266 = vrot.slane %v1239, %v1265
      %v1268 = vadd.f32 %v1261, %v1266
      %v1269 = vld [vmem:[%s10] sm:$0xf]
      %v1270 = vld [vmem:[%s10 + $0x4] sm:$0xf]
      %v1271 = vld [vmem:[%s10 + $0x8] sm:$0xf]
      %v1272 = vld [vmem:[%s10 + $0xc] sm:$0xf]
      %v1273 = vpack.c.bf16 %v1268, %v1268
      %v1274 = vld [vmem:[%s11] sm:$0x1]
      %v1276 = vlaneseq
      %v1277 = vshrl.u32 %v1276, 7
      %v1278 = vsub.s32 0, %v1277
      %v1279 = vrot.slane %v1274, %v1278
      %v1285 = vunpack.c.l.b16 %v1269
      %v1286 = vunpack.c.l.b16 %v1270
      %v1287 = vunpack.c.l.b16 %v1271
      %v1288 = vunpack.c.l.b16 %v1272
      %v1289 = vpack.c.b16 %v1286, %v1285
      %v1290 = vpack.c.b16 %v1288, %v1287
      %v1294 = vsel %vm485, %v1273, 0
      %1296 = vmatprep.subr.bf16.mxu0 0
      %1297 = vmatpush1.bf16.msra.mxu0 0
      %1298 = vmatprep.subr.bf16.mxu0 0
      %1299 = vmatpush1.bf16.msra.mxu0 0
      %1300 = vmatprep.subr.bf16.mxu0 0
      %1301 = vmatpush1.bf16.msra.mxu0 0
      %1302 = vmatprep.subr.bf16.mxu0 0
      %1303 = vmatpush1.bf16.msra.mxu0 0
      %1304 = vmatprep.subr.bf16.mxu0 0
      %1305 = vmatpush1.bf16.msra.mxu0 0
      %1306 = vmatprep.subr.bf16.mxu0 0
      %1307 = vmatpush1.bf16.msra.mxu0 0
      %1308 = vmatprep.subr.bf16.mxu0 0
      %1309 = vmatpush1.bf16.msra.mxu0 %v1290
      %1310 = vmatprep.subr.bf16.mxu0 0
      %1311 = vmatpush1.bf16.msra.mxu0 %v1289
      %1312 = vmatprep.subr.bf16.mxu0 0
      %1313 = vmatpush2.bf16.msra.mxu0 0
      %1314 = vmatprep.subr.bf16.mxu0 0
      %1315 = vmatpush2.bf16.msra.mxu0 0
      %1316 = vmatprep.subr.bf16.mxu0 0
      %1317 = vmatpush2.bf16.msra.mxu0 0
      %1318 = vmatprep.subr.bf16.mxu0 0
      %1319 = vmatpush2.bf16.msra.mxu0 0
      %1320 = vmatprep.subr.bf16.mxu0 0
      %1321 = vmatpush2.bf16.msra.mxu0 0
      %1322 = vmatprep.subr.bf16.mxu0 0
      %1323 = vmatpush2.bf16.msra.mxu0 0
      %1324 = vmatprep.subr.bf16.mxu0 0
      %1325 = vmatpush2.bf16.msra.mxu0 0
      %1326 = vmatprep.subr.bf16.mxu0 0
      %1327 = vmatpush2.bf16.msra.mxu0 0
      %1328 = vmatprep.mubr.bf16.mxu0 0
      %1329 = vmatmul.mubr.bf16.gmra.mxu0 %v1294
      %v1330 = vpop.f32.mrf.mxu0
      %v1331 = vadd.f32 %v1279, %v1330
      %v1332 = vpop.f32.mrf.mxu0
      %v1333 = vpop.f32.mrf.mxu0
      %v1334 = vpop.f32.mrf.mxu0
      %1335 = vdwg.mxu0
      %v1336 = vmul.f32 %v1331, 0.5
      %v1337 = vmul.f32 %v1331, 0.044715
      %v1338 = vmul.f32 %v1337, %v1331
      %v1339 = vmul.f32 %v1338, %v1331
      %v1340 = vadd.f32 %v1331, %v1339
      %v1341 = vmul.f32 %v1340, 0.7978846
      %v1342 = vtanh.pop %v1341
      %v1343 = vadd.f32 %v1342, 1.0
      %v1344 = vmul.f32 %v1336, %v1343
      %v1345 = vld [vmem:[%s12] sm:$0xf]
      %v1346 = vld [vmem:[%s12 + $0x4] sm:$0xf]
      %v1347 = vld [vmem:[%s12 + $0x8] sm:$0xf]
      %v1348 = vld [vmem:[%s12 + $0xc] sm:$0xf]
      %v1349 = vld [vmem:[%s12 + $0x10] sm:$0xf]
      %v1350 = vld [vmem:[%s12 + $0x14] sm:$0xf]
      %v1351 = vld [vmem:[%s12 + $0x18] sm:$0xf]
      %v1352 = vld [vmem:[%s12 + $0x1c] sm:$0xf]
      %v1353 = vld [vmem:[%s12 + $0x20] sm:$0xf]
      %v1354 = vld [vmem:[%s12 + $0x24] sm:$0xf]
      %v1355 = vld [vmem:[%s12 + $0x28] sm:$0xf]
      %v1356 = vld [vmem:[%s12 + $0x2c] sm:$0xf]
      %v1357 = vld [vmem:[%s12 + $0x30] sm:$0xf]
      %v1358 = vld [vmem:[%s12 + $0x34] sm:$0xf]
      %v1359 = vld [vmem:[%s12 + $0x38] sm:$0xf]
      %v1360 = vld [vmem:[%s12 + $0x3c] sm:$0xf]
      %v1361 = vpack.c.bf16 %v1344, %v1344
      %v1378 = vunpack.c.l.b16 %v1345
      %v1379 = vunpack.c.l.b16 %v1346
      %v1380 = vunpack.c.l.b16 %v1347
      %v1381 = vunpack.c.l.b16 %v1348
      %v1382 = vunpack.c.l.b16 %v1349
      %v1383 = vunpack.c.l.b16 %v1350
      %v1384 = vunpack.c.l.b16 %v1351
      %v1385 = vunpack.c.l.b16 %v1352
      %v1386 = vunpack.c.l.b16 %v1353
      %v1387 = vunpack.c.l.b16 %v1354
      %v1388 = vunpack.c.l.b16 %v1355
      %v1389 = vunpack.c.l.b16 %v1356
      %v1390 = vunpack.c.l.b16 %v1357
      %v1391 = vunpack.c.l.b16 %v1358
      %v1392 = vunpack.c.l.b16 %v1359
      %v1393 = vunpack.c.l.b16 %v1360
      %v1394 = vpack.c.b16 %v1379, %v1378
      %v1395 = vpack.c.b16 %v1381, %v1380
      %v1396 = vpack.c.b16 %v1383, %v1382
      %v1397 = vpack.c.b16 %v1385, %v1384
      %v1398 = vpack.c.b16 %v1387, %v1386
      %v1399 = vpack.c.b16 %v1389, %v1388
      %v1400 = vpack.c.b16 %v1391, %v1390
      %v1401 = vpack.c.b16 %v1393, %v1392
      %1410 = vmatprep.subr.bf16.mxu0 0
      %1411 = vmatpush1.bf16.msra.mxu0 %v1401
      %1412 = vmatprep.subr.bf16.mxu0 0
      %1413 = vmatpush1.bf16.msra.mxu0 %v1400
      %1414 = vmatprep.subr.bf16.mxu0 0
      %1415 = vmatpush1.bf16.msra.mxu0 %v1399
      %1416 = vmatprep.subr.bf16.mxu0 0
      %1417 = vmatpush1.bf16.msra.mxu0 %v1398
      %1418 = vmatprep.subr.bf16.mxu0 0
      %1419 = vmatpush1.bf16.msra.mxu0 %v1397
      %1420 = vmatprep.subr.bf16.mxu0 0
      %1421 = vmatpush1.bf16.msra.mxu0 %v1396
      %1422 = vmatprep.subr.bf16.mxu0 0
      %1423 = vmatpush1.bf16.msra.mxu0 %v1395
      %1424 = vmatprep.subr.bf16.mxu0 0
      %1425 = vmatpush1.bf16.msra.mxu0 %v1394
      %1426 = vmatprep.subr.bf16.mxu0 0
      %1427 = vmatpush2.bf16.msra.mxu0 0
      %1428 = vmatprep.subr.bf16.mxu0 0
      %1429 = vmatpush2.bf16.msra.mxu0 0
      %1430 = vmatprep.subr.bf16.mxu0 0
      %1431 = vmatpush2.bf16.msra.mxu0 0
      %1432 = vmatprep.subr.bf16.mxu0 0
      %1433 = vmatpush2.bf16.msra.mxu0 0
      %1434 = vmatprep.subr.bf16.mxu0 0
      %1435 = vmatpush2.bf16.msra.mxu0 0
      %1436 = vmatprep.subr.bf16.mxu0 0
      %1437 = vmatpush2.bf16.msra.mxu0 0
      %1438 = vmatprep.subr.bf16.mxu0 0
      %1439 = vmatpush2.bf16.msra.mxu0 0
      %1440 = vmatprep.subr.bf16.mxu0 0
      %1441 = vmatpush2.bf16.msra.mxu0 0
      %1442 = vmatprep.mubr.bf16.mxu0 0
      %1443 = vmatmul.mubr.bf16.gmra.mxu0 %v1361
      %v1444 = vpop.f32.mrf.mxu0
      %v1445 = vadd.f32 0.0, %v1444
      %v1446 = vpop.f32.mrf.mxu0
      %v1447 = vpop.f32.mrf.mxu0
      %v1448 = vpop.f32.mrf.mxu0
      %1449 = vdwg.mxu0
      %v1450 = vadd.f32 %v1237, %v1445
      %v1451 = vld [vmem:[%s13] sm:$0x1]
      %v1453 = vlaneseq
      %v1454 = vshrl.u32 %v1453, 7
      %v1455 = vsub.s32 0, %v1454
      %v1456 = vrot.slane %v1451, %v1455
      %v1458 = vadd.f32 %v1450, %v1456
      %s1459 = scalar_lea.vmem %s2, 1
      %v1460 = vld [vmem:[%s1459] sm:$0x1]
      %s1461 = scalar_lea.vmem %s3, 1
      %v1462 = vld [vmem:[%s1461] sm:$0x1]
      %v1463 = vsel %vm485, %v1458, 0.0
      %1464 = vadd.xlane.f32.xlu0 %v1463
      %v1465 = vpop.xlane.xlu0 %1464
      %v1466 = vmul.f32 %v1465, %v489
      %v1467 = vmul.f32 %v1458, %v1458
      %v1468 = vsel %vm485, %v1467, 0.0
      %1469 = vadd.xlane.f32.xlu0 %v1468
      %v1470 = vpop.xlane.xlu0 %1469
      %v1471 = vmul.f32 %v1470, %v489
      %v1472 = vmul.f32 %v1466, %v1466
      %v1473 = vsub.f32 %v1471, %v1472
      %v1474 = vsub.f32 %v1458, %v1466
      %v1475 = vadd.f32 %v1473, 1e-05
      %v1476 = vrsqrt.pop %v1475
      %v1477 = vmul.f32 %v1474, %v1476
      %v1479 = vlaneseq
      %v1480 = vshrl.u32 %v1479, 7
      %v1481 = vsub.s32 0, %v1480
      %v1482 = vrot.slane %v1460, %v1481
      %v1484 = vmul.f32 %v1477, %v1482
      %v1486 = vlaneseq
      %v1487 = vshrl.u32 %v1486, 7
      %v1488 = vsub.s32 0, %v1487
      %v1489 = vrot.slane %v1462, %v1488
      %v1491 = vadd.f32 %v1484, %v1489
      %v1492 = vmul.f32 %v531, %v1482
      %v1493 = vadd.f32 %v1492, %v1489
      %s1494 = scalar_lea.vmem %s4, 16
      %v1495 = vld [vmem:[%s1494] sm:$0xf]
      %v1496 = vld [vmem:[%s1494 + $0x4] sm:$0xf]
      %v1497 = vld [vmem:[%s1494 + $0x8] sm:$0xf]
      %v1498 = vld [vmem:[%s1494 + $0xc] sm:$0xf]
      %v1499 = vpack.c.bf16 %v1491, %v1491
      %s1500 = scalar_lea.vmem %s5, 1
      %v1501 = vld [vmem:[%s1500] sm:$0x1]
      %v1503 = vlaneseq
      %v1504 = vshrl.u32 %v1503, 7
      %v1505 = vsub.s32 0, %v1504
      %v1506 = vrot.slane %v1501, %v1505
      %v1512 = vunpack.c.l.b16 %v1495
      %v1513 = vunpack.c.l.b16 %v1496
      %v1514 = vunpack.c.l.b16 %v1497
      %v1515 = vunpack.c.l.b16 %v1498
      %v1516 = vpack.c.b16 %v1513, %v1512
      %v1517 = vpack.c.b16 %v1515, %v1514
      %v1521 = vsel %vm485, %v1499, 0
      %1523 = vmatprep.subr.bf16.mxu0 0
      %1524 = vmatpush1.bf16.msra.mxu0 0
      %1525 = vmatprep.subr.bf16.mxu0 0
      %1526 = vmatpush1.bf16.msra.mxu0 0
      %1527 = vmatprep.subr.bf16.mxu0 0
      %1528 = vmatpush1.bf16.msra.mxu0 0
      %1529 = vmatprep.subr.bf16.mxu0 0
      %1530 = vmatpush1.bf16.msra.mxu0 0
      %1531 = vmatprep.subr.bf16.mxu0 0
      %1532 = vmatpush1.bf16.msra.mxu0 0
      %1533 = vmatprep.subr.bf16.mxu0 0
      %1534 = vmatpush1.bf16.msra.mxu0 0
      %1535 = vmatprep.subr.bf16.mxu0 0
      %1536 = vmatpush1.bf16.msra.mxu0 %v1517
      %1537 = vmatprep.subr.bf16.mxu0 0
      %1538 = vmatpush1.bf16.msra.mxu0 %v1516
      %1539 = vmatprep.subr.bf16.mxu0 0
      %1540 = vmatpush2.bf16.msra.mxu0 0
      %1541 = vmatprep.subr.bf16.mxu0 0
      %1542 = vmatpush2.bf16.msra.mxu0 0
      %1543 = vmatprep.subr.bf16.mxu0 0
      %1544 = vmatpush2.bf16.msra.mxu0 0
      %1545 = vmatprep.subr.bf16.mxu0 0
      %1546 = vmatpush2.bf16.msra.mxu0 0
      %1547 = vmatprep.subr.bf16.mxu0 0
      %1548 = vmatpush2.bf16.msra.mxu0 0
      %1549 = vmatprep.subr.bf16.mxu0 0
      %1550 = vmatpush2.bf16.msra.mxu0 0
      %1551 = vmatprep.subr.bf16.mxu0 0
      %1552 = vmatpush2.bf16.msra.mxu0 0
      %1553 = vmatprep.subr.bf16.mxu0 0
      %1554 = vmatpush2.bf16.msra.mxu0 0
      %1555 = vmatprep.mubr.bf16.mxu0 0
      %1556 = vmatmul.mubr.bf16.gmra.mxu0 %v1521
      %v1557 = vpop.f32.mrf.mxu0
      %v1558 = vadd.f32 %v1506, %v1557
      %v1559 = vpop.f32.mrf.mxu0
      %v1560 = vpop.f32.mrf.mxu0
      %v1561 = vpop.f32.mrf.mxu0
      %1562 = vdwg.mxu0
      %v1563 = vpack.c.bf16 %v1558, %v1558
      %1564 = vst.msk [vmem:[#allocation2] sm:$0xf] %vm602, %v1563
      %s1565 = scalar_lea.vmem %s6, 16
      %v1566 = vld [vmem:[%s1565] sm:$0xf]
      %v1567 = vld [vmem:[%s1565 + $0x4] sm:$0xf]
      %v1568 = vld [vmem:[%s1565 + $0x8] sm:$0xf]
      %v1569 = vld [vmem:[%s1565 + $0xc] sm:$0xf]
      %v1570 = vpack.c.bf16 %v1493, %v1493
      %s1571 = scalar_lea.vmem %s7, 1
      %v1572 = vld [vmem:[%s1571] sm:$0x1]
      %v1574 = vlaneseq
      %v1575 = vshrl.u32 %v1574, 7
      %v1576 = vsub.s32 0, %v1575
      %v1577 = vrot.slane %v1572, %v1576
      %v1583 = vunpack.c.l.b16 %v1566
      %v1584 = vunpack.c.l.b16 %v1567
      %v1585 = vunpack.c.l.b16 %v1568
      %v1586 = vunpack.c.l.b16 %v1569
      %v1587 = vpack.c.b16 %v1584, %v1583
      %v1588 = vpack.c.b16 %v1586, %v1585
      %v1592 = vsel %vm485, %v1570, 0
      %1594 = vmatprep.subr.bf16.mxu0 0
      %1595 = vmatpush1.bf16.msra.mxu0 0
      %1596 = vmatprep.subr.bf16.mxu0 0
      %1597 = vmatpush1.bf16.msra.mxu0 0
      %1598 = vmatprep.subr.bf16.mxu0 0
      %1599 = vmatpush1.bf16.msra.mxu0 0
      %1600 = vmatprep.subr.bf16.mxu0 0
      %1601 = vmatpush1.bf16.msra.mxu0 0
      %1602 = vmatprep.subr.bf16.mxu0 0
      %1603 = vmatpush1.bf16.msra.mxu0 0
      %1604 = vmatprep.subr.bf16.mxu0 0
      %1605 = vmatpush1.bf16.msra.mxu0 0
      %1606 = vmatprep.subr.bf16.mxu0 0
      %1607 = vmatpush1.bf16.msra.mxu0 %v1588
      %1608 = vmatprep.subr.bf16.mxu0 0
      %1609 = vmatpush1.bf16.msra.mxu0 %v1587
      %1610 = vmatprep.subr.bf16.mxu0 0
      %1611 = vmatpush2.bf16.msra.mxu0 0
      %1612 = vmatprep.subr.bf16.mxu0 0
      %1613 = vmatpush2.bf16.msra.mxu0 0
      %1614 = vmatprep.subr.bf16.mxu0 0
      %1615 = vmatpush2.bf16.msra.mxu0 0
      %1616 = vmatprep.subr.bf16.mxu0 0
      %1617 = vmatpush2.bf16.msra.mxu0 0
      %1618 = vmatprep.subr.bf16.mxu0 0
      %1619 = vmatpush2.bf16.msra.mxu0 0
      %1620 = vmatprep.subr.bf16.mxu0 0
      %1621 = vmatpush2.bf16.msra.mxu0 0
      %1622 = vmatprep.subr.bf16.mxu0 0
      %1623 = vmatpush2.bf16.msra.mxu0 0
      %1624 = vmatprep.subr.bf16.mxu0 0
      %1625 = vmatpush2.bf16.msra.mxu0 0
      %1626 = vmatprep.mubr.bf16.mxu0 0
      %1627 = vmatmul.mubr.bf16.gmra.mxu0 %v1592
      %v1628 = vpop.f32.mrf.mxu0
      %v1629 = vadd.f32 %v1577, %v1628
      %v1630 = vpop.f32.mrf.mxu0
      %v1631 = vpop.f32.mrf.mxu0
      %v1632 = vpop.f32.mrf.mxu0
      %1633 = vdwg.mxu0
      %v1634 = vpack.c.bf16 %v1629, %v1629
      %v1635 = vld [vmem:[#allocation3] sm:$0x7]
      %v1636 = vsel %vm674, %v1634, %v1635
      %1637 = vst [vmem:[#allocation3] sm:$0x7] %v1636
      %v1638 = vld [vmem:[#allocation2] sm:$0xf]
      %v1639 = vld [vmem:[#allocation3] sm:$0x7]
      %v1641 = vsel %vm680, %v1638, 0
      %v1644 = vsel %vm680, %v1639, 0
      %1646 = vmatprep.subr.bf16.mxu0 0
      %1647 = vmatpush1.bf16.xpose.msra.mxu0 0
      %1648 = vmatprep.subr.bf16.mxu0 0
      %1649 = vmatpush1.bf16.xpose.msra.mxu0 0
      %1650 = vmatprep.subr.bf16.mxu0 0
      %1651 = vmatpush1.bf16.xpose.msra.mxu0 0
      %1652 = vmatprep.subr.bf16.mxu0 0
      %1653 = vmatpush1.bf16.xpose.msra.mxu0 0
      %1654 = vmatprep.subr.bf16.mxu0 0
      %1655 = vmatpush1.bf16.xpose.msra.mxu0 0
      %1656 = vmatprep.subr.bf16.mxu0 0
      %1657 = vmatpush1.bf16.xpose.msra.mxu0 0
      %1658 = vmatprep.subr.bf16.mxu0 0
      %1659 = vmatpush1.bf16.xpose.msra.mxu0 0
      %1660 = vmatprep.subr.bf16.mxu0 0
      %1661 = vmatpush1.bf16.xpose.msra.mxu0 %v1644
      %1662 = vmatprep.subr.bf16.mxu0 0
      %1663 = vmatpush2.bf16.xpose.msra.mxu0 0
      %1664 = vmatprep.subr.bf16.mxu0 0
      %1665 = vmatpush2.bf16.xpose.msra.mxu0 0
      %1666 = vmatprep.subr.bf16.mxu0 0
      %1667 = vmatpush2.bf16.xpose.msra.mxu0 0
      %1668 = vmatprep.subr.bf16.mxu0 0
      %1669 = vmatpush2.bf16.xpose.msra.mxu0 0
      %1670 = vmatprep.subr.bf16.mxu0 0
      %1671 = vmatpush2.bf16.xpose.msra.mxu0 0
      %1672 = vmatprep.subr.bf16.mxu0 0
      %1673 = vmatpush2.bf16.xpose.msra.mxu0 0
      %1674 = vmatprep.subr.bf16.mxu0 0
      %1675 = vmatpush2.bf16.xpose.msra.mxu0 0
      %1676 = vmatprep.subr.bf16.mxu0 0
      %1677 = vmatpush2.bf16.xpose.msra.mxu0 0
      %1678 = vmatprep.mubr.bf16.mxu0 0
      %1679 = vmatmul.mubr.bf16.gmra.mxu0 %v1641
      %v1680 = vpop.f32.mrf.mxu0
      %v1681 = vadd.f32 0.0, %v1680
      %v1682 = vpop.f32.mrf.mxu0
      %v1683 = vpop.f32.mrf.mxu0
      %v1684 = vpop.f32.mrf.mxu0
      %1685 = vdwg.mxu0
      %v1686 = vsel %vm727, %v1681, -inf
      %1687 = vmax.xlane.f32.xlu0 %v1686
      %v1688 = vpop.xlane.xlu0 %1687
      %v1689 = vsub.f32 %v1681, %v1688
      %v1690 = vmul.f32 %v1689, 1.442695
      %v1691 = vpow.pop %v1690
      %v1692 = vsel %vm727, %v1691, 0.0
      %1693 = vadd.xlane.f32.xlu0 %v1692
      %v1694 = vpop.xlane.xlu0 %1693
      %v1695 = vrcp.pop %v1694
      %v1696 = vmul.f32 %v1691, %v1695
      %v1697 = vpack.c.bf16 %v1696, %v1696
      %v1699 = vunpack.c.l.b16 %v1639
      %v1700 = vpack.c.b16 %v1699, %v1699
      %1701 = vrot.lane.b32.xlu0 %v1700, 96
      %v1702 = vpop.permute.xlu0 %1701
      %v1704 = vsel %vm727, %v1697, 0
      %v1707 = vand.u32 %v1702, %v751
      %1709 = vmatprep.subr.bf16.mxu0 0
      %1710 = vmatpush1.bf16.msra.mxu0 0
      %1711 = vmatprep.subr.bf16.mxu0 0
      %1712 = vmatpush1.bf16.msra.mxu0 0
      %1713 = vmatprep.subr.bf16.mxu0 0
      %1714 = vmatpush1.bf16.msra.mxu0 0
      %1715 = vmatprep.subr.bf16.mxu0 0
      %1716 = vmatpush1.bf16.msra.mxu0 0
      %1717 = vmatprep.subr.bf16.mxu0 0
      %1718 = vmatpush1.bf16.msra.mxu0 0
      %1719 = vmatprep.subr.bf16.mxu0 0
      %1720 = vmatpush1.bf16.msra.mxu0 0
      %1721 = vmatprep.subr.bf16.mxu0 0
      %1722 = vmatpush1.bf16.msra.mxu0 0
      %1723 = vmatprep.subr.bf16.mxu0 0
      %1724 = vmatpush1.bf16.msra.mxu0 %v1707
      %1725 = vmatprep.subr.bf16.mxu0 0
      %1726 = vmatpush2.bf16.msra.mxu0 0
      %1727 = vmatprep.subr.bf16.mxu0 0
      %1728 = vmatpush2.bf16.msra.mxu0 0
      %1729 = vmatprep.subr.bf16.mxu0 0
      %1730 = vmatpush2.bf16.msra.mxu0 0
      %1731 = vmatprep.subr.bf16.mxu0 0
      %1732 = vmatpush2.bf16.msra.mxu0 0
      %1733 = vmatprep.subr.bf16.mxu0 0
      %1734 = vmatpush2.bf16.msra.mxu0 0
      %1735 = vmatprep.subr.bf16.mxu0 0
      %1736 = vmatpush2.bf16.msra.mxu0 0
      %1737 = vmatprep.subr.bf16.mxu0 0
      %1738 = vmatpush2.bf16.msra.mxu0 0
      %1739 = vmatprep.subr.bf16.mxu0 0
      %1740 = vmatpush2.bf16.msra.mxu0 0
      %1741 = vmatprep.mubr.bf16.mxu0 0
      %1742 = vmatmul.mubr.bf16.gmra.mxu0 %v1704
      %v1743 = vpop.f32.mrf.mxu0
      %v1744 = vadd.f32 0.0, %v1743
      %v1745 = vpop.f32.mrf.mxu0
      %v1746 = vpop.f32.mrf.mxu0
      %v1747 = vpop.f32.mrf.mxu0
      %1748 = vdwg.mxu0
      %1749 = vst.msk [vmem:[#allocation4] sm:$0xff] %vm680, %v1744
      %v1750 = vld [vmem:[#allocation2] sm:$0xf]
      %v1751 = vld [vmem:[#allocation3] sm:$0x7]
      %v1753 = vunpack.c.l.b16 %v1750
      %v1754 = vpack.c.b16 %v1753, %v1753
      %1755 = vrot.lane.b32.xlu0 %v1754, 120
      %v1756 = vpop.permute.xlu0 %1755
      %v1758 = vunpack.c.l.b16 %v1751
      %v1759 = vpack.c.b16 %v1758, %v1758
      %1760 = vrot.lane.b32.xlu0 %v1759, 120
      %v1761 = vpop.permute.xlu0 %1760
      %v1763 = vsel %vm680, %v1756, 0
      %v1766 = vsel %vm680, %v1761, 0
      %1768 = vmatprep.subr.bf16.mxu0 0
      %1769 = vmatpush1.bf16.xpose.msra.mxu0 0
      %1770 = vmatprep.subr.bf16.mxu0 0
      %1771 = vmatpush1.bf16.xpose.msra.mxu0 0
      %1772 = vmatprep.subr.bf16.mxu0 0
      %1773 = vmatpush1.bf16.xpose.msra.mxu0 0
      %1774 = vmatprep.subr.bf16.mxu0 0
      %1775 = vmatpush1.bf16.xpose.msra.mxu0 0
      %1776 = vmatprep.subr.bf16.mxu0 0
      %1777 = vmatpush1.bf16.xpose.msra.mxu0 0
      %1778 = vmatprep.subr.bf16.mxu0 0
      %1779 = vmatpush1.bf16.xpose.msra.mxu0 0
      %1780 = vmatprep.subr.bf16.mxu0 0
      %1781 = vmatpush1.bf16.xpose.msra.mxu0 0
      %1782 = vmatprep.subr.bf16.mxu0 0
      %1783 = vmatpush1.bf16.xpose.msra.mxu0 %v1766
      %1784 = vmatprep.subr.bf16.mxu0 0
      %1785 = vmatpush2.bf16.xpose.msra.mxu0 0
      %1786 = vmatprep.subr.bf16.mxu0 0
      %1787 = vmatpush2.bf16.xpose.msra.mxu0 0
      %1788 = vmatprep.subr.bf16.mxu0 0
      %1789 = vmatpush2.bf16.xpose.msra.mxu0 0
      %1790 = vmatprep.subr.bf16.mxu0 0
      %1791 = vmatpush2.bf16.xpose.msra.mxu0 0
      %1792 = vmatprep.subr.bf16.mxu0 0
      %1793 = vmatpush2.bf16.xpose.msra.mxu0 0
      %1794 = vmatprep.subr.bf16.mxu0 0
      %1795 = vmatpush2.bf16.xpose.msra.mxu0 0
      %1796 = vmatprep.subr.bf16.mxu0 0
      %1797 = vmatpush2.bf16.xpose.msra.mxu0 0
      %1798 = vmatprep.subr.bf16.mxu0 0
      %1799 = vmatpush2.bf16.xpose.msra.mxu0 0
      %1800 = vmatprep.mubr.bf16.mxu0 0
      %1801 = vmatmul.mubr.bf16.gmra.mxu0 %v1763
      %v1802 = vpop.f32.mrf.mxu0
      %v1803 = vadd.f32 0.0, %v1802
      %v1804 = vpop.f32.mrf.mxu0
      %v1805 = vpop.f32.mrf.mxu0
      %v1806 = vpop.f32.mrf.mxu0
      %1807 = vdwg.mxu0
      %v1808 = vsel %vm727, %v1803, -inf
      %1809 = vmax.xlane.f32.xlu0 %v1808
      %v1810 = vpop.xlane.xlu0 %1809
      %v1811 = vsub.f32 %v1803, %v1810
      %v1812 = vmul.f32 %v1811, 1.442695
      %v1813 = vpow.pop %v1812
      %v1814 = vsel %vm727, %v1813, 0.0
      %1815 = vadd.xlane.f32.xlu0 %v1814
      %v1816 = vpop.xlane.xlu0 %1815
      %v1817 = vrcp.pop %v1816
      %v1818 = vmul.f32 %v1813, %v1817
      %v1819 = vpack.c.bf16 %v1818, %v1818
      %1820 = vrot.lane.b32.xlu0 %v1759, 88
      %v1821 = vpop.permute.xlu0 %1820
      %v1823 = vsel %vm727, %v1819, 0
      %v1826 = vand.u32 %v1821, %v751
      %1828 = vmatprep.subr.bf16.mxu0 0
      %1829 = vmatpush1.bf16.msra.mxu0 0
      %1830 = vmatprep.subr.bf16.mxu0 0
      %1831 = vmatpush1.bf16.msra.mxu0 0
      %1832 = vmatprep.subr.bf16.mxu0 0
      %1833 = vmatpush1.bf16.msra.mxu0 0
      %1834 = vmatprep.subr.bf16.mxu0 0
      %1835 = vmatpush1.bf16.msra.mxu0 0
      %1836 = vmatprep.subr.bf16.mxu0 0
      %1837 = vmatpush1.bf16.msra.mxu0 0
      %1838 = vmatprep.subr.bf16.mxu0 0
      %1839 = vmatpush1.bf16.msra.mxu0 0
      %1840 = vmatprep.subr.bf16.mxu0 0
      %1841 = vmatpush1.bf16.msra.mxu0 0
      %1842 = vmatprep.subr.bf16.mxu0 0
      %1843 = vmatpush1.bf16.msra.mxu0 %v1826
      %1844 = vmatprep.subr.bf16.mxu0 0
      %1845 = vmatpush2.bf16.msra.mxu0 0
      %1846 = vmatprep.subr.bf16.mxu0 0
      %1847 = vmatpush2.bf16.msra.mxu0 0
      %1848 = vmatprep.subr.bf16.mxu0 0
      %1849 = vmatpush2.bf16.msra.mxu0 0
      %1850 = vmatprep.subr.bf16.mxu0 0
      %1851 = vmatpush2.bf16.msra.mxu0 0
      %1852 = vmatprep.subr.bf16.mxu0 0
      %1853 = vmatpush2.bf16.msra.mxu0 0
      %1854 = vmatprep.subr.bf16.mxu0 0
      %1855 = vmatpush2.bf16.msra.mxu0 0
      %1856 = vmatprep.subr.bf16.mxu0 0
      %1857 = vmatpush2.bf16.msra.mxu0 0
      %1858 = vmatprep.subr.bf16.mxu0 0
      %1859 = vmatpush2.bf16.msra.mxu0 0
      %1860 = vmatprep.mubr.bf16.mxu0 0
      %1861 = vmatmul.mubr.bf16.gmra.mxu0 %v1823
      %v1862 = vpop.f32.mrf.mxu0
      %v1863 = vadd.f32 0.0, %v1862
      %v1864 = vpop.f32.mrf.mxu0
      %v1865 = vpop.f32.mrf.mxu0
      %v1866 = vpop.f32.mrf.mxu0
      %1867 = vdwg.mxu0
      %1869 = vrot.lane.b32.xlu0 %v1863, 8
      %v1870 = vpop.permute.xlu0 %1869
      %1872 = vst.msk [vmem:[#allocation4] sm:$0xff] %vm918, %v1870
      %v1873 = vld [vmem:[#allocation2] sm:$0xf]
      %v1874 = vld [vmem:[#allocation3] sm:$0x7]
      %v1876 = vunpack.c.l.b16 %v1873
      %v1877 = vpack.c.b16 %v1876, %v1876
      %1878 = vrot.lane.b32.xlu0 %v1877, 112
      %v1879 = vpop.permute.xlu0 %1878
      %v1881 = vunpack.c.l.b16 %v1874
      %v1882 = vpack.c.b16 %v1881, %v1881
      %1883 = vrot.lane.b32.xlu0 %v1882, 112
      %v1884 = vpop.permute.xlu0 %1883
      %v1886 = vsel %vm680, %v1879, 0
      %v1889 = vsel %vm680, %v1884, 0
      %1891 = vmatprep.subr.bf16.mxu0 0
      %1892 = vmatpush1.bf16.xpose.msra.mxu0 0
      %1893 = vmatprep.subr.bf16.mxu0 0
      %1894 = vmatpush1.bf16.xpose.msra.mxu0 0
      %1895 = vmatprep.subr.bf16.mxu0 0
      %1896 = vmatpush1.bf16.xpose.msra.mxu0 0
      %1897 = vmatprep.subr.bf16.mxu0 0
      %1898 = vmatpush1.bf16.xpose.msra.mxu0 0
      %1899 = vmatprep.subr.bf16.mxu0 0
      %1900 = vmatpush1.bf16.xpose.msra.mxu0 0
      %1901 = vmatprep.subr.bf16.mxu0 0
      %1902 = vmatpush1.bf16.xpose.msra.mxu0 0
      %1903 = vmatprep.subr.bf16.mxu0 0
      %1904 = vmatpush1.bf16.xpose.msra.mxu0 0
      %1905 = vmatprep.subr.bf16.mxu0 0
      %1906 = vmatpush1.bf16.xpose.msra.mxu0 %v1889
      %1907 = vmatprep.subr.bf16.mxu0 0
      %1908 = vmatpush2.bf16.xpose.msra.mxu0 0
      %1909 = vmatprep.subr.bf16.mxu0 0
      %1910 = vmatpush2.bf16.xpose.msra.mxu0 0
      %1911 = vmatprep.subr.bf16.mxu0 0
      %1912 = vmatpush2.bf16.xpose.msra.mxu0 0
      %1913 = vmatprep.subr.bf16.mxu0 0
      %1914 = vmatpush2.bf16.xpose.msra.mxu0 0
      %1915 = vmatprep.subr.bf16.mxu0 0
      %1916 = vmatpush2.bf16.xpose.msra.mxu0 0
      %1917 = vmatprep.subr.bf16.mxu0 0
      %1918 = vmatpush2.bf16.xpose.msra.mxu0 0
      %1919 = vmatprep.subr.bf16.mxu0 0
      %1920 = vmatpush2.bf16.xpose.msra.mxu0 0
      %1921 = vmatprep.subr.bf16.mxu0 0
      %1922 = vmatpush2.bf16.xpose.msra.mxu0 0
      %1923 = vmatprep.mubr.bf16.mxu0 0
      %1924 = vmatmul.mubr.bf16.gmra.mxu0 %v1886
      %v1925 = vpop.f32.mrf.mxu0
      %v1926 = vadd.f32 0.0, %v1925
      %v1927 = vpop.f32.mrf.mxu0
      %v1928 = vpop.f32.mrf.mxu0
      %v1929 = vpop.f32.mrf.mxu0
      %1930 = vdwg.mxu0
      %v1931 = vsel %vm727, %v1926, -inf
      %1932 = vmax.xlane.f32.xlu0 %v1931
      %v1933 = vpop.xlane.xlu0 %1932
      %v1934 = vsub.f32 %v1926, %v1933
      %v1935 = vmul.f32 %v1934, 1.442695
      %v1936 = vpow.pop %v1935
      %v1937 = vsel %vm727, %v1936, 0.0
      %1938 = vadd.xlane.f32.xlu0 %v1937
      %v1939 = vpop.xlane.xlu0 %1938
      %v1940 = vrcp.pop %v1939
      %v1941 = vmul.f32 %v1936, %v1940
      %v1942 = vpack.c.bf16 %v1941, %v1941
      %1943 = vrot.lane.b32.xlu0 %v1882, 80
      %v1944 = vpop.permute.xlu0 %1943
      %v1946 = vsel %vm727, %v1942, 0
      %v1949 = vand.u32 %v1944, %v751
      %1951 = vmatprep.subr.bf16.mxu0 0
      %1952 = vmatpush1.bf16.msra.mxu0 0
      %1953 = vmatprep.subr.bf16.mxu0 0
      %1954 = vmatpush1.bf16.msra.mxu0 0
      %1955 = vmatprep.subr.bf16.mxu0 0
      %1956 = vmatpush1.bf16.msra.mxu0 0
      %1957 = vmatprep.subr.bf16.mxu0 0
      %1958 = vmatpush1.bf16.msra.mxu0 0
      %1959 = vmatprep.subr.bf16.mxu0 0
      %1960 = vmatpush1.bf16.msra.mxu0 0
      %1961 = vmatprep.subr.bf16.mxu0 0
      %1962 = vmatpush1.bf16.msra.mxu0 0
      %1963 = vmatprep.subr.bf16.mxu0 0
      %1964 = vmatpush1.bf16.msra.mxu0 0
      %1965 = vmatprep.subr.bf16.mxu0 0
      %1966 = vmatpush1.bf16.msra.mxu0 %v1949
      %1967 = vmatprep.subr.bf16.mxu0 0
      %1968 = vmatpush2.bf16.msra.mxu0 0
      %1969 = vmatprep.subr.bf16.mxu0 0
      %1970 = vmatpush2.bf16.msra.mxu0 0
      %1971 = vmatprep.subr.bf16.mxu0 0
      %1972 = vmatpush2.bf16.msra.mxu0 0
      %1973 = vmatprep.subr.bf16.mxu0 0
      %1974 = vmatpush2.bf16.msra.mxu0 0
      %1975 = vmatprep.subr.bf16.mxu0 0
      %1976 = vmatpush2.bf16.msra.mxu0 0
      %1977 = vmatprep.subr.bf16.mxu0 0
      %1978 = vmatpush2.bf16.msra.mxu0 0
      %1979 = vmatprep.subr.bf16.mxu0 0
      %1980 = vmatpush2.bf16.msra.mxu0 0
      %1981 = vmatprep.subr.bf16.mxu0 0
      %1982 = vmatpush2.bf16.msra.mxu0 0
      %1983 = vmatprep.mubr.bf16.mxu0 0
      %1984 = vmatmul.mubr.bf16.gmra.mxu0 %v1946
      %v1985 = vpop.f32.mrf.mxu0
      %v1986 = vadd.f32 0.0, %v1985
      %v1987 = vpop.f32.mrf.mxu0
      %v1988 = vpop.f32.mrf.mxu0
      %v1989 = vpop.f32.mrf.mxu0
      %1990 = vdwg.mxu0
      %1992 = vrot.lane.b32.xlu0 %v1986, 16
      %v1993 = vpop.permute.xlu0 %1992
      %1995 = vst.msk [vmem:[#allocation4] sm:$0xff] %vm1042, %v1993
      %v1996 = vld [vmem:[#allocation2] sm:$0xf]
      %v1997 = vld [vmem:[#allocation3] sm:$0x7]
      %v1999 = vunpack.c.l.b16 %v1996
      %v2000 = vpack.c.b16 %v1999, %v1999
      %2001 = vrot.lane.b32.xlu0 %v2000, 104
      %v2002 = vpop.permute.xlu0 %2001
      %v2004 = vunpack.c.l.b16 %v1997
      %v2005 = vpack.c.b16 %v2004, %v2004
      %2006 = vrot.lane.b32.xlu0 %v2005, 104
      %v2007 = vpop.permute.xlu0 %2006
      %v2009 = vsel %vm680, %v2002, 0
      %v2012 = vsel %vm680, %v2007, 0
      %2014 = vmatprep.subr.bf16.mxu0 0
      %2015 = vmatpush1.bf16.xpose.msra.mxu0 0
      %2016 = vmatprep.subr.bf16.mxu0 0
      %2017 = vmatpush1.bf16.xpose.msra.mxu0 0
      %2018 = vmatprep.subr.bf16.mxu0 0
      %2019 = vmatpush1.bf16.xpose.msra.mxu0 0
      %2020 = vmatprep.subr.bf16.mxu0 0
      %2021 = vmatpush1.bf16.xpose.msra.mxu0 0
      %2022 = vmatprep.subr.bf16.mxu0 0
      %2023 = vmatpush1.bf16.xpose.msra.mxu0 0
      %2024 = vmatprep.subr.bf16.mxu0 0
      %2025 = vmatpush1.bf16.xpose.msra.mxu0 0
      %2026 = vmatprep.subr.bf16.mxu0 0
      %2027 = vmatpush1.bf16.xpose.msra.mxu0 0
      %2028 = vmatprep.subr.bf16.mxu0 0
      %2029 = vmatpush1.bf16.xpose.msra.mxu0 %v2012
      %2030 = vmatprep.subr.bf16.mxu0 0
      %2031 = vmatpush2.bf16.xpose.msra.mxu0 0
      %2032 = vmatprep.subr.bf16.mxu0 0
      %2033 = vmatpush2.bf16.xpose.msra.mxu0 0
      %2034 = vmatprep.subr.bf16.mxu0 0
      %2035 = vmatpush2.bf16.xpose.msra.mxu0 0
      %2036 = vmatprep.subr.bf16.mxu0 0
      %2037 = vmatpush2.bf16.xpose.msra.mxu0 0
      %2038 = vmatprep.subr.bf16.mxu0 0
      %2039 = vmatpush2.bf16.xpose.msra.mxu0 0
      %2040 = vmatprep.subr.bf16.mxu0 0
      %2041 = vmatpush2.bf16.xpose.msra.mxu0 0
      %2042 = vmatprep.subr.bf16.mxu0 0
      %2043 = vmatpush2.bf16.xpose.msra.mxu0 0
      %2044 = vmatprep.subr.bf16.mxu0 0
      %2045 = vmatpush2.bf16.xpose.msra.mxu0 0
      %2046 = vmatprep.mubr.bf16.mxu0 0
      %2047 = vmatmul.mubr.bf16.gmra.mxu0 %v2009
      %v2048 = vpop.f32.mrf.mxu0
      %v2049 = vadd.f32 0.0, %v2048
      %v2050 = vpop.f32.mrf.mxu0
      %v2051 = vpop.f32.mrf.mxu0
      %v2052 = vpop.f32.mrf.mxu0
      %2053 = vdwg.mxu0
      %v2054 = vsel %vm727, %v2049, -inf
      %2055 = vmax.xlane.f32.xlu0 %v2054
      %v2056 = vpop.xlane.xlu0 %2055
      %v2057 = vsub.f32 %v2049, %v2056
      %v2058 = vmul.f32 %v2057, 1.442695
      %v2059 = vpow.pop %v2058
      %v2060 = vsel %vm727, %v2059, 0.0
      %2061 = vadd.xlane.f32.xlu0 %v2060
      %v2062 = vpop.xlane.xlu0 %2061
      %v2063 = vrcp.pop %v2062
      %v2064 = vmul.f32 %v2059, %v2063
      %v2065 = vpack.c.bf16 %v2064, %v2064
      %2066 = vrot.lane.b32.xlu0 %v2005, 72
      %v2067 = vpop.permute.xlu0 %2066
      %v2069 = vsel %vm727, %v2065, 0
      %v2072 = vand.u32 %v2067, %v751
      %2074 = vmatprep.subr.bf16.mxu0 0
      %2075 = vmatpush1.bf16.msra.mxu0 0
      %2076 = vmatprep.subr.bf16.mxu0 0
      %2077 = vmatpush1.bf16.msra.mxu0 0
      %2078 = vmatprep.subr.bf16.mxu0 0
      %2079 = vmatpush1.bf16.msra.mxu0 0
      %2080 = vmatprep.subr.bf16.mxu0 0
      %2081 = vmatpush1.bf16.msra.mxu0 0
      %2082 = vmatprep.subr.bf16.mxu0 0
      %2083 = vmatpush1.bf16.msra.mxu0 0
      %2084 = vmatprep.subr.bf16.mxu0 0
      %2085 = vmatpush1.bf16.msra.mxu0 0
      %2086 = vmatprep.subr.bf16.mxu0 0
      %2087 = vmatpush1.bf16.msra.mxu0 0
      %2088 = vmatprep.subr.bf16.mxu0 0
      %2089 = vmatpush1.bf16.msra.mxu0 %v2072
      %2090 = vmatprep.subr.bf16.mxu0 0
      %2091 = vmatpush2.bf16.msra.mxu0 0
      %2092 = vmatprep.subr.bf16.mxu0 0
      %2093 = vmatpush2.bf16.msra.mxu0 0
      %2094 = vmatprep.subr.bf16.mxu0 0
      %2095 = vmatpush2.bf16.msra.mxu0 0
      %2096 = vmatprep.subr.bf16.mxu0 0
      %2097 = vmatpush2.bf16.msra.mxu0 0
      %2098 = vmatprep.subr.bf16.mxu0 0
      %2099 = vmatpush2.bf16.msra.mxu0 0
      %2100 = vmatprep.subr.bf16.mxu0 0
      %2101 = vmatpush2.bf16.msra.mxu0 0
      %2102 = vmatprep.subr.bf16.mxu0 0
      %2103 = vmatpush2.bf16.msra.mxu0 0
      %2104 = vmatprep.subr.bf16.mxu0 0
      %2105 = vmatpush2.bf16.msra.mxu0 0
      %2106 = vmatprep.mubr.bf16.mxu0 0
      %2107 = vmatmul.mubr.bf16.gmra.mxu0 %v2069
      %v2108 = vpop.f32.mrf.mxu0
      %v2109 = vadd.f32 0.0, %v2108
      %v2110 = vpop.f32.mrf.mxu0
      %v2111 = vpop.f32.mrf.mxu0
      %v2112 = vpop.f32.mrf.mxu0
      %2113 = vdwg.mxu0
      %2115 = vrot.lane.b32.xlu0 %v2109, 24
      %v2116 = vpop.permute.xlu0 %2115
      %2118 = vst.msk [vmem:[#allocation4] sm:$0xff] %vm1166, %v2116
      %v2119 = vld [vmem:[#allocation4] sm:$0xff]
      %s2120 = scalar_lea.vmem %s8, 16
      %v2121 = vld [vmem:[%s2120] sm:$0xf]
      %v2122 = vld [vmem:[%s2120 + $0x4] sm:$0xf]
      %v2123 = vld [vmem:[%s2120 + $0x8] sm:$0xf]
      %v2124 = vld [vmem:[%s2120 + $0xc] sm:$0xf]
      %v2125 = vpack.c.bf16 %v2119, %v2119
      %v2130 = vunpack.c.l.b16 %v2121
      %v2131 = vunpack.c.l.b16 %v2122
      %v2132 = vunpack.c.l.b16 %v2123
      %v2133 = vunpack.c.l.b16 %v2124
      %v2134 = vpack.c.b16 %v2131, %v2130
      %v2135 = vpack.c.b16 %v2133, %v2132
      %v2139 = vsel %vm485, %v2125, 0
      %2141 = vmatprep.subr.bf16.mxu0 0
      %2142 = vmatpush1.bf16.msra.mxu0 0
      %2143 = vmatprep.subr.bf16.mxu0 0
      %2144 = vmatpush1.bf16.msra.mxu0 0
      %2145 = vmatprep.subr.bf16.mxu0 0
      %2146 = vmatpush1.bf16.msra.mxu0 0
      %2147 = vmatprep.subr.bf16.mxu0 0
      %2148 = vmatpush1.bf16.msra.mxu0 0
      %2149 = vmatprep.subr.bf16.mxu0 0
      %2150 = vmatpush1.bf16.msra.mxu0 0
      %2151 = vmatprep.subr.bf16.mxu0 0
      %2152 = vmatpush1.bf16.msra.mxu0 0
      %2153 = vmatprep.subr.bf16.mxu0 0
      %2154 = vmatpush1.bf16.msra.mxu0 %v2135
      %2155 = vmatprep.subr.bf16.mxu0 0
      %2156 = vmatpush1.bf16.msra.mxu0 %v2134
      %2157 = vmatprep.subr.bf16.mxu0 0
      %2158 = vmatpush2.bf16.msra.mxu0 0
      %2159 = vmatprep.subr.bf16.mxu0 0
      %2160 = vmatpush2.bf16.msra.mxu0 0
      %2161 = vmatprep.subr.bf16.mxu0 0
      %2162 = vmatpush2.bf16.msra.mxu0 0
      %2163 = vmatprep.subr.bf16.mxu0 0
      %2164 = vmatpush2.bf16.msra.mxu0 0
      %2165 = vmatprep.subr.bf16.mxu0 0
      %2166 = vmatpush2.bf16.msra.mxu0 0
      %2167 = vmatprep.subr.bf16.mxu0 0
      %2168 = vmatpush2.bf16.msra.mxu0 0
      %2169 = vmatprep.subr.bf16.mxu0 0
      %2170 = vmatpush2.bf16.msra.mxu0 0
      %2171 = vmatprep.subr.bf16.mxu0 0
      %2172 = vmatpush2.bf16.msra.mxu0 0
      %2173 = vmatprep.mubr.bf16.mxu0 0
      %2174 = vmatmul.mubr.bf16.gmra.mxu0 %v2139
      %v2175 = vpop.f32.mrf.mxu0
      %v2176 = vadd.f32 0.0, %v2175
      %v2177 = vpop.f32.mrf.mxu0
      %v2178 = vpop.f32.mrf.mxu0
      %v2179 = vpop.f32.mrf.mxu0
      %2180 = vdwg.mxu0
      %v2181 = vadd.f32 %v1458, %v2176
      %s2182 = scalar_lea.vmem %s9, 1
      %v2183 = vld [vmem:[%s2182] sm:$0x1]
      %v2185 = vlaneseq
      %v2186 = vshrl.u32 %v2185, 7
      %v2187 = vsub.s32 0, %v2186
      %v2188 = vrot.slane %v2183, %v2187
      %v2190 = vadd.f32 %v2181, %v2188
      %v2191 = vld [vmem:[%s1459] sm:$0x1]
      %v2192 = vld [vmem:[%s1461] sm:$0x1]
      %v2193 = vsel %vm485, %v2190, 0.0
      %2194 = vadd.xlane.f32.xlu0 %v2193
      %v2195 = vpop.xlane.xlu0 %2194
      %v2196 = vmul.f32 %v2195, %v489
      %v2197 = vmul.f32 %v2190, %v2190
      %v2198 = vsel %vm485, %v2197, 0.0
      %2199 = vadd.xlane.f32.xlu0 %v2198
      %v2200 = vpop.xlane.xlu0 %2199
      %v2201 = vmul.f32 %v2200, %v489
      %v2202 = vmul.f32 %v2196, %v2196
      %v2203 = vsub.f32 %v2201, %v2202
      %v2204 = vsub.f32 %v2190, %v2196
      %v2205 = vadd.f32 %v2203, 1e-05
      %v2206 = vrsqrt.pop %v2205
      %v2207 = vmul.f32 %v2204, %v2206
      %v2209 = vlaneseq
      %v2210 = vshrl.u32 %v2209, 7
      %v2211 = vsub.s32 0, %v2210
      %v2212 = vrot.slane %v2191, %v2211
      %v2214 = vmul.f32 %v2207, %v2212
      %v2216 = vlaneseq
      %v2217 = vshrl.u32 %v2216, 7
      %v2218 = vsub.s32 0, %v2217
      %v2219 = vrot.slane %v2192, %v2218
      %v2221 = vadd.f32 %v2214, %v2219
      %s2222 = scalar_lea.vmem %s10, 16
      %v2223 = vld [vmem:[%s2222] sm:$0xf]
      %v2224 = vld [vmem:[%s2222 + $0x4] sm:$0xf]
      %v2225 = vld [vmem:[%s2222 + $0x8] sm:$0xf]
      %v2226 = vld [vmem:[%s2222 + $0xc] sm:$0xf]
      %v2227 = vpack.c.bf16 %v2221, %v2221
      %s2228 = scalar_lea.vmem %s11, 1
      %v2229 = vld [vmem:[%s2228] sm:$0x1]
      %v2231 = vlaneseq
      %v2232 = vshrl.u32 %v2231, 7
      %v2233 = vsub.s32 0, %v2232
      %v2234 = vrot.slane %v2229, %v2233
      %v2240 = vunpack.c.l.b16 %v2223
      %v2241 = vunpack.c.l.b16 %v2224
      %v2242 = vunpack.c.l.b16 %v2225
      %v2243 = vunpack.c.l.b16 %v2226
      %v2244 = vpack.c.b16 %v2241, %v2240
      %v2245 = vpack.c.b16 %v2243, %v2242
      %v2249 = vsel %vm485, %v2227, 0
      %2251 = vmatprep.subr.bf16.mxu0 0
      %2252 = vmatpush1.bf16.msra.mxu0 0
      %2253 = vmatprep.subr.bf16.mxu0 0
      %2254 = vmatpush1.bf16.msra.mxu0 0
      %2255 = vmatprep.subr.bf16.mxu0 0
      %2256 = vmatpush1.bf16.msra.mxu0 0
      %2257 = vmatprep.subr.bf16.mxu0 0
      %2258 = vmatpush1.bf16.msra.mxu0 0
      %2259 = vmatprep.subr.bf16.mxu0 0
      %2260 = vmatpush1.bf16.msra.mxu0 0
      %2261 = vmatprep.subr.bf16.mxu0 0
      %2262 = vmatpush1.bf16.msra.mxu0 0
      %2263 = vmatprep.subr.bf16.mxu0 0
      %2264 = vmatpush1.bf16.msra.mxu0 %v2245
      %2265 = vmatprep.subr.bf16.mxu0 0
      %2266 = vmatpush1.bf16.msra.mxu0 %v2244
      %2267 = vmatprep.subr.bf16.mxu0 0
      %2268 = vmatpush2.bf16.msra.mxu0 0
      %2269 = vmatprep.subr.bf16.mxu0 0
      %2270 = vmatpush2.bf16.msra.mxu0 0
      %2271 = vmatprep.subr.bf16.mxu0 0
      %2272 = vmatpush2.bf16.msra.mxu0 0
      %2273 = vmatprep.subr.bf16.mxu0 0
      %2274 = vmatpush2.bf16.msra.mxu0 0
      %2275 = vmatprep.subr.bf16.mxu0 0
      %2276 = vmatpush2.bf16.msra.mxu0 0
      %2277 = vmatprep.subr.bf16.mxu0 0
      %2278 = vmatpush2.bf16.msra.mxu0 0
      %2279 = vmatprep.subr.bf16.mxu0 0
      %2280 = vmatpush2.bf16.msra.mxu0 0
      %2281 = vmatprep.subr.bf16.mxu0 0
      %2282 = vmatpush2.bf16.msra.mxu0 0
      %2283 = vmatprep.mubr.bf16.mxu0 0
      %2284 = vmatmul.mubr.bf16.gmra.mxu0 %v2249
      %v2285 = vpop.f32.mrf.mxu0
      %v2286 = vadd.f32 %v2234, %v2285
      %v2287 = vpop.f32.mrf.mxu0
      %v2288 = vpop.f32.mrf.mxu0
      %v2289 = vpop.f32.mrf.mxu0
      %2290 = vdwg.mxu0
      %v2291 = vmul.f32 %v2286, 0.5
      %v2292 = vmul.f32 %v2286, 0.044715
      %v2293 = vmul.f32 %v2292, %v2286
      %v2294 = vmul.f32 %v2293, %v2286
      %v2295 = vadd.f32 %v2286, %v2294
      %v2296 = vmul.f32 %v2295, 0.7978846
      %v2297 = vtanh.pop %v2296
      %v2298 = vadd.f32 %v2297, 1.0
      %v2299 = vmul.f32 %v2291, %v2298
      %s2300 = scalar_lea.vmem %s12, 64
      %v2301 = vld [vmem:[%s2300] sm:$0xf]
      %v2302 = vld [vmem:[%s2300 + $0x4] sm:$0xf]
      %v2303 = vld [vmem:[%s2300 + $0x8] sm:$0xf]
      %v2304 = vld [vmem:[%s2300 + $0xc] sm:$0xf]
      %v2305 = vld [vmem:[%s2300 + $0x10] sm:$0xf]
      %v2306 = vld [vmem:[%s2300 + $0x14] sm:$0xf]
      %v2307 = vld [vmem:[%s2300 + $0x18] sm:$0xf]
      %v2308 = vld [vmem:[%s2300 + $0x1c] sm:$0xf]
      %v2309 = vld [vmem:[%s2300 + $0x20] sm:$0xf]
      %v2310 = vld [vmem:[%s2300 + $0x24] sm:$0xf]
      %v2311 = vld [vmem:[%s2300 + $0x28] sm:$0xf]
      %v2312 = vld [vmem:[%s2300 + $0x2c] sm:$0xf]
      %v2313 = vld [vmem:[%s2300 + $0x30] sm:$0xf]
      %v2314 = vld [vmem:[%s2300 + $0x34] sm:$0xf]
      %v2315 = vld [vmem:[%s2300 + $0x38] sm:$0xf]
      %v2316 = vld [vmem:[%s2300 + $0x3c] sm:$0xf]
      %v2317 = vpack.c.bf16 %v2299, %v2299
      %v2334 = vunpack.c.l.b16 %v2301
      %v2335 = vunpack.c.l.b16 %v2302
      %v2336 = vunpack.c.l.b16 %v2303
      %v2337 = vunpack.c.l.b16 %v2304
      %v2338 = vunpack.c.l.b16 %v2305
      %v2339 = vunpack.c.l.b16 %v2306
      %v2340 = vunpack.c.l.b16 %v2307
      %v2341 = vunpack.c.l.b16 %v2308
      %v2342 = vunpack.c.l.b16 %v2309
      %v2343 = vunpack.c.l.b16 %v2310
      %v2344 = vunpack.c.l.b16 %v2311
      %v2345 = vunpack.c.l.b16 %v2312
      %v2346 = vunpack.c.l.b16 %v2313
      %v2347 = vunpack.c.l.b16 %v2314
      %v2348 = vunpack.c.l.b16 %v2315
      %v2349 = vunpack.c.l.b16 %v2316
      %v2350 = vpack.c.b16 %v2335, %v2334
      %v2351 = vpack.c.b16 %v2337, %v2336
      %v2352 = vpack.c.b16 %v2339, %v2338
      %v2353 = vpack.c.b16 %v2341, %v2340
      %v2354 = vpack.c.b16 %v2343, %v2342
      %v2355 = vpack.c.b16 %v2345, %v2344
      %v2356 = vpack.c.b16 %v2347, %v2346
      %v2357 = vpack.c.b16 %v2349, %v2348
      %2366 = vmatprep.subr.bf16.mxu0 0
      %2367 = vmatpush1.bf16.msra.mxu0 %v2357
      %2368 = vmatprep.subr.bf16.mxu0 0
      %2369 = vmatpush1.bf16.msra.mxu0 %v2356
      %2370 = vmatprep.subr.bf16.mxu0 0
      %2371 = vmatpush1.bf16.msra.mxu0 %v2355
      %2372 = vmatprep.subr.bf16.mxu0 0
      %2373 = vmatpush1.bf16.msra.mxu0 %v2354
      %2374 = vmatprep.subr.bf16.mxu0 0
      %2375 = vmatpush1.bf16.msra.mxu0 %v2353
      %2376 = vmatprep.subr.bf16.mxu0 0
      %2377 = vmatpush1.bf16.msra.mxu0 %v2352
      %2378 = vmatprep.subr.bf16.mxu0 0
      %2379 = vmatpush1.bf16.msra.mxu0 %v2351
      %2380 = vmatprep.subr.bf16.mxu0 0
      %2381 = vmatpush1.bf16.msra.mxu0 %v2350
      %2382 = vmatprep.subr.bf16.mxu0 0
      %2383 = vmatpush2.bf16.msra.mxu0 0
      %2384 = vmatprep.subr.bf16.mxu0 0
      %2385 = vmatpush2.bf16.msra.mxu0 0
      %2386 = vmatprep.subr.bf16.mxu0 0
      %2387 = vmatpush2.bf16.msra.mxu0 0
      %2388 = vmatprep.subr.bf16.mxu0 0
      %2389 = vmatpush2.bf16.msra.mxu0 0
      %2390 = vmatprep.subr.bf16.mxu0 0
      %2391 = vmatpush2.bf16.msra.mxu0 0
      %2392 = vmatprep.subr.bf16.mxu0 0
      %2393 = vmatpush2.bf16.msra.mxu0 0
      %2394 = vmatprep.subr.bf16.mxu0 0
      %2395 = vmatpush2.bf16.msra.mxu0 0
      %2396 = vmatprep.subr.bf16.mxu0 0
      %2397 = vmatpush2.bf16.msra.mxu0 0
      %2398 = vmatprep.mubr.bf16.mxu0 0
      %2399 = vmatmul.mubr.bf16.gmra.mxu0 %v2317
      %v2400 = vpop.f32.mrf.mxu0
      %v2401 = vadd.f32 0.0, %v2400
      %v2402 = vpop.f32.mrf.mxu0
      %v2403 = vpop.f32.mrf.mxu0
      %v2404 = vpop.f32.mrf.mxu0
      %2405 = vdwg.mxu0
      %v2406 = vadd.f32 %v2190, %v2401
      %s2407 = scalar_lea.vmem %s13, 1
      %v2408 = vld [vmem:[%s2407] sm:$0x1]
      %v2410 = vlaneseq
      %v2411 = vshrl.u32 %v2410, 7
      %v2412 = vsub.s32 0, %v2411
      %v2413 = vrot.slane %v2408, %v2412
      %v2415 = vadd.f32 %v2406, %v2413
      %2416 = vst.msk [vmem:[%s479] sm:$0xff] %vm485, %v2415
      %p2417 = scmp.lt.s32.totalorder %s25, 1
      %s2418 = scalar_select %p2417, %s25, 1
      %s2419 = smul.addr %s2418, 8
      %s2420 = scalar_lea.vmem %s14, %s2419
      // Predicated region
      $region77: #{_forward_impl.4} parent=75 // pred_check
        %p2421 = pneg %p347
      $region78: #{_forward_impl.4} parent=75 // pred_check_branch
        %2423 = sbr.rel (%p2421) target = $region80
      $region79: #{_forward_impl.4} parent=75 // pred_region
        _
      $region80: #{_forward_impl.4} parent=75 // pred_fallthru
        _
    $region76: #{_forward_impl.4} parent=5 // pred_fallthru
      _
    %p2424 = scmp.le.s32.totalorder 2, %s20
    // Predicated region
    $region81: #{_forward_impl.4} parent=5 // pred_check
      %p2425 = pneg %p2424
    $region82: #{_forward_impl.4} parent=5 // pred_check_branch
      %2427 = sbr.rel (%p2425) target = $region84
    $region83: #{_forward_impl.4} parent=5 // pred_region
      %s2428 = ssub.s32 %s20, 2
      // Predicated region
      $region85: #{_forward_impl.4} parent=83 // pred_check
        %p2429 = pneg %p353
      $region86: #{_forward_impl.4} parent=83 // pred_check_branch
        %2431 = sbr.rel (%p2429) target = $region88
      $region87: #{_forward_impl.4} parent=83 // pred_region
        %p2432 = scmp.lt.s32.totalorder %s26, 1
        %s2433 = scalar_select %p2432, %s26, 1
        %s2434 = smul.addr %s2433, 8
        %s2435 = scalar_lea.vmem %s14, %s2434
      $region88: #{_forward_impl.4} parent=83 // pred_fallthru
        _
    $region84: #{_forward_impl.4} parent=5 // pred_fallthru
      _
  $region6: #{_forward_impl.4} parent=0 // loop_footer
    %s24 = sadd.s32 1, %s20
  $region7: #{_forward_impl.4} parent=0 // loop_footer_branch
    %19 = sbr.rel target = $region3
  $region8: #{_forward_impl.4} parent=0 // loop_exit
    _

</llo_original>
